<compile_context>
chip_gen: v5e
topology: v5e:2x2
jax: 0.10.0
libtpu: 0.0.40
codegen_flags: <defaults>
</compile_context>

<pallas_src>
import functools
import math

import jax
import jax.numpy as jnp
import numpy as np
from jax import lax
from jax.experimental import pallas as pl
from jax.experimental.pallas import tpu as pltpu

NUM_HEADS = 4
LN_EPS = 1e-12
MASK_BIAS = -1e30


def _cross_attn_kernel(tgt_ref, ctx_ref, bias_ref,
                       wq_ref, bq_ref, wkv_ref, bkv_ref,
                       wo_ref, bo_ref, gamma_ref, beta_ref,
                       vmask_ref, hsel_ref, hexp_ref,
                       out_ref, *, block_b):
    H = NUM_HEADS
    tgt = tgt_ref[...]                       # (Bt*Lq, idf) f32 (residual needs f32)
    idf = tgt.shape[-1]
    lq = tgt.shape[0] // block_b
    ls = ctx_ref.shape[0] // block_b

    # ---- fused projections over all Bt batch elements (one big MXU pass each) --
    # wq/bq already carry the 1/sqrt(dh) score scale (folded host-side).
    q = jnp.dot(tgt.astype(jnp.bfloat16), wq_ref[...],
                preferred_element_type=jnp.float32) + bq_ref[...]          # (Bt*Lq, idf)
    # conv1x1(cdf->idf) folded into these weights host-side; K and V share one matmul.
    kv = jnp.dot(ctx_ref[...], wkv_ref[...],
                 preferred_element_type=jnp.float32) + bkv_ref[...]        # (Bt*Ls, 2*idf)
    k = kv[:, :idf]
    v = kv[:, idf:]

    vmask = vmask_ref[...]                   # (H*Ls, idf) bf16 block-diagonal indicator
    hsel = hsel_ref[...]                     # (H*Ls, H)   f32  per-head sum selector
    hexp = hexp_ref[...]                     # (H, idf)    f32  head -> channel expander
    bias = bias_ref[...]                     # (Bt, 1, H*Ls) f32 additive mask (0 / -1e30)

    # ---- attention: per batch element, all 4 heads packed into one MXU pass ----
    # (small static Python unroll over block_b; every op stays plain 2-D)
    ctx_chunks = []
    for b in range(block_b):
        q_b = q[b * lq:(b + 1) * lq, :].astype(jnp.bfloat16)               # (Lq, idf)
        k_b = k[b * ls:(b + 1) * ls, :].astype(jnp.bfloat16)               # (Ls, idf)
        v_b = v[b * ls:(b + 1) * ls, :].astype(jnp.bfloat16)

        # Head-stacked block-diagonal K/V: rows [h*Ls:(h+1)*Ls] keep only the
        # channels of head h.  One bf16 mask serves both; no transpose, no kmask.
        k_stk = jnp.concatenate([k_b] * H, axis=0) * vmask                 # (H*Ls, idf)
        v_stk = jnp.concatenate([v_b] * H, axis=0) * vmask                 # (H*Ls, idf)

        # scores for all heads at once; contract the last dims (no in-kernel k.T).
        s = lax.dot_general(q_b, k_stk, (((1,), (1,)), ((), ())),
                            preferred_element_type=jnp.float32)            # (Lq, H*Ls)
        s = s + bias[b]                                                    # additive mask

        # Per-head softmax with a shared row max (valid: the mask is per source
        # position and shared across heads) and deferred normalisation.
        e = jnp.exp(s - jnp.max(s, axis=-1, keepdims=True))                # f32
        denom = jnp.dot(e, hsel, preferred_element_type=jnp.float32)       # (Lq, H)
        inv = pl.reciprocal(denom, approx=True)                            # EUP slot
        scale = jnp.dot(inv, hexp, preferred_element_type=jnp.float32)     # (Lq, idf)
        ctx_un = jnp.dot(e.astype(jnp.bfloat16), v_stk,
                         preferred_element_type=jnp.float32)               # (Lq, idf)
        ctx_chunks.append(ctx_un * scale)        # attention-prob dropout = identity

    ctx_layer = jnp.concatenate(ctx_chunks, axis=0)                        # (Bt*Lq, idf)

    # ---- output dense + residual + LayerNorm (eps=1e-12), elementwise in f32 ---
    o = jnp.dot(ctx_layer.astype(jnp.bfloat16), wo_ref[...],
                preferred_element_type=jnp.float32) + bo_ref[...]
    x = o + tgt                                   # residual reads the f32 input
    mu = jnp.mean(x, axis=-1, keepdims=True)
    var = jnp.mean((x - mu) ** 2, axis=-1, keepdims=True)
    y = (x - mu) * lax.rsqrt(var + LN_EPS)
    out_ref[...] = y * gamma_ref[...] + beta_ref[...]


def _pick_block_batch(batch, query_rows, target_rows=256):
    """Batch elements fused per grid step: grow until the projection matmuls have
    >= target_rows rows (fills MXU rows, amortises per-step pipeline overhead)
    while keeping >= 2 grid steps whenever possible (both v7x TensorCores fed).
    On v5e, >=128 rows already fills a pass; the same picker satisfies that."""
    bt = 1
    for cand in range(2, batch + 1):
        if batch % cand != 0:
            continue
        if batch >= 2 and batch // cand < 2:
            break                      # would serialize the kernel onto one core
        bt = cand
        if bt * query_rows >= target_rows:
            break
    return bt


def lxmert_cross_attention(input_tensor, ctx_tensor, params, ctx_att_mask=None):
    """input_tensor: [B, idf, ih, iw], ctx_tensor: [B, cdf, sourceL],
    ctx_att_mask: [B, sourceL] (mask > 0 positions are dropped) or None."""
    B, idf, ih, iw = input_tensor.shape
    queryL = ih * iw
    cdf, sourceL = ctx_tensor.shape[1], ctx_tensor.shape[2]
    H = NUM_HEADS
    dh = idf // H
    assert idf % H == 0
    assert queryL % 8 == 0 and sourceL % 8 == 0, "sublane-aligned tiles expected"
    # TODO(synk): pad queryL/sourceL to a multiple of 8 for arbitrary spatial/seq sizes.

    Bt = _pick_block_batch(B, queryL)
    grid = (B // Bt,)

    # ---- host-side glue (one-time, loop-invariant) ---------------------------
    # targetT stays f32 (residual path); ctxT streams as bf16 (MXU-only operand).
    targetT = jnp.transpose(input_tensor.reshape(B, idf, queryL),
                            (0, 2, 1)).reshape(B * queryL, idf)             # (B*Lq, idf) f32
    ctxT = jnp.transpose(ctx_tensor, (0, 2, 1)).reshape(B * sourceL, cdf)
    ctxT = ctxT.astype(jnp.bfloat16)                                        # (B*Ls, cdf) bf16

    if ctx_att_mask is None:
        bias = jnp.zeros((B, 1, H * sourceL), jnp.float32)
    else:
        b1 = jnp.where(ctx_att_mask.reshape(B, 1, sourceL) > 0, MASK_BIAS, 0.0)
        bias = jnp.tile(b1.astype(jnp.float32), (1, 1, H))                  # head-tiled

    # PyTorch Linear is y = x @ W^T + b: pre-transpose all dense weights once,
    # fold the 1x1 conv into K/V, fuse K|V into one (cdf, 2*idf) matmul, and fold
    # the 1/sqrt(dh) score scale into the Q weights/bias.
    inv_sqrt_dh = 1.0 / math.sqrt(dh)
    wq_t = (params["wq"].T * inv_sqrt_dh).astype(jnp.bfloat16)              # (idf, idf)
    bq_s = params["bq"] * inv_sqrt_dh                                       # (1, idf) f32
    wk_f = params["w_ctx"].T @ params["wk"].T                               # (cdf, idf)
    wv_f = params["w_ctx"].T @ params["wv"].T                               # (cdf, idf)
    w_kv = jnp.concatenate([wk_f, wv_f], axis=1).astype(jnp.bfloat16)       # (cdf, 2*idf)
    b_kv = jnp.concatenate([params["bk"], params["bv"]], axis=1)            # (1, 2*idf)
    wo_t = params["wo"].T.astype(jnp.bfloat16)                              # (idf, idf)

    # Head-packing selectors: one bf16 block-diagonal indicator (vmask) for the
    # stacked K and V; thin f32 selectors for per-head softmax sums / expansion.
    head_of_chan = jnp.arange(idf) // dh                                    # (idf,)
    head_of_row = jnp.arange(H * sourceL) // sourceL                        # (H*Ls,)
    vmask = (head_of_row[:, None] == head_of_chan[None, :]).astype(jnp.bfloat16)  # (H*Ls, idf)
    hsel = (head_of_row[:, None] == jnp.arange(H)[None, :]).astype(jnp.float32)   # (H*Ls, H)
    hexp = (jnp.arange(H)[:, None] == head_of_chan[None, :]).astype(jnp.float32)  # (H, idf)

    def stream2d(rows, cols):
        return pl.BlockSpec((rows, cols), lambda i: (i, 0))

    def full_spec(shape):
        return pl.BlockSpec(shape, lambda i: (0,) * len(shape))

    in_specs = [
        stream2d(Bt * queryL, idf),                               # targetT (f32)
        stream2d(Bt * sourceL, cdf),                              # ctxT    (bf16)
        pl.BlockSpec((Bt, 1, H * sourceL), lambda i: (i, 0, 0)),  # additive mask bias
        full_spec((idf, idf)),                                    # wq_t (bf16, scale folded)
        full_spec((1, idf)),                                      # bq   (scale folded)
        full_spec((cdf, 2 * idf)),                                # w_kv (bf16, conv folded)
        full_spec((1, 2 * idf)),                                  # b_kv
        full_spec((idf, idf)),                                    # wo_t (bf16)
        full_spec((1, idf)),                                      # bo
        full_spec((1, idf)),                                      # gamma
        full_spec((1, idf)),                                      # beta
        full_spec((H * sourceL, idf)),                            # vmask (bf16)
        full_spec((H * sourceL, H)),                              # hsel
        full_spec((H, idf)),                                      # hexp
    ]
    # NOTE: on v7x (64 MiB VMEM) the grid-invariant weight/mask specs could take
    # pipeline_mode=pl.Buffered(1) to halve their (here already tiny) footprint.

    out = pl.pallas_call(
        functools.partial(_cross_attn_kernel, block_b=Bt),
        out_shape=jax.ShapeDtypeStruct((B * queryL, idf), jnp.float32),
        grid=grid,
        in_specs=in_specs,
        out_specs=stream2d(Bt * queryL, idf),     # lane-dense store for idf >= 128
        compiler_params=pltpu.CompilerParams(
            dimension_semantics=("parallel",),    # batch-group steps feed both TCs on v7x
            vmem_limit_bytes=32 * 1024 * 1024,    # comfortable budget on v5e/v6e/v7x
        ),
    )(targetT, ctxT, bias,
      wq_t, bq_s, w_kv, b_kv, wo_t, params["bo"],
      params["gamma"], params["beta"],
      vmask, hsel, hexp)

    # torch `.view(B, -1, ih, iw)` on the (B, queryL, idf)-contiguous result is a
    # raw row-major reinterpretation (NOT a transpose) — same as jnp.reshape.
    attention_output = out.reshape(B, idf, ih, iw)
    # TODO(synk): output_attentions=True path (per-head attention_probs) is not
    # materialized by the kernel; it returns None like the default torch call.
    return attention_output, None


def init_params(key, idf, cdf):
    """Deterministic synthetic parameters (PyTorch-default-style uniform init)."""
    ks = jax.random.split(key, 10)

    def lin_w(k, out_dim, in_dim):
        bound = 1.0 / math.sqrt(in_dim)
        return jax.random.uniform(k, (out_dim, in_dim), jnp.float32, -bound, bound)

    def lin_b(k, out_dim, in_dim):
        bound = 1.0 / math.sqrt(in_dim)
        return jax.random.uniform(k, (1, out_dim), jnp.float32, -bound, bound)

    return {
        "w_ctx": lin_w(ks[0], idf, cdf),            # conv1x1 weight [idf, cdf] (1x1 squeezed)
        "wq": lin_w(ks[1], idf, idf), "bq": lin_b(ks[2], idf, idf),
        "wk": lin_w(ks[3], idf, idf), "bk": lin_b(ks[4], idf, idf),
        "wv": lin_w(ks[5], idf, idf), "bv": lin_b(ks[6], idf, idf),
        "wo": lin_w(ks[7], idf, idf), "bo": lin_b(ks[8], idf, idf),
        "gamma": jnp.ones((1, idf), jnp.float32),
        "beta": jnp.zeros((1, idf), jnp.float32),
    }


def reference(input_tensor, ctx_tensor, params, ctx_att_mask=None):
    """Pure-JAX f32 replica of the PyTorch forward (inference mode) for verification."""
    B, idf, ih, iw = input_tensor.shape
    queryL = ih * iw
    sourceL = ctx_tensor.shape[2]
    dh = idf // NUM_HEADS

    targetT = jnp.transpose(input_tensor.reshape(B, idf, queryL), (0, 2, 1))
    src = jnp.einsum("oc,bcl->blo", params["w_ctx"], ctx_tensor)     # (B, Ls, idf)

    q = targetT @ params["wq"].T + params["bq"]
    k = src @ params["wk"].T + params["bk"]
    v = src @ params["wv"].T + params["bv"]

    def split(x):
        return jnp.transpose(x.reshape(B, -1, NUM_HEADS, dh), (0, 2, 1, 3))

    qh, kh, vh = split(q), split(k), split(v)
    s = jnp.einsum("bhqd,bhkd->bhqk", qh, kh) / math.sqrt(dh)
    if ctx_att_mask is not None:
        m = ctx_att_mask.reshape(B, 1, 1, sourceL)
        s = jnp.where(m > 0, -jnp.inf, s)
    p = jax.nn.softmax(s, axis=-1)
    o = jnp.einsum("bhqk,bhkd->bhqd", p, vh)
    o = jnp.transpose(o, (0, 2, 1, 3)).reshape(B, queryL, idf)

    o = o @ params["wo"].T + params["bo"]
    x = o + targetT
    mu = jnp.mean(x, axis=-1, keepdims=True)
    var = jnp.mean((x - mu) ** 2, axis=-1, keepdims=True)
    y = (x - mu) / jnp.sqrt(var + LN_EPS) * params["gamma"] + params["beta"]
    return y.reshape(B, idf, ih, iw)


if __name__ == "__main__":
    # idf=128 keeps the output store lane-dense; Bt=2 -> 512-row projection
    # matmuls per grid step and a 2-step "parallel" grid (both v7x TCs fed).
    B, idf, cdf, ih, iw, sourceL = 4, 128, 64, 16, 16, 16

    key = jax.random.PRNGKey(0)
    k_in, k_ctx, k_mask, k_par = jax.random.split(key, 4)

    input_tensor = jax.random.normal(k_in, (B, idf, ih, iw), jnp.float32)
    ctx_tensor = jax.random.normal(k_ctx, (B, cdf, sourceL), jnp.float32)
    ctx_att_mask = (jax.random.uniform(k_mask, (B, sourceL)) > 0.7).astype(jnp.float32)
    ctx_att_mask = ctx_att_mask.at[:, 0].set(0.0)   # keep at least one attendable position

    params = init_params(k_par, idf, cdf)

    out, _ = lxmert_cross_attention(input_tensor, ctx_tensor, params, ctx_att_mask)
    out = jax.block_until_ready(out)

    ref = jax.block_until_ready(reference(input_tensor, ctx_tensor, params, ctx_att_mask))
    # bf16 MXU operands (f32 accumulation) + approx reciprocal bound agreement to ~1e-2.
    np.testing.assert_allclose(np.asarray(out), np.asarray(ref), rtol=2e-2, atol=2e-2)

    print("KERNEL_OK")
</pallas_src>

<mosaic_0001>
module attributes {stable_mosaic.version = 11 : i64} {
  func.func @_cross_attn_kernel(%arg0: i32, %arg1: memref<512x128xf32, #tpu.memory_space<vmem>>, %arg2: memref<32x64xbf16, #tpu.memory_space<vmem>>, %arg3: memref<2x1x64xf32, #tpu.memory_space<vmem>>, %arg4: memref<128x128xbf16, #tpu.memory_space<vmem>>, %arg5: memref<1x128xf32, #tpu.memory_space<vmem>>, %arg6: memref<64x256xbf16, #tpu.memory_space<vmem>>, %arg7: memref<1x256xf32, #tpu.memory_space<vmem>>, %arg8: memref<128x128xbf16, #tpu.memory_space<vmem>>, %arg9: memref<1x128xf32, #tpu.memory_space<vmem>>, %arg10: memref<1x128xf32, #tpu.memory_space<vmem>>, %arg11: memref<1x128xf32, #tpu.memory_space<vmem>>, %arg12: memref<64x128xbf16, #tpu.memory_space<vmem>>, %arg13: memref<64x4xf32, #tpu.memory_space<vmem>>, %arg14: memref<4x128xf32, #tpu.memory_space<vmem>>, %arg15: memref<512x128xf32, #tpu.memory_space<vmem>>) attributes {dimension_semantics = [#tpu.dimension_semantics<parallel>], iteration_bounds = array<i64: 2>, scalar_prefetch = 0 : i64, scratch_operands = 0 : i64, tpu.core_type = #tpu.core_type<tc>, window_params = [{transform_indices = @transform_0, window_bounds = array<i64: 512, 128>}, {transform_indices = @transform_1, window_bounds = array<i64: 32, 64>}, {transform_indices = @transform_2, window_bounds = array<i64: 2, 1, 64>}, {pipeline_mode = #tpu.pipeline_mode<synchronous>, transform_indices = @transform_3, window_bounds = array<i64: 128, 128>}, {pipeline_mode = #tpu.pipeline_mode<synchronous>, transform_indices = @transform_4, window_bounds = array<i64: 1, 128>}, {pipeline_mode = #tpu.pipeline_mode<synchronous>, transform_indices = @transform_5, window_bounds = array<i64: 64, 256>}, {pipeline_mode = #tpu.pipeline_mode<synchronous>, transform_indices = @transform_6, window_bounds = array<i64: 1, 256>}, {pipeline_mode = #tpu.pipeline_mode<synchronous>, transform_indices = @transform_7, window_bounds = array<i64: 128, 128>}, {pipeline_mode = #tpu.pipeline_mode<synchronous>, transform_indices = @transform_8, window_bounds = array<i64: 1, 128>}, {pipeline_mode = #tpu.pipeline_mode<synchronous>, transform_indices = @transform_9, window_bounds = array<i64: 1, 128>}, {pipeline_mode = #tpu.pipeline_mode<synchronous>, transform_indices = @transform_10, window_bounds = array<i64: 1, 128>}, {pipeline_mode = #tpu.pipeline_mode<synchronous>, transform_indices = @transform_11, window_bounds = array<i64: 64, 128>}, {pipeline_mode = #tpu.pipeline_mode<synchronous>, transform_indices = @transform_12, window_bounds = array<i64: 64, 4>}, {pipeline_mode = #tpu.pipeline_mode<synchronous>, transform_indices = @transform_13, window_bounds = array<i64: 4, 128>}, {transform_indices = @transform_14, window_bounds = array<i64: 512, 128>}]} {
    %c0 = arith.constant 0 : index
    %c0_0 = arith.constant 0 : index
    %0 = vector.load %arg1[%c0, %c0_0] : memref<512x128xf32, #tpu.memory_space<vmem>>, vector<512x128xf32>
    %1 = arith.truncf %0 : vector<512x128xf32> to vector<512x128xbf16>
    %c0_1 = arith.constant 0 : index
    %c0_2 = arith.constant 0 : index
    %2 = vector.load %arg4[%c0_1, %c0_2] : memref<128x128xbf16, #tpu.memory_space<vmem>>, vector<128x128xbf16>
    %cst = arith.constant dense<0.000000e+00> : vector<512x128xf32>
    %3 = tpu.matmul %1, %2, %cst {dimension_numbers = #tpu.dot_dimension_numbers<[1], [0], [0], [1], [0, 0, 1, 1], [], []>} : vector<512x128xbf16>, vector<128x128xbf16>, vector<512x128xf32> -> vector<512x128xf32>
    %c0_3 = arith.constant 0 : index
    %c0_4 = arith.constant 0 : index
    %4 = vector.load %arg5[%c0_3, %c0_4] : memref<1x128xf32, #tpu.memory_space<vmem>>, vector<1x128xf32>
    %5 = vector.broadcast %4 : vector<1x128xf32> to vector<512x128xf32>
    %6 = arith.addf %3, %5 : vector<512x128xf32>
    %c0_5 = arith.constant 0 : index
    %c0_6 = arith.constant 0 : index
    %7 = vector.load %arg2[%c0_5, %c0_6] : memref<32x64xbf16, #tpu.memory_space<vmem>>, vector<32x64xbf16>
    %c0_7 = arith.constant 0 : index
    %c0_8 = arith.constant 0 : index
    %8 = vector.load %arg6[%c0_7, %c0_8] : memref<64x256xbf16, #tpu.memory_space<vmem>>, vector<64x256xbf16>
    %cst_9 = arith.constant dense<0.000000e+00> : vector<32x256xf32>
    %9 = tpu.matmul %7, %8, %cst_9 {dimension_numbers = #tpu.dot_dimension_numbers<[1], [0], [0], [1], [0, 0, 1, 1], [], []>} : vector<32x64xbf16>, vector<64x256xbf16>, vector<32x256xf32> -> vector<32x256xf32>
    %c0_10 = arith.constant 0 : index
    %c0_11 = arith.constant 0 : index
    %10 = vector.load %arg7[%c0_10, %c0_11] : memref<1x256xf32, #tpu.memory_space<vmem>>, vector<1x256xf32>
    %11 = vector.broadcast %10 : vector<1x256xf32> to vector<32x256xf32>
    %12 = arith.addf %9, %11 : vector<32x256xf32>
    %13 = vector.extract_strided_slice %12 {offsets = [0, 0], sizes = [32, 128], strides = [1, 1]} : vector<32x256xf32> to vector<32x128xf32>
    %14 = vector.extract_strided_slice %12 {offsets = [0, 128], sizes = [32, 128], strides = [1, 1]} : vector<32x256xf32> to vector<32x128xf32>
    %c0_12 = arith.constant 0 : index
    %c0_13 = arith.constant 0 : index
    %15 = vector.load %arg12[%c0_12, %c0_13] : memref<64x128xbf16, #tpu.memory_space<vmem>>, vector<64x128xbf16>
    %c0_14 = arith.constant 0 : index
    %c0_15 = arith.constant 0 : index
    %16 = vector.load %arg13[%c0_14, %c0_15] : memref<64x4xf32, #tpu.memory_space<vmem>>, vector<64x4xf32>
    %c0_16 = arith.constant 0 : index
    %c0_17 = arith.constant 0 : index
    %17 = vector.load %arg14[%c0_16, %c0_17] : memref<4x128xf32, #tpu.memory_space<vmem>>, vector<4x128xf32>
    %c0_18 = arith.constant 0 : index
    %c0_19 = arith.constant 0 : index
    %c0_20 = arith.constant 0 : index
    %18 = vector.load %arg3[%c0_18, %c0_19, %c0_20] : memref<2x1x64xf32, #tpu.memory_space<vmem>>, vector<2x1x64xf32>
    %19 = vector.extract_strided_slice %6 {offsets = [0, 0], sizes = [256, 128], strides = [1, 1]} : vector<512x128xf32> to vector<256x128xf32>
    %20 = arith.truncf %19 : vector<256x128xf32> to vector<256x128xbf16>
    %21 = vector.extract_strided_slice %13 {offsets = [0, 0], sizes = [16, 128], strides = [1, 1]} : vector<32x128xf32> to vector<16x128xf32>
    %22 = arith.truncf %21 : vector<16x128xf32> to vector<16x128xbf16>
    %23 = vector.extract_strided_slice %14 {offsets = [0, 0], sizes = [16, 128], strides = [1, 1]} : vector<32x128xf32> to vector<16x128xf32>
    %24 = arith.truncf %23 : vector<16x128xf32> to vector<16x128xbf16>
    %25 = tpu.concatenate %22, %22, %22, %22 in 0 : vector<16x128xbf16>, vector<16x128xbf16>, vector<16x128xbf16>, vector<16x128xbf16> -> vector<64x128xbf16>
    %26 = arith.mulf %25, %15 : vector<64x128xbf16>
    %27 = tpu.concatenate %24, %24, %24, %24 in 0 : vector<16x128xbf16>, vector<16x128xbf16>, vector<16x128xbf16>, vector<16x128xbf16> -> vector<64x128xbf16>
    %28 = arith.mulf %27, %15 : vector<64x128xbf16>
    %cst_21 = arith.constant dense<0.000000e+00> : vector<256x64xf32>
    %29 = tpu.matmul %20, %26, %cst_21 {dimension_numbers = #tpu.dot_dimension_numbers<[1], [1], [0], [0], [0, 0, 1, 0], [], []>} : vector<256x128xbf16>, vector<64x128xbf16>, vector<256x64xf32> -> vector<256x64xf32>
    %30 = vector.extract_strided_slice %18 {offsets = [0, 0, 0], sizes = [1, 1, 64], strides = [1, 1, 1]} : vector<2x1x64xf32> to vector<1x1x64xf32>
    %31 = vector.shape_cast %30 : vector<1x1x64xf32> to vector<1x64xf32>
    %32 = vector.broadcast %31 : vector<1x64xf32> to vector<256x64xf32>
    %33 = arith.addf %29, %32 : vector<256x64xf32>
    %cst_22 = arith.constant dense<0xFF800000> : vector<256xf32>
    %34 = vector.multi_reduction <maximumf>, %33, %cst_22 [1] : vector<256x64xf32> to vector<256xf32>
    %35 = vector.shape_cast %34 : vector<256xf32> to vector<256x1xf32>
    %36 = vector.broadcast %35 : vector<256x1xf32> to vector<256x64xf32>
    %37 = arith.subf %33, %36 : vector<256x64xf32>
    %38 = math.exp %37 : vector<256x64xf32>
    %cst_23 = arith.constant dense<0.000000e+00> : vector<256x4xf32>
    %39 = tpu.matmul %38, %16, %cst_23 {dimension_numbers = #tpu.dot_dimension_numbers<[1], [0], [0], [1], [0, 0, 1, 1], [], []>} : vector<256x64xf32>, vector<64x4xf32>, vector<256x4xf32> -> vector<256x4xf32>
    %40 = tpu.reciprocal %39 {approx = true} : vector<256x4xf32> -> vector<256x4xf32>
    %cst_24 = arith.constant dense<0.000000e+00> : vector<256x128xf32>
    %41 = tpu.matmul %40, %17, %cst_24 {dimension_numbers = #tpu.dot_dimension_numbers<[1], [0], [0], [1], [0, 0, 1, 1], [], []>} : vector<256x4xf32>, vector<4x128xf32>, vector<256x128xf32> -> vector<256x128xf32>
    %42 = arith.truncf %38 : vector<256x64xf32> to vector<256x64xbf16>
    %cst_25 = arith.constant dense<0.000000e+00> : vector<256x128xf32>
    %43 = tpu.matmul %42, %28, %cst_25 {dimension_numbers = #tpu.dot_dimension_numbers<[1], [0], [0], [1], [0, 0, 1, 1], [], []>} : vector<256x64xbf16>, vector<64x128xbf16>, vector<256x128xf32> -> vector<256x128xf32>
    %44 = arith.mulf %43, %41 : vector<256x128xf32>
    %45 = vector.extract_strided_slice %6 {offsets = [256, 0], sizes = [256, 128], strides = [1, 1]} : vector<512x128xf32> to vector<256x128xf32>
    %46 = arith.truncf %45 : vector<256x128xf32> to vector<256x128xbf16>
    %47 = vector.extract_strided_slice %13 {offsets = [16, 0], sizes = [16, 128], strides = [1, 1]} : vector<32x128xf32> to vector<16x128xf32>
    %48 = arith.truncf %47 : vector<16x128xf32> to vector<16x128xbf16>
    %49 = vector.extract_strided_slice %14 {offsets = [16, 0], sizes = [16, 128], strides = [1, 1]} : vector<32x128xf32> to vector<16x128xf32>
    %50 = arith.truncf %49 : vector<16x128xf32> to vector<16x128xbf16>
    %51 = tpu.concatenate %48, %48, %48, %48 in 0 : vector<16x128xbf16>, vector<16x128xbf16>, vector<16x128xbf16>, vector<16x128xbf16> -> vector<64x128xbf16>
    %52 = arith.mulf %51, %15 : vector<64x128xbf16>
    %53 = tpu.concatenate %50, %50, %50, %50 in 0 : vector<16x128xbf16>, vector<16x128xbf16>, vector<16x128xbf16>, vector<16x128xbf16> -> vector<64x128xbf16>
    %54 = arith.mulf %53, %15 : vector<64x128xbf16>
    %cst_26 = arith.constant dense<0.000000e+00> : vector<256x64xf32>
    %55 = tpu.matmul %46, %52, %cst_26 {dimension_numbers = #tpu.dot_dimension_numbers<[1], [1], [0], [0], [0, 0, 1, 0], [], []>} : vector<256x128xbf16>, vector<64x128xbf16>, vector<256x64xf32> -> vector<256x64xf32>
    %56 = vector.extract_strided_slice %18 {offsets = [1, 0, 0], sizes = [1, 1, 64], strides = [1, 1, 1]} : vector<2x1x64xf32> to vector<1x1x64xf32>
    %57 = vector.shape_cast %56 : vector<1x1x64xf32> to vector<1x64xf32>
    %58 = vector.broadcast %57 : vector<1x64xf32> to vector<256x64xf32>
    %59 = arith.addf %55, %58 : vector<256x64xf32>
    %cst_27 = arith.constant dense<0xFF800000> : vector<256xf32>
    %60 = vector.multi_reduction <maximumf>, %59, %cst_27 [1] : vector<256x64xf32> to vector<256xf32>
    %61 = vector.shape_cast %60 : vector<256xf32> to vector<256x1xf32>
    %62 = vector.broadcast %61 : vector<256x1xf32> to vector<256x64xf32>
    %63 = arith.subf %59, %62 : vector<256x64xf32>
    %64 = math.exp %63 : vector<256x64xf32>
    %cst_28 = arith.constant dense<0.000000e+00> : vector<256x4xf32>
    %65 = tpu.matmul %64, %16, %cst_28 {dimension_numbers = #tpu.dot_dimension_numbers<[1], [0], [0], [1], [0, 0, 1, 1], [], []>} : vector<256x64xf32>, vector<64x4xf32>, vector<256x4xf32> -> vector<256x4xf32>
    %66 = tpu.reciprocal %65 {approx = true} : vector<256x4xf32> -> vector<256x4xf32>
    %cst_29 = arith.constant dense<0.000000e+00> : vector<256x128xf32>
    %67 = tpu.matmul %66, %17, %cst_29 {dimension_numbers = #tpu.dot_dimension_numbers<[1], [0], [0], [1], [0, 0, 1, 1], [], []>} : vector<256x4xf32>, vector<4x128xf32>, vector<256x128xf32> -> vector<256x128xf32>
    %68 = arith.truncf %64 : vector<256x64xf32> to vector<256x64xbf16>
    %cst_30 = arith.constant dense<0.000000e+00> : vector<256x128xf32>
    %69 = tpu.matmul %68, %54, %cst_30 {dimension_numbers = #tpu.dot_dimension_numbers<[1], [0], [0], [1], [0, 0, 1, 1], [], []>} : vector<256x64xbf16>, vector<64x128xbf16>, vector<256x128xf32> -> vector<256x128xf32>
    %70 = arith.mulf %69, %67 : vector<256x128xf32>
    %71 = tpu.concatenate %44, %70 in 0 : vector<256x128xf32>, vector<256x128xf32> -> vector<512x128xf32>
    %72 = arith.truncf %71 : vector<512x128xf32> to vector<512x128xbf16>
    %c0_31 = arith.constant 0 : index
    %c0_32 = arith.constant 0 : index
    %73 = vector.load %arg8[%c0_31, %c0_32] : memref<128x128xbf16, #tpu.memory_space<vmem>>, vector<128x128xbf16>
    %cst_33 = arith.constant dense<0.000000e+00> : vector<512x128xf32>
    %74 = tpu.matmul %72, %73, %cst_33 {dimension_numbers = #tpu.dot_dimension_numbers<[1], [0], [0], [1], [0, 0, 1, 1], [], []>} : vector<512x128xbf16>, vector<128x128xbf16>, vector<512x128xf32> -> vector<512x128xf32>
    %c0_34 = arith.constant 0 : index
    %c0_35 = arith.constant 0 : index
    %75 = vector.load %arg9[%c0_34, %c0_35] : memref<1x128xf32, #tpu.memory_space<vmem>>, vector<1x128xf32>
    %76 = vector.broadcast %75 : vector<1x128xf32> to vector<512x128xf32>
    %77 = arith.addf %74, %76 : vector<512x128xf32>
    %78 = arith.addf %77, %0 : vector<512x128xf32>
    %cst_36 = arith.constant dense<0.000000e+00> : vector<512xf32>
    %79 = vector.multi_reduction <add>, %78, %cst_36 [1] : vector<512x128xf32> to vector<512xf32>
    %80 = vector.shape_cast %79 : vector<512xf32> to vector<512x1xf32>
    %cst_37 = arith.constant 1.280000e+02 : f32
    %81 = vector.broadcast %cst_37 : f32 to vector<512x1xf32>
    %82 = arith.divf %80, %81 : vector<512x1xf32>
    %83 = vector.broadcast %82 : vector<512x1xf32> to vector<512x128xf32>
    %84 = arith.subf %78, %83 : vector<512x128xf32>
    %85 = arith.mulf %84, %84 : vector<512x128xf32>
    %cst_38 = arith.constant dense<0.000000e+00> : vector<512xf32>
    %86 = vector.multi_reduction <add>, %85, %cst_38 [1] : vector<512x128xf32> to vector<512xf32>
    %87 = vector.shape_cast %86 : vector<512xf32> to vector<512x1xf32>
    %cst_39 = arith.constant 1.280000e+02 : f32
    %88 = vector.broadcast %cst_39 : f32 to vector<512x1xf32>
    %89 = arith.divf %87, %88 : vector<512x1xf32>
    %90 = vector.broadcast %82 : vector<512x1xf32> to vector<512x128xf32>
    %91 = arith.subf %78, %90 : vector<512x128xf32>
    %cst_40 = arith.constant 9.99999996E-13 : f32
    %92 = vector.broadcast %cst_40 : f32 to vector<512x1xf32>
    %93 = arith.addf %89, %92 : vector<512x1xf32>
    %94 = math.rsqrt %93 : vector<512x1xf32>
    %95 = vector.broadcast %94 : vector<512x1xf32> to vector<512x128xf32>
    %96 = arith.mulf %91, %95 : vector<512x128xf32>
    %c0_41 = arith.constant 0 : index
    %c0_42 = arith.constant 0 : index
    %97 = vector.load %arg10[%c0_41, %c0_42] : memref<1x128xf32, #tpu.memory_space<vmem>>, vector<1x128xf32>
    %98 = vector.broadcast %97 : vector<1x128xf32> to vector<512x128xf32>
    %99 = arith.mulf %96, %98 : vector<512x128xf32>
    %c0_43 = arith.constant 0 : index
    %c0_44 = arith.constant 0 : index
    %100 = vector.load %arg11[%c0_43, %c0_44] : memref<1x128xf32, #tpu.memory_space<vmem>>, vector<1x128xf32>
    %101 = vector.broadcast %100 : vector<1x128xf32> to vector<512x128xf32>
    %102 = arith.addf %99, %101 : vector<512x128xf32>
    %c0_45 = arith.constant 0 : index
    %c0_46 = arith.constant 0 : index
    %103 = vector.load %arg15[%c0_45, %c0_46] : memref<512x128xf32, #tpu.memory_space<vmem>>, vector<512x128xf32>
    tpu.vector_store %arg15[%c0_45, %c0_46], %102 {strides = array<i32>} : memref<512x128xf32, #tpu.memory_space<vmem>>, vector<512x128xf32>,
    return
  }
  func.func @transform_0(%arg0: i32) -> (i32, i32) {
    %c0_i32 = arith.constant 0 : i32
    %c0_i32_0 = arith.constant 0 : i32
    return %arg0, %c0_i32 : i32, i32
  }
  func.func @transform_1(%arg0: i32) -> (i32, i32) {
    %c0_i32 = arith.constant 0 : i32
    %c0_i32_0 = arith.constant 0 : i32
    return %arg0, %c0_i32 : i32, i32
  }
  func.func @transform_2(%arg0: i32) -> (i32, i32, i32) {
    %c0_i32 = arith.constant 0 : i32
    %c0_i32_0 = arith.constant 0 : i32
    %c0_i32_1 = arith.constant 0 : i32
    return %arg0, %c0_i32, %c0_i32_0 : i32, i32, i32
  }
  func.func @transform_3(%arg0: i32) -> (i32, i32) {
    %c0_i32 = arith.constant 0 : i32
    %c0_i32_0 = arith.constant 0 : i32
    %c0_i32_1 = arith.constant 0 : i32
    return %c0_i32, %c0_i32_0 : i32, i32
  }
  func.func @transform_4(%arg0: i32) -> (i32, i32) {
    %c0_i32 = arith.constant 0 : i32
    %c0_i32_0 = arith.constant 0 : i32
    %c0_i32_1 = arith.constant 0 : i32
    return %c0_i32, %c0_i32_0 : i32, i32
  }
  func.func @transform_5(%arg0: i32) -> (i32, i32) {
    %c0_i32 = arith.constant 0 : i32
    %c0_i32_0 = arith.constant 0 : i32
    %c0_i32_1 = arith.constant 0 : i32
    return %c0_i32, %c0_i32_0 : i32, i32
  }
  func.func @transform_6(%arg0: i32) -> (i32, i32) {
    %c0_i32 = arith.constant 0 : i32
    %c0_i32_0 = arith.constant 0 : i32
    %c0_i32_1 = arith.constant 0 : i32
    return %c0_i32, %c0_i32_0 : i32, i32
  }
  func.func @transform_7(%arg0: i32) -> (i32, i32) {
    %c0_i32 = arith.constant 0 : i32
    %c0_i32_0 = arith.constant 0 : i32
    %c0_i32_1 = arith.constant 0 : i32
    return %c0_i32, %c0_i32_0 : i32, i32
  }
  func.func @transform_8(%arg0: i32) -> (i32, i32) {
    %c0_i32 = arith.constant 0 : i32
    %c0_i32_0 = arith.constant 0 : i32
    %c0_i32_1 = arith.constant 0 : i32
    return %c0_i32, %c0_i32_0 : i32, i32
  }
  func.func @transform_9(%arg0: i32) -> (i32, i32) {
    %c0_i32 = arith.constant 0 : i32
    %c0_i32_0 = arith.constant 0 : i32
    %c0_i32_1 = arith.constant 0 : i32
    return %c0_i32, %c0_i32_0 : i32, i32
  }
  func.func @transform_10(%arg0: i32) -> (i32, i32) {
    %c0_i32 = arith.constant 0 : i32
    %c0_i32_0 = arith.constant 0 : i32
    %c0_i32_1 = arith.constant 0 : i32
    return %c0_i32, %c0_i32_0 : i32, i32
  }
  func.func @transform_11(%arg0: i32) -> (i32, i32) {
    %c0_i32 = arith.constant 0 : i32
    %c0_i32_0 = arith.constant 0 : i32
    %c0_i32_1 = arith.constant 0 : i32
    return %c0_i32, %c0_i32_0 : i32, i32
  }
  func.func @transform_12(%arg0: i32) -> (i32, i32) {
    %c0_i32 = arith.constant 0 : i32
    %c0_i32_0 = arith.constant 0 : i32
    %c0_i32_1 = arith.constant 0 : i32
    return %c0_i32, %c0_i32_0 : i32, i32
  }
  func.func @transform_13(%arg0: i32) -> (i32, i32) {
    %c0_i32 = arith.constant 0 : i32
    %c0_i32_0 = arith.constant 0 : i32
    %c0_i32_1 = arith.constant 0 : i32
    return %c0_i32, %c0_i32_0 : i32, i32
  }
  func.func @transform_14(%arg0: i32) -> (i32, i32) {
    %c0_i32 = arith.constant 0 : i32
    %c0_i32_0 = arith.constant 0 : i32
    return %arg0, %c0_i32 : i32, i32
  }
}

</mosaic_0001>

<llo_original>
// kernel: tpu_custom_call.1
$region0: #{tpu_custom_call.1}
  #allocation0 [shape = 'u32[]', space=smem, size = 0x4, offset = 0x4, fixed_abs, tag = 'smem constant byte address 0x4 - core index']
  #allocation1 [shape = 'u32[72,128]{1,0:T(1,128)}', space=vmem, size = 0x9000, scoped, tag = 'internal scratch']
  %s0 = inlined_call_operand.hbm [shape: f32[1024,128], index: 0, kind: input, shape index: {}]
  %s1 = inlined_call_operand.hbm [shape: bf16[64,64], index: 1, kind: input, shape index: {}]
  %s2 = inlined_call_operand.vmem [shape: f32[4,1,64], index: 2, kind: input, shape index: {}]
  %s3 = inlined_call_operand.vmem [shape: bf16[128,128], index: 3, kind: input, shape index: {}]
  %s4 = inlined_call_operand.hbm [shape: f32[1,128], index: 4, kind: input, shape index: {}]
  %s5 = inlined_call_operand.hbm [shape: bf16[64,256], index: 5, kind: input, shape index: {}]
  %s6 = inlined_call_operand.hbm [shape: f32[1,256], index: 6, kind: input, shape index: {}]
  %s7 = inlined_call_operand.hbm [shape: bf16[128,128], index: 7, kind: input, shape index: {}]
  %s8 = inlined_call_operand.hbm [shape: f32[1,128], index: 8, kind: input, shape index: {}]
  %s9 = inlined_call_operand.hbm [shape: f32[1,128], index: 9, kind: input, shape index: {}]
  %s10 = inlined_call_operand.vmem [shape: f32[1,128], index: 10, kind: input, shape index: {}]
  %s11 = inlined_call_operand.hbm [shape: bf16[64,128], index: 11, kind: input, shape index: {}]
  %s12 = inlined_call_operand.vmem [shape: f32[64,4], index: 12, kind: input, shape index: {}]
  %s13 = inlined_call_operand.vmem [shape: f32[4,128], index: 13, kind: input, shape index: {}]
  %s14 = inlined_call_operand.hbm [shape: f32[1024,128], index: 14, kind: output, shape index: {}]
  %s15 = sld [smem:[#allocation0]]
  $region125: #{tpu_custom_call.1} parent=0
    _
  %s17 = ssub.s32 1, %s15
  %s18 = scalar_select 0, %s17, %s15
  $region1: #{tpu_custom_call.1} parent=0
    #allocation2 [shape = 'u8[524288]{0}', space=vmem, size = 0x80000, scoped, tag = 'input window, operand 0']
    #allocation3 [shape = 's32[2]{0}', space=sflag, size = 0x8, scoped, tag = 'scoped memory for tpu_custom_call.1']
    #allocation4 [shape = 's32[2]{0}', space=sflag, size = 0x8, scoped, tag = 'scoped memory for tpu_custom_call.1']
    #allocation5 [shape = 'u8[16384]{0}', space=vmem, size = 0x4000, scoped, tag = 'input window, operand 1']
    #allocation6 [shape = 's32[2]{0}', space=sflag, size = 0x8, scoped, tag = 'scoped memory for tpu_custom_call.1']
    #allocation7 [shape = 'u8[512]{0}', space=vmem, size = 0x400, scoped, tag = 'input window, operand 4, single buffered']
    #allocation8 [shape = 'u8[32768]{0}', space=vmem, size = 0x8000, scoped, tag = 'input window, operand 5, single buffered']
    #allocation9 [shape = 's32[1]{0}', space=sflag, size = 0x4, scoped, tag = 'scoped memory for tpu_custom_call.1']
    #allocation10 [shape = 'u8[1024]{0}', space=vmem, size = 0x400, scoped, tag = 'input window, operand 6, single buffered']
    #allocation11 [shape = 'u8[32768]{0}', space=vmem, size = 0x8000, scoped, tag = 'input window, operand 7, single buffered']
    #allocation12 [shape = 's32[1]{0}', space=sflag, size = 0x4, scoped, tag = 'scoped memory for tpu_custom_call.1']
    #allocation13 [shape = 'u8[512]{0}', space=vmem, size = 0x400, scoped, tag = 'input window, operand 8, single buffered']
    #allocation14 [shape = 'u8[512]{0}', space=vmem, size = 0x400, scoped, tag = 'input window, operand 9, single buffered']
    #allocation15 [shape = 's32[1]{0}', space=sflag, size = 0x4, scoped, tag = 'scoped memory for tpu_custom_call.1']
    #allocation16 [shape = 'u8[16384]{0}', space=vmem, size = 0x4000, scoped, tag = 'input window, operand 11, single buffered']
    #allocation17 [shape = 'u8[524288]{0}', space=vmem, size = 0x80000, scoped, tag = 'output window, operand 0']
    %19 = vsyncpa [#allocation3], 0
    %s20 = scalar_lea.sflag [#allocation3], 1
    %21 = vsyncpa %s20, 0
    %22 = vsyncpa [#allocation6], 0
    %s23 = scalar_lea.sflag [#allocation6], 1
    %24 = vsyncpa %s23, 0
    %25 = vsyncpa [#allocation9], 0
    %26 = vsyncpa [#allocation12], 0
    %27 = vsyncpa [#allocation15], 0
    %28 = vsyncpa [#allocation4], 0
    %s29 = scalar_lea.sflag [#allocation4], 1
    %30 = vsyncpa %s29, 0
    loop: start=0, step=1, limit=4
    $region2: #{tpu_custom_call.1} parent=1 // loop_pre_header
      _
    $region3: #{tpu_custom_call.1} parent=1 // loop_header
      %s32 = sphi 0, %s36
      %p33 = scmp.ge.s32.totalorder %s32, 4
      %s42 = sphi 0, %s44
      %s45 = sphi 0, %s42
      %s46 = sphi 0, %s45
      %s62 = sphi 0, %s46
      %s68 = sphi 0, %s70
      %s71 = sphi 0, %s68
      %s72 = sphi 0, %s71
      %s88 = sphi 0, %s72
      %s94 = sphi 0, %s96
      %s97 = sphi 0, %s94
      %s98 = sphi 0, %s97
      %s114 = sphi 0, %s98
      %s118 = sphi 0, %s118
      %s120 = sphi 0, %s118
      %s121 = sphi 0, %s120
      %s135 = sphi 0, %s121
      %s139 = sphi 0, %s139
      %s141 = sphi 0, %s139
      %s142 = sphi 0, %s141
      %s156 = sphi 0, %s142
      %s160 = sphi 0, %s160
      %s162 = sphi 0, %s160
      %s163 = sphi 0, %s162
      %s177 = sphi 0, %s163
      %s181 = sphi 0, %s181
      %s183 = sphi 0, %s181
      %s184 = sphi 0, %s183
      %s198 = sphi 0, %s184
      %s202 = sphi 0, %s202
      %s204 = sphi 0, %s202
      %s205 = sphi 0, %s204
      %s219 = sphi 0, %s205
      %s223 = sphi 0, %s223
      %s225 = sphi 0, %s223
      %s226 = sphi 0, %s225
      %s240 = sphi 0, %s226
      %s244 = sphi 0, %s244
      %s246 = sphi 0, %s244
      %s247 = sphi 0, %s246
      %s261 = sphi 0, %s247
      %s265 = sphi 0, %s265
      %s267 = sphi 0, %s265
      %s268 = sphi 0, %s267
      %s282 = sphi 0, %s268
      %s286 = sphi 0, %s286
      %s288 = sphi 0, %s286
      %s289 = sphi 0, %s288
      %s303 = sphi 0, %s289
      %s307 = sphi 0, %s307
      %s309 = sphi 0, %s307
      %s310 = sphi 0, %s309
      %s324 = sphi 0, %s310
      %s328 = sphi 0, %s328
      %s330 = sphi 0, %s328
      %s331 = sphi 0, %s330
      %s345 = sphi 0, %s331
      %s351 = sphi 0, %s353
      %s354 = sphi 0, %s351
      %s355 = sphi 0, %s354
      %s371 = sphi 0, %s355
    $region4: #{tpu_custom_call.1} parent=1 // loop_header_branch
      %35 = sbr.rel (%p33) target = $region8
    $region5: #{tpu_custom_call.1} parent=1 // loop_body
      %s37 = ssub.s32 %s32, 1
      %s38 = ssub.s32 %s32, 2
      %s39 = sadd.s32 %s32, 1
      %s40 = ssub.s32 %s32, %s39
      %p41 = scmp.eq.s32.totalorder %s40, 0
      %s43 = sadd.s32 %s42, 1
      %s44 = scalar_select %p41, %s42, %s43
      %p47 = pneg %p41
      %p48 = scmp.eq.s32.totalorder %s32, 1
      %p49 = por %p47, %p48
      %p50 = scmp.ne.s32.totalorder %s42, %s45
      %p51 = scmp.eq.s32.totalorder %s32, 0
      %p52 = por %p50, %p51
      %p53 = scmp.ne.s32.totalorder %s42, %s45
      %p54 = scmp.eq.s32.totalorder %s37, 1
      %p55 = por %p53, %p54
      %p56 = scmp.ne.s32.totalorder %s45, %s46
      %p57 = scmp.eq.s32.totalorder %s37, 0
      %p58 = por %p56, %p57
      %p59 = scmp.ne.s32.totalorder %s45, %s46
      %p60 = scmp.eq.s32.totalorder %s38, 1
      %p61 = por %p59, %p60
      %p63 = scmp.ne.s32.totalorder %s46, %s62
      %p64 = scmp.eq.s32.totalorder %s38, 0
      %p65 = por %p63, %p64
      %s66 = ssub.s32 %s32, %s39
      %p67 = scmp.eq.s32.totalorder %s66, 0
      %s69 = sadd.s32 %s68, 1
      %s70 = scalar_select %p67, %s68, %s69
      %p73 = pneg %p67
      %p74 = scmp.eq.s32.totalorder %s32, 1
      %p75 = por %p73, %p74
      %p76 = scmp.ne.s32.totalorder %s68, %s71
      %p77 = scmp.eq.s32.totalorder %s32, 0
      %p78 = por %p76, %p77
      %p79 = scmp.ne.s32.totalorder %s68, %s71
      %p80 = scmp.eq.s32.totalorder %s37, 1
      %p81 = por %p79, %p80
      %p82 = scmp.ne.s32.totalorder %s71, %s72
      %p83 = scmp.eq.s32.totalorder %s37, 0
      %p84 = por %p82, %p83
      %p85 = scmp.ne.s32.totalorder %s71, %s72
      %p86 = scmp.eq.s32.totalorder %s38, 1
      %p87 = por %p85, %p86
      %p89 = scmp.ne.s32.totalorder %s72, %s88
      %p90 = scmp.eq.s32.totalorder %s38, 0
      %p91 = por %p89, %p90
      %s92 = ssub.s32 %s32, %s39
      %p93 = scmp.eq.s32.totalorder %s92, 0
      %s95 = sadd.s32 %s94, 1
      %s96 = scalar_select %p93, %s94, %s95
      %p99 = pneg %p93
      %p100 = scmp.eq.s32.totalorder %s32, 1
      %p101 = por %p99, %p100
      %p102 = scmp.ne.s32.totalorder %s94, %s97
      %p103 = scmp.eq.s32.totalorder %s32, 0
      %p104 = por %p102, %p103
      %p105 = scmp.ne.s32.totalorder %s94, %s97
      %p106 = scmp.eq.s32.totalorder %s37, 1
      %p107 = por %p105, %p106
      %p108 = scmp.ne.s32.totalorder %s97, %s98
      %p109 = scmp.eq.s32.totalorder %s37, 0
      %p110 = por %p108, %p109
      %p111 = scmp.ne.s32.totalorder %s97, %s98
      %p112 = scmp.eq.s32.totalorder %s38, 1
      %p113 = por %p111, %p112
      %p115 = scmp.ne.s32.totalorder %s98, %s114
      %p116 = scmp.eq.s32.totalorder %s38, 0
      %p117 = por %p115, %p116
      %s119 = sadd.s32 %s118, 1
      %p122 = scmp.eq.s32.totalorder %s32, 1
      %p123 = scmp.ne.s32.totalorder %s118, %s120
      %p124 = scmp.eq.s32.totalorder %s32, 0
      %p125 = por %p123, %p124
      %p126 = scmp.ne.s32.totalorder %s118, %s120
      %p127 = scmp.eq.s32.totalorder %s37, 1
      %p128 = por %p126, %p127
      %p129 = scmp.ne.s32.totalorder %s120, %s121
      %p130 = scmp.eq.s32.totalorder %s37, 0
      %p131 = por %p129, %p130
      %p132 = scmp.ne.s32.totalorder %s120, %s121
      %p133 = scmp.eq.s32.totalorder %s38, 1
      %p134 = por %p132, %p133
      %p136 = scmp.ne.s32.totalorder %s121, %s135
      %p137 = scmp.eq.s32.totalorder %s38, 0
      %p138 = por %p136, %p137
      %s140 = sadd.s32 %s139, 1
      %p143 = scmp.eq.s32.totalorder %s32, 1
      %p144 = scmp.ne.s32.totalorder %s139, %s141
      %p145 = scmp.eq.s32.totalorder %s32, 0
      %p146 = por %p144, %p145
      %p147 = scmp.ne.s32.totalorder %s139, %s141
      %p148 = scmp.eq.s32.totalorder %s37, 1
      %p149 = por %p147, %p148
      %p150 = scmp.ne.s32.totalorder %s141, %s142
      %p151 = scmp.eq.s32.totalorder %s37, 0
      %p152 = por %p150, %p151
      %p153 = scmp.ne.s32.totalorder %s141, %s142
      %p154 = scmp.eq.s32.totalorder %s38, 1
      %p155 = por %p153, %p154
      %p157 = scmp.ne.s32.totalorder %s142, %s156
      %p158 = scmp.eq.s32.totalorder %s38, 0
      %p159 = por %p157, %p158
      %s161 = sadd.s32 %s160, 1
      %p164 = scmp.eq.s32.totalorder %s32, 1
      %p165 = scmp.ne.s32.totalorder %s160, %s162
      %p166 = scmp.eq.s32.totalorder %s32, 0
      %p167 = por %p165, %p166
      %p168 = scmp.ne.s32.totalorder %s160, %s162
      %p169 = scmp.eq.s32.totalorder %s37, 1
      %p170 = por %p168, %p169
      %p171 = scmp.ne.s32.totalorder %s162, %s163
      %p172 = scmp.eq.s32.totalorder %s37, 0
      %p173 = por %p171, %p172
      %p174 = scmp.ne.s32.totalorder %s162, %s163
      %p175 = scmp.eq.s32.totalorder %s38, 1
      %p176 = por %p174, %p175
      %p178 = scmp.ne.s32.totalorder %s163, %s177
      %p179 = scmp.eq.s32.totalorder %s38, 0
      %p180 = por %p178, %p179
      %s182 = sadd.s32 %s181, 1
      %p185 = scmp.eq.s32.totalorder %s32, 1
      %p186 = scmp.ne.s32.totalorder %s181, %s183
      %p187 = scmp.eq.s32.totalorder %s32, 0
      %p188 = por %p186, %p187
      %p189 = scmp.ne.s32.totalorder %s181, %s183
      %p190 = scmp.eq.s32.totalorder %s37, 1
      %p191 = por %p189, %p190
      %p192 = scmp.ne.s32.totalorder %s183, %s184
      %p193 = scmp.eq.s32.totalorder %s37, 0
      %p194 = por %p192, %p193
      %p195 = scmp.ne.s32.totalorder %s183, %s184
      %p196 = scmp.eq.s32.totalorder %s38, 1
      %p197 = por %p195, %p196
      %p199 = scmp.ne.s32.totalorder %s184, %s198
      %p200 = scmp.eq.s32.totalorder %s38, 0
      %p201 = por %p199, %p200
      %s203 = sadd.s32 %s202, 1
      %p206 = scmp.eq.s32.totalorder %s32, 1
      %p207 = scmp.ne.s32.totalorder %s202, %s204
      %p208 = scmp.eq.s32.totalorder %s32, 0
      %p209 = por %p207, %p208
      %p210 = scmp.ne.s32.totalorder %s202, %s204
      %p211 = scmp.eq.s32.totalorder %s37, 1
      %p212 = por %p210, %p211
      %p213 = scmp.ne.s32.totalorder %s204, %s205
      %p214 = scmp.eq.s32.totalorder %s37, 0
      %p215 = por %p213, %p214
      %p216 = scmp.ne.s32.totalorder %s204, %s205
      %p217 = scmp.eq.s32.totalorder %s38, 1
      %p218 = por %p216, %p217
      %p220 = scmp.ne.s32.totalorder %s205, %s219
      %p221 = scmp.eq.s32.totalorder %s38, 0
      %p222 = por %p220, %p221
      %s224 = sadd.s32 %s223, 1
      %p227 = scmp.eq.s32.totalorder %s32, 1
      %p228 = scmp.ne.s32.totalorder %s223, %s225
      %p229 = scmp.eq.s32.totalorder %s32, 0
      %p230 = por %p228, %p229
      %p231 = scmp.ne.s32.totalorder %s223, %s225
      %p232 = scmp.eq.s32.totalorder %s37, 1
      %p233 = por %p231, %p232
      %p234 = scmp.ne.s32.totalorder %s225, %s226
      %p235 = scmp.eq.s32.totalorder %s37, 0
      %p236 = por %p234, %p235
      %p237 = scmp.ne.s32.totalorder %s225, %s226
      %p238 = scmp.eq.s32.totalorder %s38, 1
      %p239 = por %p237, %p238
      %p241 = scmp.ne.s32.totalorder %s226, %s240
      %p242 = scmp.eq.s32.totalorder %s38, 0
      %p243 = por %p241, %p242
      %s245 = sadd.s32 %s244, 1
      %p248 = scmp.eq.s32.totalorder %s32, 1
      %p249 = scmp.ne.s32.totalorder %s244, %s246
      %p250 = scmp.eq.s32.totalorder %s32, 0
      %p251 = por %p249, %p250
      %p252 = scmp.ne.s32.totalorder %s244, %s246
      %p253 = scmp.eq.s32.totalorder %s37, 1
      %p254 = por %p252, %p253
      %p255 = scmp.ne.s32.totalorder %s246, %s247
      %p256 = scmp.eq.s32.totalorder %s37, 0
      %p257 = por %p255, %p256
      %p258 = scmp.ne.s32.totalorder %s246, %s247
      %p259 = scmp.eq.s32.totalorder %s38, 1
      %p260 = por %p258, %p259
      %p262 = scmp.ne.s32.totalorder %s247, %s261
      %p263 = scmp.eq.s32.totalorder %s38, 0
      %p264 = por %p262, %p263
      %s266 = sadd.s32 %s265, 1
      %p269 = scmp.eq.s32.totalorder %s32, 1
      %p270 = scmp.ne.s32.totalorder %s265, %s267
      %p271 = scmp.eq.s32.totalorder %s32, 0
      %p272 = por %p270, %p271
      %p273 = scmp.ne.s32.totalorder %s265, %s267
      %p274 = scmp.eq.s32.totalorder %s37, 1
      %p275 = por %p273, %p274
      %p276 = scmp.ne.s32.totalorder %s267, %s268
      %p277 = scmp.eq.s32.totalorder %s37, 0
      %p278 = por %p276, %p277
      %p279 = scmp.ne.s32.totalorder %s267, %s268
      %p280 = scmp.eq.s32.totalorder %s38, 1
      %p281 = por %p279, %p280
      %p283 = scmp.ne.s32.totalorder %s268, %s282
      %p284 = scmp.eq.s32.totalorder %s38, 0
      %p285 = por %p283, %p284
      %s287 = sadd.s32 %s286, 1
      %p290 = scmp.eq.s32.totalorder %s32, 1
      %p291 = scmp.ne.s32.totalorder %s286, %s288
      %p292 = scmp.eq.s32.totalorder %s32, 0
      %p293 = por %p291, %p292
      %p294 = scmp.ne.s32.totalorder %s286, %s288
      %p295 = scmp.eq.s32.totalorder %s37, 1
      %p296 = por %p294, %p295
      %p297 = scmp.ne.s32.totalorder %s288, %s289
      %p298 = scmp.eq.s32.totalorder %s37, 0
      %p299 = por %p297, %p298
      %p300 = scmp.ne.s32.totalorder %s288, %s289
      %p301 = scmp.eq.s32.totalorder %s38, 1
      %p302 = por %p300, %p301
      %p304 = scmp.ne.s32.totalorder %s289, %s303
      %p305 = scmp.eq.s32.totalorder %s38, 0
      %p306 = por %p304, %p305
      %s308 = sadd.s32 %s307, 1
      %p311 = scmp.eq.s32.totalorder %s32, 1
      %p312 = scmp.ne.s32.totalorder %s307, %s309
      %p313 = scmp.eq.s32.totalorder %s32, 0
      %p314 = por %p312, %p313
      %p315 = scmp.ne.s32.totalorder %s307, %s309
      %p316 = scmp.eq.s32.totalorder %s37, 1
      %p317 = por %p315, %p316
      %p318 = scmp.ne.s32.totalorder %s309, %s310
      %p319 = scmp.eq.s32.totalorder %s37, 0
      %p320 = por %p318, %p319
      %p321 = scmp.ne.s32.totalorder %s309, %s310
      %p322 = scmp.eq.s32.totalorder %s38, 1
      %p323 = por %p321, %p322
      %p325 = scmp.ne.s32.totalorder %s310, %s324
      %p326 = scmp.eq.s32.totalorder %s38, 0
      %p327 = por %p325, %p326
      %s329 = sadd.s32 %s328, 1
      %p332 = scmp.eq.s32.totalorder %s32, 1
      %p333 = scmp.ne.s32.totalorder %s328, %s330
      %p334 = scmp.eq.s32.totalorder %s32, 0
      %p335 = por %p333, %p334
      %p336 = scmp.ne.s32.totalorder %s328, %s330
      %p337 = scmp.eq.s32.totalorder %s37, 1
      %p338 = por %p336, %p337
      %p339 = scmp.ne.s32.totalorder %s330, %s331
      %p340 = scmp.eq.s32.totalorder %s37, 0
      %p341 = por %p339, %p340
      %p342 = scmp.ne.s32.totalorder %s330, %s331
      %p343 = scmp.eq.s32.totalorder %s38, 1
      %p344 = por %p342, %p343
      %p346 = scmp.ne.s32.totalorder %s331, %s345
      %p347 = scmp.eq.s32.totalorder %s38, 0
      %p348 = por %p346, %p347
      %s349 = ssub.s32 %s32, %s39
      %p350 = scmp.eq.s32.totalorder %s349, 0
      %s352 = sadd.s32 %s351, 1
      %s353 = scalar_select %p350, %s351, %s352
      %p356 = pneg %p350
      %p357 = scmp.eq.s32.totalorder %s32, 1
      %p358 = por %p356, %p357
      %p359 = scmp.ne.s32.totalorder %s351, %s354
      %p360 = scmp.eq.s32.totalorder %s32, 0
      %p361 = por %p359, %p360
      %p362 = scmp.ne.s32.totalorder %s351, %s354
      %p363 = scmp.eq.s32.totalorder %s37, 1
      %p364 = por %p362, %p363
      %p365 = scmp.ne.s32.totalorder %s354, %s355
      %p366 = scmp.eq.s32.totalorder %s37, 0
      %p367 = por %p365, %p366
      %p368 = scmp.ne.s32.totalorder %s354, %s355
      %p369 = scmp.eq.s32.totalorder %s38, 1
      %p370 = por %p368, %p369
      %p372 = scmp.ne.s32.totalorder %s355, %s371
      %p373 = scmp.eq.s32.totalorder %s38, 0
      %p374 = por %p372, %p373
      %p375 = scmp.le.s32.totalorder 1, %s32
      %p376 = scmp.lt.s32.totalorder %s32, 3
      %p377 = pnand %p375, %p376
      %p378 = pneg %p377
      // Predicated region
      $region9: #{tpu_custom_call.1} parent=5 // pred_check
        _
      $region10: #{tpu_custom_call.1} parent=5 // pred_check_branch
        %380 = sbr.rel (%p377) target = $region12
      $region11: #{tpu_custom_call.1} parent=5 // pred_region
        %s381 = ssub.s32 %s32, 1
        // Predicated region
        $region13: #{tpu_custom_call.1} parent=11 // pred_check
          %p382 = pneg %p131
        $region14: #{tpu_custom_call.1} parent=11 // pred_check_branch
          %384 = sbr.rel (%p382) target = $region16
        $region15: #{tpu_custom_call.1} parent=11 // pred_region
          _
        $region16: #{tpu_custom_call.1} parent=11 // pred_fallthru
          _
        // Predicated region
        $region17: #{tpu_custom_call.1} parent=11 // pred_check
          %p385 = pneg %p152
        $region18: #{tpu_custom_call.1} parent=11 // pred_check_branch
          %387 = sbr.rel (%p385) target = $region20
        $region19: #{tpu_custom_call.1} parent=11 // pred_region
          %389 = vsyncadd [#allocation6], 0
          %s391 = sshll.u32 %s4, 4
          %s392 = int_to_ptr.hbm [resolvable:$true] %s391
          %s393 = sshll.u32 [#allocation7], 4
          %s394 = int_to_ptr.vmem [resolvable:$true] %s393
          %396 = dma.hbm_to_vmem [thread:$0]  %s392, 16, %s394, [#allocation6]
        $region20: #{tpu_custom_call.1} parent=11 // pred_fallthru
          _
        // Predicated region
        $region21: #{tpu_custom_call.1} parent=11 // pred_check
          %p397 = pneg %p173
        $region22: #{tpu_custom_call.1} parent=11 // pred_check_branch
          %399 = sbr.rel (%p397) target = $region24
        $region23: #{tpu_custom_call.1} parent=11 // pred_region
          %401 = vsyncadd [#allocation9], 0
          %s402 = sshll.u32 %s5, 4
          %s403 = int_to_ptr.hbm [resolvable:$true] %s402
          %s404 = sshll.u32 [#allocation8], 4
          %s405 = int_to_ptr.vmem [resolvable:$true] %s404
          %410 = dma.hbm_to_vmem [thread:$0]  %s403, 1024, %s405, [#allocation9], 128, 128, 8
        $region24: #{tpu_custom_call.1} parent=11 // pred_fallthru
          _
        // Predicated region
        $region25: #{tpu_custom_call.1} parent=11 // pred_check
          %p411 = pneg %p194
        $region26: #{tpu_custom_call.1} parent=11 // pred_check_branch
          %413 = sbr.rel (%p411) target = $region28
        $region27: #{tpu_custom_call.1} parent=11 // pred_region
          %415 = vsyncadd [#allocation9], 0
          %s417 = sshll.u32 %s6, 4
          %s418 = int_to_ptr.hbm [resolvable:$true] %s417
          %s419 = sshll.u32 [#allocation10], 4
          %s420 = int_to_ptr.vmem [resolvable:$true] %s419
          %422 = dma.hbm_to_vmem [thread:$0]  %s418, 32, %s420, [#allocation9]
        $region28: #{tpu_custom_call.1} parent=11 // pred_fallthru
          _
        // Predicated region
        $region29: #{tpu_custom_call.1} parent=11 // pred_check
          %p423 = pneg %p215
        $region30: #{tpu_custom_call.1} parent=11 // pred_check_branch
          %425 = sbr.rel (%p423) target = $region32
        $region31: #{tpu_custom_call.1} parent=11 // pred_region
          %427 = vsyncadd [#allocation12], 0
          %s428 = sshll.u32 %s7, 4
          %s429 = int_to_ptr.hbm [resolvable:$true] %s428
          %s430 = sshll.u32 [#allocation11], 4
          %s431 = int_to_ptr.vmem [resolvable:$true] %s430
          %436 = dma.hbm_to_vmem [thread:$0]  %s429, 1024, %s431, [#allocation12], 64, 64, 4
        $region32: #{tpu_custom_call.1} parent=11 // pred_fallthru
          _
        // Predicated region
        $region33: #{tpu_custom_call.1} parent=11 // pred_check
          %p437 = pneg %p236
        $region34: #{tpu_custom_call.1} parent=11 // pred_check_branch
          %439 = sbr.rel (%p437) target = $region36
        $region35: #{tpu_custom_call.1} parent=11 // pred_region
          %441 = vsyncadd [#allocation12], 0
          %s443 = sshll.u32 %s8, 4
          %s444 = int_to_ptr.hbm [resolvable:$true] %s443
          %s445 = sshll.u32 [#allocation13], 4
          %s446 = int_to_ptr.vmem [resolvable:$true] %s445
          %448 = dma.hbm_to_vmem [thread:$0]  %s444, 16, %s446, [#allocation12]
        $region36: #{tpu_custom_call.1} parent=11 // pred_fallthru
          _
        // Predicated region
        $region37: #{tpu_custom_call.1} parent=11 // pred_check
          %p449 = pneg %p257
        $region38: #{tpu_custom_call.1} parent=11 // pred_check_branch
          %451 = sbr.rel (%p449) target = $region40
        $region39: #{tpu_custom_call.1} parent=11 // pred_region
          %453 = vsyncadd [#allocation15], 0
          %s455 = sshll.u32 %s9, 4
          %s456 = int_to_ptr.hbm [resolvable:$true] %s455
          %s457 = sshll.u32 [#allocation14], 4
          %s458 = int_to_ptr.vmem [resolvable:$true] %s457
          %460 = dma.hbm_to_vmem [thread:$0]  %s456, 16, %s458, [#allocation15]
        $region40: #{tpu_custom_call.1} parent=11 // pred_fallthru
          _
        // Predicated region
        $region41: #{tpu_custom_call.1} parent=11 // pred_check
          %p461 = pneg %p278
        $region42: #{tpu_custom_call.1} parent=11 // pred_check_branch
          %463 = sbr.rel (%p461) target = $region44
        $region43: #{tpu_custom_call.1} parent=11 // pred_region
          _
        $region44: #{tpu_custom_call.1} parent=11 // pred_fallthru
          _
        // Predicated region
        $region45: #{tpu_custom_call.1} parent=11 // pred_check
          %p464 = pneg %p299
        $region46: #{tpu_custom_call.1} parent=11 // pred_check_branch
          %466 = sbr.rel (%p464) target = $region48
        $region47: #{tpu_custom_call.1} parent=11 // pred_region
          %468 = vsyncadd [#allocation15], 0
          %s469 = sshll.u32 %s11, 4
          %s470 = int_to_ptr.hbm [resolvable:$true] %s469
          %s471 = sshll.u32 [#allocation16], 4
          %s472 = int_to_ptr.vmem [resolvable:$true] %s471
          %477 = dma.hbm_to_vmem [thread:$0]  %s470, 512, %s472, [#allocation15], 64, 64, 4
        $region48: #{tpu_custom_call.1} parent=11 // pred_fallthru
          _
        // Predicated region
        $region49: #{tpu_custom_call.1} parent=11 // pred_check
          %p478 = pneg %p320
        $region50: #{tpu_custom_call.1} parent=11 // pred_check_branch
          %480 = sbr.rel (%p478) target = $region52
        $region51: #{tpu_custom_call.1} parent=11 // pred_region
          _
        $region52: #{tpu_custom_call.1} parent=11 // pred_fallthru
          _
        // Predicated region
        $region53: #{tpu_custom_call.1} parent=11 // pred_check
          %p481 = pneg %p341
        $region54: #{tpu_custom_call.1} parent=11 // pred_check_branch
          %483 = sbr.rel (%p481) target = $region56
        $region55: #{tpu_custom_call.1} parent=11 // pred_region
          _
        $region56: #{tpu_custom_call.1} parent=11 // pred_fallthru
          _
      $region12: #{tpu_custom_call.1} parent=5 // pred_fallthru
        _
      %p484 = scmp.lt.s32.totalorder %s32, 2
      // Predicated region
      $region57: #{tpu_custom_call.1} parent=5 // pred_check
        %p485 = pneg %p484
      $region58: #{tpu_custom_call.1} parent=5 // pred_check_branch
        %487 = sbr.rel (%p485) target = $region60
      $region59: #{tpu_custom_call.1} parent=5 // pred_region
        // Predicated region
        $region61: #{tpu_custom_call.1} parent=59 // pred_check
          %p488 = pneg %p52
        $region62: #{tpu_custom_call.1} parent=59 // pred_check_branch
          %490 = sbr.rel (%p488) target = $region64
        $region63: #{tpu_custom_call.1} parent=59 // pred_region
          %s491 = sand.u32 %s42, 1
          %s492 = scalar_lea.sflag [#allocation3], %s491
          %s493 = sand.u32 %s42, 1
          %s494 = smul.addr %s493, 512
          %s495 = scalar_lea.vmem [#allocation2], %s494
          %s496 = smul.u32 64, %s32
          %498 = vsyncadd %s492, 0
          %s499 = smul.addr %s496, 8
          %s500 = scalar_lea.hbm %s0, %s499
          %s501 = sshll.u32 %s500, 4
          %s502 = int_to_ptr.hbm [resolvable:$true] %s501
          %s503 = sshll.u32 %s495, 4
          %s504 = int_to_ptr.vmem [resolvable:$true] %s503
          %509 = dma.hbm_to_vmem [thread:$0]  %s502, 8192, %s504, %s492, 128, 128, 8
        $region64: #{tpu_custom_call.1} parent=59 // pred_fallthru
          _
        // Predicated region
        $region65: #{tpu_custom_call.1} parent=59 // pred_check
          %p510 = pneg %p78
        $region66: #{tpu_custom_call.1} parent=59 // pred_check_branch
          %512 = sbr.rel (%p510) target = $region68
        $region67: #{tpu_custom_call.1} parent=59 // pred_region
          %s513 = sand.u32 %s32, 1
          %s514 = scalar_lea.sflag [#allocation6], %s513
          %s515 = sand.u32 %s68, 1
          %s516 = smul.addr %s515, 16
          %s517 = scalar_lea.vmem [#allocation5], %s516
          %s518 = smul.u32 4, %s32
          %520 = vsyncadd %s514, 0
          %s521 = smul.addr %s518, 4
          %s522 = scalar_lea.hbm %s1, %s521
          %s523 = sshll.u32 %s522, 4
          %s524 = int_to_ptr.hbm [resolvable:$true] %s523
          %s525 = sshll.u32 %s517, 4
          %s526 = int_to_ptr.vmem [resolvable:$true] %s525
          %531 = dma.hbm_to_vmem [thread:$0]  %s524, 256, %s526, %s514, 64, 64, 4
        $region68: #{tpu_custom_call.1} parent=59 // pred_fallthru
          _
        // Predicated region
        $region69: #{tpu_custom_call.1} parent=59 // pred_check
          %p532 = pneg %p104
        $region70: #{tpu_custom_call.1} parent=59 // pred_check_branch
          %534 = sbr.rel (%p532) target = $region72
        $region71: #{tpu_custom_call.1} parent=59 // pred_region
          %s535 = smul.u32 2, %s32
          %p536 = scmp.lt.s32.totalorder %s535, 3
          %s537 = scalar_select %p536, %s535, 3
          %s538 = scalar_lea.vmem %s2, %s537
          %s539 = smul.u32 2, %s32
        $region72: #{tpu_custom_call.1} parent=59 // pred_fallthru
          _
      $region60: #{tpu_custom_call.1} parent=5 // pred_fallthru
        _
      %p540 = scmp.le.s32.totalorder 1, %s32
      %p541 = scmp.lt.s32.totalorder %s32, 3
      %p542 = pnand %p540, %p541
      %p543 = pneg %p542
      // Predicated region
      $region73: #{tpu_custom_call.1} parent=5 // pred_check
        _
      $region74: #{tpu_custom_call.1} parent=5 // pred_check_branch
        %545 = sbr.rel (%p542) target = $region76
      $region75: #{tpu_custom_call.1} parent=5 // pred_region
        %s546 = ssub.s32 %s32, 1
        %s547 = sand.u32 %s45, 1
        %s548 = scalar_lea.sflag [#allocation3], %s547
        %s549 = sand.u32 %s45, 1
        %s550 = smul.addr %s549, 512
        %s551 = scalar_lea.vmem [#allocation2], %s550
        // Predicated region
        $region77: #{tpu_custom_call.1} parent=75 // pred_check
          %p552 = pneg %p58
        $region78: #{tpu_custom_call.1} parent=75 // pred_check_branch
          %554 = sbr.rel (%p552) target = $region80
        $region79: #{tpu_custom_call.1} parent=75 // pred_region
          %556 = dma.done %s548, 8192
        $region80: #{tpu_custom_call.1} parent=75 // pred_fallthru
          _
        %s557 = sand.u32 %s37, 1
        %s558 = scalar_lea.sflag [#allocation6], %s557
        %s559 = sand.u32 %s71, 1
        %s560 = smul.addr %s559, 16
        %s561 = scalar_lea.vmem [#allocation5], %s560
        // Predicated region
        $region81: #{tpu_custom_call.1} parent=75 // pred_check
          %p562 = pneg %p84
        $region82: #{tpu_custom_call.1} parent=75 // pred_check_branch
          %564 = sbr.rel (%p562) target = $region84
        $region83: #{tpu_custom_call.1} parent=75 // pred_region
          %566 = dma.done %s558, 256
        $region84: #{tpu_custom_call.1} parent=75 // pred_fallthru
          _
        // Predicated region
        $region85: #{tpu_custom_call.1} parent=75 // pred_check
          %p567 = pneg %p152
        $region86: #{tpu_custom_call.1} parent=75 // pred_check_branch
          %569 = sbr.rel (%p567) target = $region88
        $region87: #{tpu_custom_call.1} parent=75 // pred_region
          %571 = dma.done [#allocation6], 16
        $region88: #{tpu_custom_call.1} parent=75 // pred_fallthru
          _
        // Predicated region
        $region89: #{tpu_custom_call.1} parent=75 // pred_check
          %p572 = pneg %p173
        $region90: #{tpu_custom_call.1} parent=75 // pred_check_branch
          %574 = sbr.rel (%p572) target = $region92
        $region91: #{tpu_custom_call.1} parent=75 // pred_region
          %576 = dma.done [#allocation9], 1024
        $region92: #{tpu_custom_call.1} parent=75 // pred_fallthru
          _
        // Predicated region
        $region93: #{tpu_custom_call.1} parent=75 // pred_check
          %p577 = pneg %p194
        $region94: #{tpu_custom_call.1} parent=75 // pred_check_branch
          %579 = sbr.rel (%p577) target = $region96
        $region95: #{tpu_custom_call.1} parent=75 // pred_region
          %581 = dma.done [#allocation9], 32
        $region96: #{tpu_custom_call.1} parent=75 // pred_fallthru
          _
        // Predicated region
        $region97: #{tpu_custom_call.1} parent=75 // pred_check
          %p582 = pneg %p215
        $region98: #{tpu_custom_call.1} parent=75 // pred_check_branch
          %584 = sbr.rel (%p582) target = $region100
        $region99: #{tpu_custom_call.1} parent=75 // pred_region
          %586 = dma.done [#allocation12], 1024
        $region100: #{tpu_custom_call.1} parent=75 // pred_fallthru
          _
        // Predicated region
        $region101: #{tpu_custom_call.1} parent=75 // pred_check
          %p587 = pneg %p236
        $region102: #{tpu_custom_call.1} parent=75 // pred_check_branch
          %589 = sbr.rel (%p587) target = $region104
        $region103: #{tpu_custom_call.1} parent=75 // pred_region
          %591 = dma.done [#allocation12], 16
        $region104: #{tpu_custom_call.1} parent=75 // pred_fallthru
          _
        // Predicated region
        $region105: #{tpu_custom_call.1} parent=75 // pred_check
          %p592 = pneg %p257
        $region106: #{tpu_custom_call.1} parent=75 // pred_check_branch
          %594 = sbr.rel (%p592) target = $region108
        $region107: #{tpu_custom_call.1} parent=75 // pred_region
          %596 = dma.done [#allocation15], 16
        $region108: #{tpu_custom_call.1} parent=75 // pred_fallthru
          _
        // Predicated region
        $region109: #{tpu_custom_call.1} parent=75 // pred_check
          %p597 = pneg %p299
        $region110: #{tpu_custom_call.1} parent=75 // pred_check_branch
          %599 = sbr.rel (%p597) target = $region112
        $region111: #{tpu_custom_call.1} parent=75 // pred_region
          %601 = dma.done [#allocation15], 512
        $region112: #{tpu_custom_call.1} parent=75 // pred_fallthru
          _
        %s602 = sand.u32 %s45, 1
        %s603 = scalar_lea.sflag [#allocation3], %s602
        %s604 = sand.u32 %s45, 1
        %s605 = smul.addr %s604, 512
        %s606 = scalar_lea.vmem [#allocation2], %s605
        %p607 = pneg %p58
        %p608 = pneg %p55
        %s609 = sand.u32 %s37, 1
        %s610 = scalar_lea.sflag [#allocation6], %s609
        %s611 = sand.u32 %s71, 1
        %s612 = smul.addr %s611, 16
        %s613 = scalar_lea.vmem [#allocation5], %s612
        %p614 = pneg %p84
        %p615 = pneg %p81
        %s616 = smul.u32 2, %s37
        %p617 = scmp.lt.s32.totalorder %s616, 3
        %s618 = scalar_select %p617, %s616, 3
        %s619 = scalar_lea.vmem %s2, %s618
        %p620 = pneg %p110
        %p621 = pneg %p107
        %p622 = pneg %p131
        %p623 = pneg %p128
        %p624 = pneg %p152
        %p625 = pneg %p149
        %p626 = pneg %p173
        %p627 = pneg %p170
        %p628 = pneg %p194
        %p629 = pneg %p191
        %p630 = pneg %p215
        %p631 = pneg %p212
        %p632 = pneg %p236
        %p633 = pneg %p233
        %p634 = pneg %p257
        %p635 = pneg %p254
        %p636 = pneg %p278
        %p637 = pneg %p275
        %p638 = pneg %p299
        %p639 = pneg %p296
        %p640 = pneg %p320
        %p641 = pneg %p317
        %p642 = pneg %p341
        %p643 = pneg %p338
        %p644 = pneg %p367
        %p645 = pneg %p364
        %s646 = sand.u32 %s354, 1
        %s647 = scalar_lea.sflag [#allocation4], %s646
        %s648 = sand.u32 %s354, 1
        %s649 = smul.addr %s648, 512
        %s650 = scalar_lea.vmem [#allocation17], %s649
        %s651 = smul.u32 64, %s37
        %s652 = smul.u32 4, %s37
        %s653 = smul.u32 2, %s37
        %p654 = scmp.lt.s32.totalorder %s653, 3
        %s655 = scalar_select %p654, %s653, 3
        %s656 = scalar_lea.vmem %s2, %s655
        %s657 = smul.u32 2, %s37
        %s658 = smul.u32 64, %s37
        %v660 = vld [vmem:[%s551] sm:$0xff]
        %v661 = vld [vmem:[%s551 + $0x8] sm:$0xff]
        %v662 = vld [vmem:[%s551 + $0x10] sm:$0xff]
        %v663 = vld [vmem:[%s551 + $0x18] sm:$0xff]
        %v664 = vld [vmem:[%s551 + $0x20] sm:$0xff]
        %v665 = vld [vmem:[%s551 + $0x28] sm:$0xff]
        %v666 = vld [vmem:[%s551 + $0x30] sm:$0xff]
        %v667 = vld [vmem:[%s551 + $0x38] sm:$0xff]
        %v668 = vld [vmem:[%s551 + $0x40] sm:$0xff]
        %v669 = vld [vmem:[%s551 + $0x48] sm:$0xff]
        %v670 = vld [vmem:[%s551 + $0x50] sm:$0xff]
        %v671 = vld [vmem:[%s551 + $0x58] sm:$0xff]
        %v672 = vld [vmem:[%s551 + $0x60] sm:$0xff]
        %v673 = vld [vmem:[%s551 + $0x68] sm:$0xff]
        %v674 = vld [vmem:[%s551 + $0x70] sm:$0xff]
        %v675 = vld [vmem:[%s551 + $0x78] sm:$0xff]
        %v676 = vld [vmem:[%s551 + $0x80] sm:$0xff]
        %v677 = vld [vmem:[%s551 + $0x88] sm:$0xff]
        %v678 = vld [vmem:[%s551 + $0x90] sm:$0xff]
        %v679 = vld [vmem:[%s551 + $0x98] sm:$0xff]
        %v680 = vld [vmem:[%s551 + $0xa0] sm:$0xff]
        %v681 = vld [vmem:[%s551 + $0xa8] sm:$0xff]
        %v682 = vld [vmem:[%s551 + $0xb0] sm:$0xff]
        %v683 = vld [vmem:[%s551 + $0xb8] sm:$0xff]
        %v684 = vld [vmem:[%s551 + $0xc0] sm:$0xff]
        %v685 = vld [vmem:[%s551 + $0xc8] sm:$0xff]
        %v686 = vld [vmem:[%s551 + $0xd0] sm:$0xff]
        %v687 = vld [vmem:[%s551 + $0xd8] sm:$0xff]
        %v688 = vld [vmem:[%s551 + $0xe0] sm:$0xff]
        %v689 = vld [vmem:[%s551 + $0xe8] sm:$0xff]
        %v690 = vld [vmem:[%s551 + $0xf0] sm:$0xff]
        %v691 = vld [vmem:[%s551 + $0xf8] sm:$0xff]
        %v692 = vld [vmem:[%s551 + $0x100] sm:$0xff]
        %v693 = vld [vmem:[%s551 + $0x108] sm:$0xff]
        %v694 = vld [vmem:[%s551 + $0x110] sm:$0xff]
        %v695 = vld [vmem:[%s551 + $0x118] sm:$0xff]
        %v696 = vld [vmem:[%s551 + $0x120] sm:$0xff]
        %v697 = vld [vmem:[%s551 + $0x128] sm:$0xff]
        %v698 = vld [vmem:[%s551 + $0x130] sm:$0xff]
        %v699 = vld [vmem:[%s551 + $0x138] sm:$0xff]
        %v700 = vld [vmem:[%s551 + $0x140] sm:$0xff]
        %v701 = vld [vmem:[%s551 + $0x148] sm:$0xff]
        %v702 = vld [vmem:[%s551 + $0x150] sm:$0xff]
        %v703 = vld [vmem:[%s551 + $0x158] sm:$0xff]
        %v704 = vld [vmem:[%s551 + $0x160] sm:$0xff]
        %v705 = vld [vmem:[%s551 + $0x168] sm:$0xff]
        %v706 = vld [vmem:[%s551 + $0x170] sm:$0xff]
        %v707 = vld [vmem:[%s551 + $0x178] sm:$0xff]
        %v708 = vld [vmem:[%s551 + $0x180] sm:$0xff]
        %v709 = vld [vmem:[%s551 + $0x188] sm:$0xff]
        %v710 = vld [vmem:[%s551 + $0x190] sm:$0xff]
        %v711 = vld [vmem:[%s551 + $0x198] sm:$0xff]
        %v712 = vld [vmem:[%s551 + $0x1a0] sm:$0xff]
        %v713 = vld [vmem:[%s551 + $0x1a8] sm:$0xff]
        %v714 = vld [vmem:[%s551 + $0x1b0] sm:$0xff]
        %v715 = vld [vmem:[%s551 + $0x1b8] sm:$0xff]
        %v716 = vld [vmem:[%s551 + $0x1c0] sm:$0xff]
        %v717 = vld [vmem:[%s551 + $0x1c8] sm:$0xff]
        %v718 = vld [vmem:[%s551 + $0x1d0] sm:$0xff]
        %v719 = vld [vmem:[%s551 + $0x1d8] sm:$0xff]
        %v720 = vld [vmem:[%s551 + $0x1e0] sm:$0xff]
        %v721 = vld [vmem:[%s551 + $0x1e8] sm:$0xff]
        %v722 = vld [vmem:[%s551 + $0x1f0] sm:$0xff]
        %v723 = vld [vmem:[%s551 + $0x1f8] sm:$0xff]
        %v724 = vpack.c.bf16 %v661, %v660
        %v725 = vpack.c.bf16 %v663, %v662
        %v726 = vpack.c.bf16 %v665, %v664
        %v727 = vpack.c.bf16 %v667, %v666
        %v728 = vpack.c.bf16 %v669, %v668
        %v729 = vpack.c.bf16 %v671, %v670
        %v730 = vpack.c.bf16 %v673, %v672
        %v731 = vpack.c.bf16 %v675, %v674
        %v732 = vpack.c.bf16 %v677, %v676
        %v733 = vpack.c.bf16 %v679, %v678
        %v734 = vpack.c.bf16 %v681, %v680
        %v735 = vpack.c.bf16 %v683, %v682
        %v736 = vpack.c.bf16 %v685, %v684
        %v737 = vpack.c.bf16 %v687, %v686
        %v738 = vpack.c.bf16 %v689, %v688
        %v739 = vpack.c.bf16 %v691, %v690
        %v740 = vpack.c.bf16 %v693, %v692
        %v741 = vpack.c.bf16 %v695, %v694
        %v742 = vpack.c.bf16 %v697, %v696
        %v743 = vpack.c.bf16 %v699, %v698
        %v744 = vpack.c.bf16 %v701, %v700
        %v745 = vpack.c.bf16 %v703, %v702
        %v746 = vpack.c.bf16 %v705, %v704
        %v747 = vpack.c.bf16 %v707, %v706
        %v748 = vpack.c.bf16 %v709, %v708
        %v749 = vpack.c.bf16 %v711, %v710
        %v750 = vpack.c.bf16 %v713, %v712
        %v751 = vpack.c.bf16 %v715, %v714
        %v752 = vpack.c.bf16 %v717, %v716
        %v753 = vpack.c.bf16 %v719, %v718
        %v754 = vpack.c.bf16 %v721, %v720
        %v755 = vpack.c.bf16 %v723, %v722
        %v756 = vld [vmem:[%s3] sm:$0xf]
        %v757 = vld [vmem:[%s3 + $0x4] sm:$0xf]
        %v758 = vld [vmem:[%s3 + $0x8] sm:$0xf]
        %v759 = vld [vmem:[%s3 + $0xc] sm:$0xf]
        %v760 = vld [vmem:[%s3 + $0x10] sm:$0xf]
        %v761 = vld [vmem:[%s3 + $0x14] sm:$0xf]
        %v762 = vld [vmem:[%s3 + $0x18] sm:$0xf]
        %v763 = vld [vmem:[%s3 + $0x1c] sm:$0xf]
        %v764 = vld [vmem:[%s3 + $0x20] sm:$0xf]
        %v765 = vld [vmem:[%s3 + $0x24] sm:$0xf]
        %v766 = vld [vmem:[%s3 + $0x28] sm:$0xf]
        %v767 = vld [vmem:[%s3 + $0x2c] sm:$0xf]
        %v768 = vld [vmem:[%s3 + $0x30] sm:$0xf]
        %v769 = vld [vmem:[%s3 + $0x34] sm:$0xf]
        %v770 = vld [vmem:[%s3 + $0x38] sm:$0xf]
        %v771 = vld [vmem:[%s3 + $0x3c] sm:$0xf]
        %v772 = vld [vmem:[#allocation7] sm:$0x1]
        %v774 = vperm.slane %v772, 0
        %v792 = vunpack.c.l.b16 %v756
        %v793 = vunpack.c.l.b16 %v757
        %v794 = vunpack.c.l.b16 %v758
        %v795 = vunpack.c.l.b16 %v759
        %v796 = vunpack.c.l.b16 %v760
        %v797 = vunpack.c.l.b16 %v761
        %v798 = vunpack.c.l.b16 %v762
        %v799 = vunpack.c.l.b16 %v763
        %v800 = vunpack.c.l.b16 %v764
        %v801 = vunpack.c.l.b16 %v765
        %v802 = vunpack.c.l.b16 %v766
        %v803 = vunpack.c.l.b16 %v767
        %v804 = vunpack.c.l.b16 %v768
        %v805 = vunpack.c.l.b16 %v769
        %v806 = vunpack.c.l.b16 %v770
        %v807 = vunpack.c.l.b16 %v771
        %v808 = vpack.c.b16 %v793, %v792
        %v809 = vpack.c.b16 %v795, %v794
        %v810 = vpack.c.b16 %v797, %v796
        %v811 = vpack.c.b16 %v799, %v798
        %v812 = vpack.c.b16 %v801, %v800
        %v813 = vpack.c.b16 %v803, %v802
        %v814 = vpack.c.b16 %v805, %v804
        %v815 = vpack.c.b16 %v807, %v806
        %824 = vmatpush.bf16.msra.mxu0 %v815
        %825 = vmatpush.bf16.msra.mxu0 %v814
        %826 = vmatpush.bf16.msra.mxu0 %v813
        %827 = vmatpush.bf16.msra.mxu0 %v812
        %828 = vmatpush.bf16.msra.mxu0 %v811
        %829 = vmatpush.bf16.msra.mxu0 %v810
        %830 = vmatpush.bf16.msra.mxu0 %v809
        %831 = vmatpush.bf16.msra.mxu0 %v808
        %832 = vmatmul.bf16.gmra.mxu0 %v724
        %v833 = vpop.f32.mrf.mxu0
        %v834 = vadd.f32 %v774, %v833
        %v835 = vpop.f32.mrf.mxu0
        %v836 = vadd.f32 %v774, %v835
        %837 = vmatmul.bf16.gmra.mxu0 %v725
        %v838 = vpop.f32.mrf.mxu0
        %v839 = vadd.f32 %v774, %v838
        %v840 = vpop.f32.mrf.mxu0
        %v841 = vadd.f32 %v774, %v840
        %842 = vmatmul.bf16.gmra.mxu0 %v726
        %v843 = vpop.f32.mrf.mxu0
        %v844 = vadd.f32 %v774, %v843
        %v845 = vpop.f32.mrf.mxu0
        %v846 = vadd.f32 %v774, %v845
        %847 = vmatmul.bf16.gmra.mxu0 %v727
        %v848 = vpop.f32.mrf.mxu0
        %v849 = vadd.f32 %v774, %v848
        %v850 = vpop.f32.mrf.mxu0
        %v851 = vadd.f32 %v774, %v850
        %852 = vmatmul.bf16.gmra.mxu0 %v728
        %v853 = vpop.f32.mrf.mxu0
        %v854 = vadd.f32 %v774, %v853
        %v855 = vpop.f32.mrf.mxu0
        %v856 = vadd.f32 %v774, %v855
        %857 = vmatmul.bf16.gmra.mxu0 %v729
        %v858 = vpop.f32.mrf.mxu0
        %v859 = vadd.f32 %v774, %v858
        %v860 = vpop.f32.mrf.mxu0
        %v861 = vadd.f32 %v774, %v860
        %862 = vmatmul.bf16.gmra.mxu0 %v730
        %v863 = vpop.f32.mrf.mxu0
        %v864 = vadd.f32 %v774, %v863
        %v865 = vpop.f32.mrf.mxu0
        %v866 = vadd.f32 %v774, %v865
        %867 = vmatmul.bf16.gmra.mxu0 %v731
        %v868 = vpop.f32.mrf.mxu0
        %v869 = vadd.f32 %v774, %v868
        %v870 = vpop.f32.mrf.mxu0
        %v871 = vadd.f32 %v774, %v870
        %872 = vmatmul.bf16.gmra.mxu0 %v732
        %v873 = vpop.f32.mrf.mxu0
        %v874 = vadd.f32 %v774, %v873
        %v875 = vpop.f32.mrf.mxu0
        %v876 = vadd.f32 %v774, %v875
        %877 = vmatmul.bf16.gmra.mxu0 %v733
        %v878 = vpop.f32.mrf.mxu0
        %v879 = vadd.f32 %v774, %v878
        %v880 = vpop.f32.mrf.mxu0
        %v881 = vadd.f32 %v774, %v880
        %882 = vmatmul.bf16.gmra.mxu0 %v734
        %v883 = vpop.f32.mrf.mxu0
        %v884 = vadd.f32 %v774, %v883
        %v885 = vpop.f32.mrf.mxu0
        %v886 = vadd.f32 %v774, %v885
        %887 = vmatmul.bf16.gmra.mxu0 %v735
        %v888 = vpop.f32.mrf.mxu0
        %v889 = vadd.f32 %v774, %v888
        %v890 = vpop.f32.mrf.mxu0
        %v891 = vadd.f32 %v774, %v890
        %892 = vmatmul.bf16.gmra.mxu0 %v736
        %v893 = vpop.f32.mrf.mxu0
        %v894 = vadd.f32 %v774, %v893
        %v895 = vpop.f32.mrf.mxu0
        %v896 = vadd.f32 %v774, %v895
        %897 = vmatmul.bf16.gmra.mxu0 %v737
        %v898 = vpop.f32.mrf.mxu0
        %v899 = vadd.f32 %v774, %v898
        %v900 = vpop.f32.mrf.mxu0
        %v901 = vadd.f32 %v774, %v900
        %902 = vmatmul.bf16.gmra.mxu0 %v738
        %v903 = vpop.f32.mrf.mxu0
        %v904 = vadd.f32 %v774, %v903
        %v905 = vpop.f32.mrf.mxu0
        %v906 = vadd.f32 %v774, %v905
        %907 = vmatmul.bf16.gmra.mxu0 %v739
        %v908 = vpop.f32.mrf.mxu0
        %v909 = vadd.f32 %v774, %v908
        %v910 = vpop.f32.mrf.mxu0
        %v911 = vadd.f32 %v774, %v910
        %912 = vmatmul.bf16.gmra.mxu0 %v740
        %v913 = vpop.f32.mrf.mxu0
        %v914 = vadd.f32 %v774, %v913
        %v915 = vpop.f32.mrf.mxu0
        %v916 = vadd.f32 %v774, %v915
        %917 = vmatmul.bf16.gmra.mxu0 %v741
        %v918 = vpop.f32.mrf.mxu0
        %v919 = vadd.f32 %v774, %v918
        %v920 = vpop.f32.mrf.mxu0
        %v921 = vadd.f32 %v774, %v920
        %922 = vmatmul.bf16.gmra.mxu0 %v742
        %v923 = vpop.f32.mrf.mxu0
        %v924 = vadd.f32 %v774, %v923
        %v925 = vpop.f32.mrf.mxu0
        %v926 = vadd.f32 %v774, %v925
        %927 = vmatmul.bf16.gmra.mxu0 %v743
        %v928 = vpop.f32.mrf.mxu0
        %v929 = vadd.f32 %v774, %v928
        %v930 = vpop.f32.mrf.mxu0
        %v931 = vadd.f32 %v774, %v930
        %932 = vmatmul.bf16.gmra.mxu0 %v744
        %v933 = vpop.f32.mrf.mxu0
        %v934 = vadd.f32 %v774, %v933
        %v935 = vpop.f32.mrf.mxu0
        %v936 = vadd.f32 %v774, %v935
        %937 = vmatmul.bf16.gmra.mxu0 %v745
        %v938 = vpop.f32.mrf.mxu0
        %v939 = vadd.f32 %v774, %v938
        %v940 = vpop.f32.mrf.mxu0
        %v941 = vadd.f32 %v774, %v940
        %942 = vmatmul.bf16.gmra.mxu0 %v746
        %v943 = vpop.f32.mrf.mxu0
        %v944 = vadd.f32 %v774, %v943
        %v945 = vpop.f32.mrf.mxu0
        %v946 = vadd.f32 %v774, %v945
        %947 = vmatmul.bf16.gmra.mxu0 %v747
        %v948 = vpop.f32.mrf.mxu0
        %v949 = vadd.f32 %v774, %v948
        %v950 = vpop.f32.mrf.mxu0
        %v951 = vadd.f32 %v774, %v950
        %952 = vmatmul.bf16.gmra.mxu0 %v748
        %v953 = vpop.f32.mrf.mxu0
        %v954 = vadd.f32 %v774, %v953
        %v955 = vpop.f32.mrf.mxu0
        %v956 = vadd.f32 %v774, %v955
        %957 = vmatmul.bf16.gmra.mxu0 %v749
        %v958 = vpop.f32.mrf.mxu0
        %v959 = vadd.f32 %v774, %v958
        %v960 = vpop.f32.mrf.mxu0
        %v961 = vadd.f32 %v774, %v960
        %962 = vmatmul.bf16.gmra.mxu0 %v750
        %v963 = vpop.f32.mrf.mxu0
        %v964 = vadd.f32 %v774, %v963
        %v965 = vpop.f32.mrf.mxu0
        %v966 = vadd.f32 %v774, %v965
        %967 = vmatmul.bf16.gmra.mxu0 %v751
        %v968 = vpop.f32.mrf.mxu0
        %v969 = vadd.f32 %v774, %v968
        %v970 = vpop.f32.mrf.mxu0
        %v971 = vadd.f32 %v774, %v970
        %972 = vmatmul.bf16.gmra.mxu0 %v752
        %v973 = vpop.f32.mrf.mxu0
        %v974 = vadd.f32 %v774, %v973
        %v975 = vpop.f32.mrf.mxu0
        %v976 = vadd.f32 %v774, %v975
        %977 = vmatmul.bf16.gmra.mxu0 %v753
        %v978 = vpop.f32.mrf.mxu0
        %v979 = vadd.f32 %v774, %v978
        %v980 = vpop.f32.mrf.mxu0
        %v981 = vadd.f32 %v774, %v980
        %982 = vmatmul.bf16.gmra.mxu0 %v754
        %v983 = vpop.f32.mrf.mxu0
        %v984 = vadd.f32 %v774, %v983
        %v985 = vpop.f32.mrf.mxu0
        %v986 = vadd.f32 %v774, %v985
        %987 = vmatmul.bf16.gmra.mxu0 %v755
        %v988 = vpop.f32.mrf.mxu0
        %v989 = vadd.f32 %v774, %v988
        %v990 = vpop.f32.mrf.mxu0
        %v991 = vadd.f32 %v774, %v990
        %992 = vdwg.mxu0
        %v993 = vld [vmem:[%s561] sm:$0xf]
        %v994 = vld [vmem:[%s561 + $0x4] sm:$0xf]
        %v995 = vld [vmem:[%s561 + $0x8] sm:$0xf]
        %v996 = vld [vmem:[%s561 + $0xc] sm:$0xf]
        %v997 = vld [vmem:[#allocation8] sm:$0xff]
        %v998 = vld [vmem:[#allocation8 + $0x8] sm:$0xff]
        %v999 = vld [vmem:[#allocation8 + $0x10] sm:$0xff]
        %v1000 = vld [vmem:[#allocation8 + $0x18] sm:$0xff]
        %v1001 = vld [vmem:[#allocation8 + $0x20] sm:$0xff]
        %v1002 = vld [vmem:[#allocation8 + $0x28] sm:$0xff]
        %v1003 = vld [vmem:[#allocation8 + $0x30] sm:$0xff]
        %v1004 = vld [vmem:[#allocation8 + $0x38] sm:$0xff]
        %v1005 = vld [vmem:[#allocation10] sm:$0x3]
        %v1007 = vperm.slane %v1005, 0
        %v1008 = vperm.slane %v1005, 1
        %v1015 = vunpack.c.l.b16 %v993
        %v1016 = vunpack.c.l.b16 %v994
        %v1017 = vunpack.c.l.b16 %v995
        %v1018 = vunpack.c.l.b16 %v996
        %v1019 = vpack.c.b16 %v1016, %v1015
        %v1020 = vpack.c.b16 %v1018, %v1017
        %v1029 = vunpack.c.l.b16 %v997
        %v1030 = vunpack.c.h.b16 %v997
        %v1031 = vunpack.c.l.b16 %v998
        %v1032 = vunpack.c.h.b16 %v998
        %v1033 = vunpack.c.l.b16 %v999
        %v1034 = vunpack.c.h.b16 %v999
        %v1035 = vunpack.c.l.b16 %v1000
        %v1036 = vunpack.c.h.b16 %v1000
        %v1037 = vunpack.c.l.b16 %v1001
        %v1038 = vunpack.c.h.b16 %v1001
        %v1039 = vunpack.c.l.b16 %v1002
        %v1040 = vunpack.c.h.b16 %v1002
        %v1041 = vunpack.c.l.b16 %v1003
        %v1042 = vunpack.c.h.b16 %v1003
        %v1043 = vunpack.c.l.b16 %v1004
        %v1044 = vunpack.c.h.b16 %v1004
        %v1045 = vpack.c.b16 %v1031, %v1029
        %v1046 = vpack.c.b16 %v1032, %v1030
        %v1047 = vpack.c.b16 %v1035, %v1033
        %v1048 = vpack.c.b16 %v1036, %v1034
        %v1049 = vpack.c.b16 %v1039, %v1037
        %v1050 = vpack.c.b16 %v1040, %v1038
        %v1051 = vpack.c.b16 %v1043, %v1041
        %v1052 = vpack.c.b16 %v1044, %v1042
        %vm1061 = vcmask 523264
        %v1063 = vsel %vm1061, %v1019, 0
        %v1066 = vsel %vm1061, %v1020, 0
        %1068 = vmatpush.bf16.msra.mxu0 0
        %1069 = vmatpush.bf16.msra.mxu0 0
        %1070 = vmatpush.bf16.msra.mxu0 0
        %1071 = vmatpush.bf16.msra.mxu0 0
        %1072 = vmatpush.bf16.msra.mxu0 %v1051
        %1073 = vmatpush.bf16.msra.mxu0 %v1049
        %1074 = vmatpush.bf16.msra.mxu0 %v1047
        %1075 = vmatpush.bf16.msra.mxu0 %v1045
        %1076 = vmatmul.bf16.gmra.mxu0 %v1063
        %v1077 = vpop.f32.mrf.mxu0
        %v1078 = vadd.f32 %v1007, %v1077
        %v1079 = vpop.f32.mrf.mxu0
        %v1080 = vadd.f32 %v1007, %v1079
        %1081 = vmatmul.bf16.gmra.mxu0 %v1066
        %v1082 = vpop.f32.mrf.mxu0
        %v1083 = vadd.f32 %v1007, %v1082
        %v1084 = vpop.f32.mrf.mxu0
        %v1085 = vadd.f32 %v1007, %v1084
        %1086 = vdwg.mxu0
        %1087 = vmatpush.bf16.msra.mxu0 0
        %1088 = vmatpush.bf16.msra.mxu0 0
        %1089 = vmatpush.bf16.msra.mxu0 0
        %1090 = vmatpush.bf16.msra.mxu0 0
        %1091 = vmatpush.bf16.msra.mxu0 %v1052
        %1092 = vmatpush.bf16.msra.mxu0 %v1050
        %1093 = vmatpush.bf16.msra.mxu0 %v1048
        %1094 = vmatpush.bf16.msra.mxu0 %v1046
        %1095 = vmatmul.bf16.gmra.mxu0 %v1063
        %v1096 = vpop.f32.mrf.mxu0
        %v1097 = vadd.f32 %v1008, %v1096
        %v1098 = vpop.f32.mrf.mxu0
        %v1099 = vadd.f32 %v1008, %v1098
        %1100 = vmatmul.bf16.gmra.mxu0 %v1066
        %v1101 = vpop.f32.mrf.mxu0
        %v1102 = vadd.f32 %v1008, %v1101
        %v1103 = vpop.f32.mrf.mxu0
        %v1104 = vadd.f32 %v1008, %v1103
        %1105 = vdwg.mxu0
        %v1106 = vld [vmem:[#allocation16] sm:$0xf]
        %v1107 = vld [vmem:[#allocation16 + $0x4] sm:$0xf]
        %v1108 = vld [vmem:[#allocation16 + $0x8] sm:$0xf]
        %v1109 = vld [vmem:[#allocation16 + $0xc] sm:$0xf]
        %v1110 = vld [vmem:[#allocation16 + $0x10] sm:$0xf]
        %v1111 = vld [vmem:[#allocation16 + $0x14] sm:$0xf]
        %v1112 = vld [vmem:[#allocation16 + $0x18] sm:$0xf]
        %v1113 = vld [vmem:[#allocation16 + $0x1c] sm:$0xf]
        %v1114 = vld [vmem:[%s12] sm:$0xff]
        %v1115 = vld [vmem:[%s12 + $0x8] sm:$0xff]
        %v1116 = vld [vmem:[%s12 + $0x10] sm:$0xff]
        %v1117 = vld [vmem:[%s12 + $0x18] sm:$0xff]
        %v1118 = vld [vmem:[%s12 + $0x20] sm:$0xff]
        %v1119 = vld [vmem:[%s12 + $0x28] sm:$0xff]
        %v1120 = vld [vmem:[%s12 + $0x30] sm:$0xff]
        %v1121 = vld [vmem:[%s12 + $0x38] sm:$0xff]
        %v1122 = vld [vmem:[%s13] sm:$0xf]
        %v1123 = vld [vmem:[%s656] sm:$0x1]
        %v1124 = vld [vmem:[%s656 + $0x1] sm:$0x1]
        %v1125 = vpack.c.bf16 %v836, %v834
        %v1126 = vpack.c.bf16 %v841, %v839
        %v1127 = vpack.c.bf16 %v846, %v844
        %v1128 = vpack.c.bf16 %v851, %v849
        %v1129 = vpack.c.bf16 %v856, %v854
        %v1130 = vpack.c.bf16 %v861, %v859
        %v1131 = vpack.c.bf16 %v866, %v864
        %v1132 = vpack.c.bf16 %v871, %v869
        %v1133 = vpack.c.bf16 %v876, %v874
        %v1134 = vpack.c.bf16 %v881, %v879
        %v1135 = vpack.c.bf16 %v886, %v884
        %v1136 = vpack.c.bf16 %v891, %v889
        %v1137 = vpack.c.bf16 %v896, %v894
        %v1138 = vpack.c.bf16 %v901, %v899
        %v1139 = vpack.c.bf16 %v906, %v904
        %v1140 = vpack.c.bf16 %v911, %v909
        %v1141 = vpack.c.bf16 %v1078, %v1078
        %v1142 = vpack.c.bf16 %v1080, %v1080
        %v1143 = vpack.c.bf16 %v1097, %v1097
        %v1144 = vpack.c.bf16 %v1099, %v1099
        %v1147 = vunpack.c.l.b16 %v1141
        %v1148 = vunpack.c.l.b16 %v1142
        %v1149 = vpack.c.b16 %v1148, %v1147
        %v1151 = vunpack.c.l.bf16 %v1149
        %v1152 = vunpack.c.h.bf16 %v1149
        %v1153 = vunpack.c.l.bf16 %v1106
        %v1154 = vunpack.c.l.bf16 %v1107
        %v1155 = vunpack.c.l.bf16 %v1108
        %v1156 = vunpack.c.l.bf16 %v1109
        %v1157 = vunpack.c.l.bf16 %v1110
        %v1158 = vunpack.c.l.bf16 %v1111
        %v1159 = vunpack.c.l.bf16 %v1112
        %v1160 = vunpack.c.l.bf16 %v1113
        %v1161 = vmul.f32 %v1151, %v1153
        %v1162 = vmul.f32 %v1152, %v1154
        %v1163 = vmul.f32 %v1151, %v1155
        %v1164 = vmul.f32 %v1152, %v1156
        %v1165 = vmul.f32 %v1151, %v1157
        %v1166 = vmul.f32 %v1152, %v1158
        %v1167 = vmul.f32 %v1151, %v1159
        %v1168 = vmul.f32 %v1152, %v1160
        %v1169 = vpack.c.bf16 %v1162, %v1161
        %v1170 = vpack.c.bf16 %v1164, %v1163
        %v1171 = vpack.c.bf16 %v1166, %v1165
        %v1172 = vpack.c.bf16 %v1168, %v1167
        %v1175 = vunpack.c.l.b16 %v1143
        %v1176 = vunpack.c.l.b16 %v1144
        %v1177 = vpack.c.b16 %v1176, %v1175
        %v1179 = vunpack.c.l.bf16 %v1177
        %v1180 = vunpack.c.h.bf16 %v1177
        %v1181 = vmul.f32 %v1179, %v1153
        %v1182 = vmul.f32 %v1180, %v1154
        %v1183 = vmul.f32 %v1179, %v1155
        %v1184 = vmul.f32 %v1180, %v1156
        %v1185 = vmul.f32 %v1179, %v1157
        %v1186 = vmul.f32 %v1180, %v1158
        %v1187 = vmul.f32 %v1179, %v1159
        %v1188 = vmul.f32 %v1180, %v1160
        %v1189 = vpack.c.bf16 %v1182, %v1181
        %v1190 = vpack.c.bf16 %v1184, %v1183
        %v1191 = vpack.c.bf16 %v1186, %v1185
        %v1192 = vpack.c.bf16 %v1188, %v1187
        %v1194 = vperm.slane %v1123, 0
        %1196 = vmatpush.bf16.xpose.msra.mxu0 0
        %1197 = vmatpush.bf16.xpose.msra.mxu0 0
        %1198 = vmatpush.bf16.xpose.msra.mxu0 0
        %1199 = vmatpush.bf16.xpose.msra.mxu0 0
        %1200 = vmatpush.bf16.xpose.msra.mxu0 %v1172
        %1201 = vmatpush.bf16.xpose.msra.mxu0 %v1171
        %1202 = vmatpush.bf16.xpose.msra.mxu0 %v1170
        %1203 = vmatpush.bf16.xpose.msra.mxu0 %v1169
        %1204 = vmatmul.bf16.gmra.mxu0 %v1125
        %v1205 = vpop.f32.mrf.mxu0
        %v1206 = vadd.f32 %v1194, %v1205
        %v1207 = vpop.f32.mrf.mxu0
        %v1208 = vadd.f32 %v1194, %v1207
        %1209 = vmatmul.bf16.gmra.mxu0 %v1126
        %v1210 = vpop.f32.mrf.mxu0
        %v1211 = vadd.f32 %v1194, %v1210
        %v1212 = vpop.f32.mrf.mxu0
        %v1213 = vadd.f32 %v1194, %v1212
        %1214 = vmatmul.bf16.gmra.mxu0 %v1127
        %v1215 = vpop.f32.mrf.mxu0
        %v1216 = vadd.f32 %v1194, %v1215
        %v1217 = vpop.f32.mrf.mxu0
        %v1218 = vadd.f32 %v1194, %v1217
        %1219 = vmatmul.bf16.gmra.mxu0 %v1128
        %v1220 = vpop.f32.mrf.mxu0
        %v1221 = vadd.f32 %v1194, %v1220
        %v1222 = vpop.f32.mrf.mxu0
        %v1223 = vadd.f32 %v1194, %v1222
        %1224 = vmatmul.bf16.gmra.mxu0 %v1129
        %v1225 = vpop.f32.mrf.mxu0
        %v1226 = vadd.f32 %v1194, %v1225
        %v1227 = vpop.f32.mrf.mxu0
        %v1228 = vadd.f32 %v1194, %v1227
        %1229 = vmatmul.bf16.gmra.mxu0 %v1130
        %v1230 = vpop.f32.mrf.mxu0
        %v1231 = vadd.f32 %v1194, %v1230
        %v1232 = vpop.f32.mrf.mxu0
        %v1233 = vadd.f32 %v1194, %v1232
        %1234 = vmatmul.bf16.gmra.mxu0 %v1131
        %v1235 = vpop.f32.mrf.mxu0
        %v1236 = vadd.f32 %v1194, %v1235
        %v1237 = vpop.f32.mrf.mxu0
        %v1238 = vadd.f32 %v1194, %v1237
        %1239 = vmatmul.bf16.gmra.mxu0 %v1132
        %v1240 = vpop.f32.mrf.mxu0
        %v1241 = vadd.f32 %v1194, %v1240
        %v1242 = vpop.f32.mrf.mxu0
        %v1243 = vadd.f32 %v1194, %v1242
        %1244 = vmatmul.bf16.gmra.mxu0 %v1133
        %v1245 = vpop.f32.mrf.mxu0
        %v1246 = vadd.f32 %v1194, %v1245
        %v1247 = vpop.f32.mrf.mxu0
        %v1248 = vadd.f32 %v1194, %v1247
        %1249 = vmatmul.bf16.gmra.mxu0 %v1134
        %v1250 = vpop.f32.mrf.mxu0
        %v1251 = vadd.f32 %v1194, %v1250
        %v1252 = vpop.f32.mrf.mxu0
        %v1253 = vadd.f32 %v1194, %v1252
        %1254 = vmatmul.bf16.gmra.mxu0 %v1135
        %v1255 = vpop.f32.mrf.mxu0
        %v1256 = vadd.f32 %v1194, %v1255
        %v1257 = vpop.f32.mrf.mxu0
        %v1258 = vadd.f32 %v1194, %v1257
        %1259 = vmatmul.bf16.gmra.mxu0 %v1136
        %v1260 = vpop.f32.mrf.mxu0
        %v1261 = vadd.f32 %v1194, %v1260
        %v1262 = vpop.f32.mrf.mxu0
        %v1263 = vadd.f32 %v1194, %v1262
        %1264 = vmatmul.bf16.gmra.mxu0 %v1137
        %v1265 = vpop.f32.mrf.mxu0
        %v1266 = vadd.f32 %v1194, %v1265
        %v1267 = vpop.f32.mrf.mxu0
        %v1268 = vadd.f32 %v1194, %v1267
        %1269 = vmatmul.bf16.gmra.mxu0 %v1138
        %v1270 = vpop.f32.mrf.mxu0
        %v1271 = vadd.f32 %v1194, %v1270
        %v1272 = vpop.f32.mrf.mxu0
        %v1273 = vadd.f32 %v1194, %v1272
        %1274 = vmatmul.bf16.gmra.mxu0 %v1139
        %v1275 = vpop.f32.mrf.mxu0
        %v1276 = vadd.f32 %v1194, %v1275
        %v1277 = vpop.f32.mrf.mxu0
        %v1278 = vadd.f32 %v1194, %v1277
        %1279 = vmatmul.bf16.gmra.mxu0 %v1140
        %v1280 = vpop.f32.mrf.mxu0
        %v1281 = vadd.f32 %v1194, %v1280
        %v1282 = vpop.f32.mrf.mxu0
        %v1283 = vadd.f32 %v1194, %v1282
        %1284 = vdwg.mxu0
        %v1285 = vsel %vm1061, %v1206, -inf
        %1286 = vmax.xlane.f32.xlu0 %v1285
        %v1287 = vpop.xlane.xlu0 %1286
        %v1288 = vsel %vm1061, %v1208, -inf
        %1289 = vmax.xlane.f32.xlu0 %v1288
        %v1290 = vpop.xlane.xlu0 %1289
        %v1291 = vsel %vm1061, %v1211, -inf
        %1292 = vmax.xlane.f32.xlu0 %v1291
        %v1293 = vpop.xlane.xlu0 %1292
        %v1294 = vsel %vm1061, %v1213, -inf
        %1295 = vmax.xlane.f32.xlu0 %v1294
        %v1296 = vpop.xlane.xlu0 %1295
        %v1297 = vsel %vm1061, %v1216, -inf
        %1298 = vmax.xlane.f32.xlu0 %v1297
        %v1299 = vpop.xlane.xlu0 %1298
        %v1300 = vsel %vm1061, %v1218, -inf
        %1301 = vmax.xlane.f32.xlu0 %v1300
        %v1302 = vpop.xlane.xlu0 %1301
        %v1303 = vsel %vm1061, %v1221, -inf
        %1304 = vmax.xlane.f32.xlu0 %v1303
        %v1305 = vpop.xlane.xlu0 %1304
        %v1306 = vsel %vm1061, %v1223, -inf
        %1307 = vmax.xlane.f32.xlu0 %v1306
        %v1308 = vpop.xlane.xlu0 %1307
        %v1309 = vsel %vm1061, %v1226, -inf
        %1310 = vmax.xlane.f32.xlu0 %v1309
        %v1311 = vpop.xlane.xlu0 %1310
        %v1312 = vsel %vm1061, %v1228, -inf
        %1313 = vmax.xlane.f32.xlu0 %v1312
        %v1314 = vpop.xlane.xlu0 %1313
        %v1315 = vsel %vm1061, %v1231, -inf
        %1316 = vmax.xlane.f32.xlu0 %v1315
        %v1317 = vpop.xlane.xlu0 %1316
        %v1318 = vsel %vm1061, %v1233, -inf
        %1319 = vmax.xlane.f32.xlu0 %v1318
        %v1320 = vpop.xlane.xlu0 %1319
        %v1321 = vsel %vm1061, %v1236, -inf
        %1322 = vmax.xlane.f32.xlu0 %v1321
        %v1323 = vpop.xlane.xlu0 %1322
        %v1324 = vsel %vm1061, %v1238, -inf
        %1325 = vmax.xlane.f32.xlu0 %v1324
        %v1326 = vpop.xlane.xlu0 %1325
        %v1327 = vsel %vm1061, %v1241, -inf
        %1328 = vmax.xlane.f32.xlu0 %v1327
        %v1329 = vpop.xlane.xlu0 %1328
        %v1330 = vsel %vm1061, %v1243, -inf
        %1331 = vmax.xlane.f32.xlu0 %v1330
        %v1332 = vpop.xlane.xlu0 %1331
        %v1333 = vsel %vm1061, %v1246, -inf
        %1334 = vmax.xlane.f32.xlu0 %v1333
        %v1335 = vpop.xlane.xlu0 %1334
        %v1336 = vsel %vm1061, %v1248, -inf
        %1337 = vmax.xlane.f32.xlu0 %v1336
        %v1338 = vpop.xlane.xlu0 %1337
        %v1339 = vsel %vm1061, %v1251, -inf
        %1340 = vmax.xlane.f32.xlu0 %v1339
        %v1341 = vpop.xlane.xlu0 %1340
        %v1342 = vsel %vm1061, %v1253, -inf
        %1343 = vmax.xlane.f32.xlu0 %v1342
        %v1344 = vpop.xlane.xlu0 %1343
        %v1345 = vsel %vm1061, %v1256, -inf
        %1346 = vmax.xlane.f32.xlu0 %v1345
        %v1347 = vpop.xlane.xlu0 %1346
        %v1348 = vsel %vm1061, %v1258, -inf
        %1349 = vmax.xlane.f32.xlu0 %v1348
        %v1350 = vpop.xlane.xlu0 %1349
        %v1351 = vsel %vm1061, %v1261, -inf
        %1352 = vmax.xlane.f32.xlu0 %v1351
        %v1353 = vpop.xlane.xlu0 %1352
        %v1354 = vsel %vm1061, %v1263, -inf
        %1355 = vmax.xlane.f32.xlu0 %v1354
        %v1356 = vpop.xlane.xlu0 %1355
        %v1357 = vsel %vm1061, %v1266, -inf
        %1358 = vmax.xlane.f32.xlu0 %v1357
        %v1359 = vpop.xlane.xlu0 %1358
        %v1360 = vsel %vm1061, %v1268, -inf
        %1361 = vmax.xlane.f32.xlu0 %v1360
        %v1362 = vpop.xlane.xlu0 %1361
        %v1363 = vsel %vm1061, %v1271, -inf
        %1364 = vmax.xlane.f32.xlu0 %v1363
        %v1365 = vpop.xlane.xlu0 %1364
        %v1366 = vsel %vm1061, %v1273, -inf
        %1367 = vmax.xlane.f32.xlu0 %v1366
        %v1368 = vpop.xlane.xlu0 %1367
        %v1369 = vsel %vm1061, %v1276, -inf
        %1370 = vmax.xlane.f32.xlu0 %v1369
        %v1371 = vpop.xlane.xlu0 %1370
        %v1372 = vsel %vm1061, %v1278, -inf
        %1373 = vmax.xlane.f32.xlu0 %v1372
        %v1374 = vpop.xlane.xlu0 %1373
        %v1375 = vsel %vm1061, %v1281, -inf
        %1376 = vmax.xlane.f32.xlu0 %v1375
        %v1377 = vpop.xlane.xlu0 %1376
        %v1378 = vsel %vm1061, %v1283, -inf
        %1379 = vmax.xlane.f32.xlu0 %v1378
        %v1380 = vpop.xlane.xlu0 %1379
        %v1381 = vsub.f32 %v1206, %v1287
        %v1382 = vsub.f32 %v1208, %v1290
        %v1383 = vsub.f32 %v1211, %v1293
        %v1384 = vsub.f32 %v1213, %v1296
        %v1385 = vsub.f32 %v1216, %v1299
        %v1386 = vsub.f32 %v1218, %v1302
        %v1387 = vsub.f32 %v1221, %v1305
        %v1388 = vsub.f32 %v1223, %v1308
        %v1389 = vsub.f32 %v1226, %v1311
        %v1390 = vsub.f32 %v1228, %v1314
        %v1391 = vsub.f32 %v1231, %v1317
        %v1392 = vsub.f32 %v1233, %v1320
        %v1393 = vsub.f32 %v1236, %v1323
        %v1394 = vsub.f32 %v1238, %v1326
        %v1395 = vsub.f32 %v1241, %v1329
        %v1396 = vsub.f32 %v1243, %v1332
        %v1397 = vsub.f32 %v1246, %v1335
        %v1398 = vsub.f32 %v1248, %v1338
        %v1399 = vsub.f32 %v1251, %v1341
        %v1400 = vsub.f32 %v1253, %v1344
        %v1401 = vsub.f32 %v1256, %v1347
        %v1402 = vsub.f32 %v1258, %v1350
        %v1403 = vsub.f32 %v1261, %v1353
        %v1404 = vsub.f32 %v1263, %v1356
        %v1405 = vsub.f32 %v1266, %v1359
        %v1406 = vsub.f32 %v1268, %v1362
        %v1407 = vsub.f32 %v1271, %v1365
        %v1408 = vsub.f32 %v1273, %v1368
        %v1409 = vsub.f32 %v1276, %v1371
        %v1410 = vsub.f32 %v1278, %v1374
        %v1411 = vsub.f32 %v1281, %v1377
        %v1412 = vsub.f32 %v1283, %v1380
        %v1413 = vmul.f32 %v1381, 1.442695
        %v1414 = vpow.pop %v1413
        %v1415 = vmul.f32 %v1382, 1.442695
        %v1416 = vpow.pop %v1415
        %v1417 = vmul.f32 %v1383, 1.442695
        %v1418 = vpow.pop %v1417
        %v1419 = vmul.f32 %v1384, 1.442695
        %v1420 = vpow.pop %v1419
        %v1421 = vmul.f32 %v1385, 1.442695
        %v1422 = vpow.pop %v1421
        %v1423 = vmul.f32 %v1386, 1.442695
        %v1424 = vpow.pop %v1423
        %v1425 = vmul.f32 %v1387, 1.442695
        %v1426 = vpow.pop %v1425
        %v1427 = vmul.f32 %v1388, 1.442695
        %v1428 = vpow.pop %v1427
        %v1429 = vmul.f32 %v1389, 1.442695
        %v1430 = vpow.pop %v1429
        %v1431 = vmul.f32 %v1390, 1.442695
        %v1432 = vpow.pop %v1431
        %v1433 = vmul.f32 %v1391, 1.442695
        %v1434 = vpow.pop %v1433
        %v1435 = vmul.f32 %v1392, 1.442695
        %v1436 = vpow.pop %v1435
        %v1437 = vmul.f32 %v1393, 1.442695
        %v1438 = vpow.pop %v1437
        %v1439 = vmul.f32 %v1394, 1.442695
        %v1440 = vpow.pop %v1439
        %v1441 = vmul.f32 %v1395, 1.442695
        %v1442 = vpow.pop %v1441
        %v1443 = vmul.f32 %v1396, 1.442695
        %v1444 = vpow.pop %v1443
        %v1445 = vmul.f32 %v1397, 1.442695
        %v1446 = vpow.pop %v1445
        %v1447 = vmul.f32 %v1398, 1.442695
        %v1448 = vpow.pop %v1447
        %v1449 = vmul.f32 %v1399, 1.442695
        %v1450 = vpow.pop %v1449
        %v1451 = vmul.f32 %v1400, 1.442695
        %v1452 = vpow.pop %v1451
        %v1453 = vmul.f32 %v1401, 1.442695
        %v1454 = vpow.pop %v1453
        %v1455 = vmul.f32 %v1402, 1.442695
        %v1456 = vpow.pop %v1455
        %v1457 = vmul.f32 %v1403, 1.442695
        %v1458 = vpow.pop %v1457
        %v1459 = vmul.f32 %v1404, 1.442695
        %v1460 = vpow.pop %v1459
        %v1461 = vmul.f32 %v1405, 1.442695
        %v1462 = vpow.pop %v1461
        %v1463 = vmul.f32 %v1406, 1.442695
        %v1464 = vpow.pop %v1463
        %v1465 = vmul.f32 %v1407, 1.442695
        %v1466 = vpow.pop %v1465
        %v1467 = vmul.f32 %v1408, 1.442695
        %v1468 = vpow.pop %v1467
        %v1469 = vmul.f32 %v1409, 1.442695
        %v1470 = vpow.pop %v1469
        %v1471 = vmul.f32 %v1410, 1.442695
        %v1472 = vpow.pop %v1471
        %v1473 = vmul.f32 %v1411, 1.442695
        %v1474 = vpow.pop %v1473
        %v1475 = vmul.f32 %v1412, 1.442695
        %v1476 = vpow.pop %v1475
        %v1478 = vsel %vm1061, %v1414, 0
        %v1481 = vsel %vm1061, %v1416, 0
        %v1484 = vsel %vm1061, %v1418, 0
        %v1487 = vsel %vm1061, %v1420, 0
        %v1490 = vsel %vm1061, %v1422, 0
        %v1493 = vsel %vm1061, %v1424, 0
        %v1496 = vsel %vm1061, %v1426, 0
        %v1499 = vsel %vm1061, %v1428, 0
        %v1502 = vsel %vm1061, %v1430, 0
        %v1505 = vsel %vm1061, %v1432, 0
        %v1508 = vsel %vm1061, %v1434, 0
        %v1511 = vsel %vm1061, %v1436, 0
        %v1514 = vsel %vm1061, %v1438, 0
        %v1517 = vsel %vm1061, %v1440, 0
        %v1520 = vsel %vm1061, %v1442, 0
        %v1523 = vsel %vm1061, %v1444, 0
        %v1526 = vsel %vm1061, %v1446, 0
        %v1529 = vsel %vm1061, %v1448, 0
        %v1532 = vsel %vm1061, %v1450, 0
        %v1535 = vsel %vm1061, %v1452, 0
        %v1538 = vsel %vm1061, %v1454, 0
        %v1541 = vsel %vm1061, %v1456, 0
        %v1544 = vsel %vm1061, %v1458, 0
        %v1547 = vsel %vm1061, %v1460, 0
        %v1550 = vsel %vm1061, %v1462, 0
        %v1553 = vsel %vm1061, %v1464, 0
        %v1556 = vsel %vm1061, %v1466, 0
        %v1559 = vsel %vm1061, %v1468, 0
        %v1562 = vsel %vm1061, %v1470, 0
        %v1565 = vsel %vm1061, %v1472, 0
        %v1568 = vsel %vm1061, %v1474, 0
        %v1571 = vsel %vm1061, %v1476, 0
        %1573 = vmatpush.msra.mxu0 0.0
        %1574 = vmatpush.msra.mxu0 0.0
        %1575 = vmatpush.msra.mxu0 0.0
        %1576 = vmatpush.msra.mxu0 0.0
        %1577 = vmatpush.msra.mxu0 0.0
        %1578 = vmatpush.msra.mxu0 0.0
        %1579 = vmatpush.msra.mxu0 0.0
        %1580 = vmatpush.msra.mxu0 0.0
        %1581 = vmatpush.msra.mxu0 %v1121
        %1582 = vmatpush.msra.mxu0 %v1120
        %1583 = vmatpush.msra.mxu0 %v1119
        %1584 = vmatpush.msra.mxu0 %v1118
        %1585 = vmatpush.msra.mxu0 %v1117
        %1586 = vmatpush.msra.mxu0 %v1116
        %1587 = vmatpush.msra.mxu0 %v1115
        %1588 = vmatpush.msra.mxu0 %v1114
        %1589 = vmatmul.f32.gmra.mxu0 %v1478
        %v1590 = vpop.f32.mrf.mxu0
        %v1591 = vadd.f32 0.0, %v1590
        %1592 = vmatmul.f32.gmra.mxu0 %v1481
        %v1593 = vpop.f32.mrf.mxu0
        %v1594 = vadd.f32 0.0, %v1593
        %1595 = vmatmul.f32.gmra.mxu0 %v1484
        %v1596 = vpop.f32.mrf.mxu0
        %v1597 = vadd.f32 0.0, %v1596
        %1598 = vmatmul.f32.gmra.mxu0 %v1487
        %v1599 = vpop.f32.mrf.mxu0
        %v1600 = vadd.f32 0.0, %v1599
        %1601 = vmatmul.f32.gmra.mxu0 %v1490
        %v1602 = vpop.f32.mrf.mxu0
        %v1603 = vadd.f32 0.0, %v1602
        %1604 = vmatmul.f32.gmra.mxu0 %v1493
        %v1605 = vpop.f32.mrf.mxu0
        %v1606 = vadd.f32 0.0, %v1605
        %1607 = vmatmul.f32.gmra.mxu0 %v1496
        %v1608 = vpop.f32.mrf.mxu0
        %v1609 = vadd.f32 0.0, %v1608
        %1610 = vmatmul.f32.gmra.mxu0 %v1499
        %v1611 = vpop.f32.mrf.mxu0
        %v1612 = vadd.f32 0.0, %v1611
        %1613 = vmatmul.f32.gmra.mxu0 %v1502
        %v1614 = vpop.f32.mrf.mxu0
        %v1615 = vadd.f32 0.0, %v1614
        %1616 = vmatmul.f32.gmra.mxu0 %v1505
        %v1617 = vpop.f32.mrf.mxu0
        %v1618 = vadd.f32 0.0, %v1617
        %1619 = vmatmul.f32.gmra.mxu0 %v1508
        %v1620 = vpop.f32.mrf.mxu0
        %v1621 = vadd.f32 0.0, %v1620
        %1622 = vmatmul.f32.gmra.mxu0 %v1511
        %v1623 = vpop.f32.mrf.mxu0
        %v1624 = vadd.f32 0.0, %v1623
        %1625 = vmatmul.f32.gmra.mxu0 %v1514
        %v1626 = vpop.f32.mrf.mxu0
        %v1627 = vadd.f32 0.0, %v1626
        %1628 = vmatmul.f32.gmra.mxu0 %v1517
        %v1629 = vpop.f32.mrf.mxu0
        %v1630 = vadd.f32 0.0, %v1629
        %1631 = vmatmul.f32.gmra.mxu0 %v1520
        %v1632 = vpop.f32.mrf.mxu0
        %v1633 = vadd.f32 0.0, %v1632
        %1634 = vmatmul.f32.gmra.mxu0 %v1523
        %v1635 = vpop.f32.mrf.mxu0
        %v1636 = vadd.f32 0.0, %v1635
        %1637 = vmatmul.f32.gmra.mxu0 %v1526
        %v1638 = vpop.f32.mrf.mxu0
        %v1639 = vadd.f32 0.0, %v1638
        %1640 = vmatmul.f32.gmra.mxu0 %v1529
        %v1641 = vpop.f32.mrf.mxu0
        %v1642 = vadd.f32 0.0, %v1641
        %1643 = vmatmul.f32.gmra.mxu0 %v1532
        %v1644 = vpop.f32.mrf.mxu0
        %v1645 = vadd.f32 0.0, %v1644
        %1646 = vmatmul.f32.gmra.mxu0 %v1535
        %v1647 = vpop.f32.mrf.mxu0
        %v1648 = vadd.f32 0.0, %v1647
        %1649 = vmatmul.f32.gmra.mxu0 %v1538
        %v1650 = vpop.f32.mrf.mxu0
        %v1651 = vadd.f32 0.0, %v1650
        %1652 = vmatmul.f32.gmra.mxu0 %v1541
        %v1653 = vpop.f32.mrf.mxu0
        %v1654 = vadd.f32 0.0, %v1653
        %1655 = vmatmul.f32.gmra.mxu0 %v1544
        %v1656 = vpop.f32.mrf.mxu0
        %v1657 = vadd.f32 0.0, %v1656
        %1658 = vmatmul.f32.gmra.mxu0 %v1547
        %v1659 = vpop.f32.mrf.mxu0
        %v1660 = vadd.f32 0.0, %v1659
        %1661 = vmatmul.f32.gmra.mxu0 %v1550
        %v1662 = vpop.f32.mrf.mxu0
        %v1663 = vadd.f32 0.0, %v1662
        %1664 = vmatmul.f32.gmra.mxu0 %v1553
        %v1665 = vpop.f32.mrf.mxu0
        %v1666 = vadd.f32 0.0, %v1665
        %1667 = vmatmul.f32.gmra.mxu0 %v1556
        %v1668 = vpop.f32.mrf.mxu0
        %v1669 = vadd.f32 0.0, %v1668
        %1670 = vmatmul.f32.gmra.mxu0 %v1559
        %v1671 = vpop.f32.mrf.mxu0
        %v1672 = vadd.f32 0.0, %v1671
        %1673 = vmatmul.f32.gmra.mxu0 %v1562
        %v1674 = vpop.f32.mrf.mxu0
        %v1675 = vadd.f32 0.0, %v1674
        %1676 = vmatmul.f32.gmra.mxu0 %v1565
        %v1677 = vpop.f32.mrf.mxu0
        %v1678 = vadd.f32 0.0, %v1677
        %1679 = vmatmul.f32.gmra.mxu0 %v1568
        %v1680 = vpop.f32.mrf.mxu0
        %v1681 = vadd.f32 0.0, %v1680
        %1682 = vmatmul.f32.gmra.mxu0 %v1571
        %v1683 = vpop.f32.mrf.mxu0
        %v1684 = vadd.f32 0.0, %v1683
        %1685 = vdwg.mxu0
        %v1686 = vrcp.pop %v1591
        %v1687 = vrcp.pop %v1594
        %v1688 = vrcp.pop %v1597
        %v1689 = vrcp.pop %v1600
        %v1690 = vrcp.pop %v1603
        %v1691 = vrcp.pop %v1606
        %v1692 = vrcp.pop %v1609
        %v1693 = vrcp.pop %v1612
        %v1694 = vrcp.pop %v1615
        %v1695 = vrcp.pop %v1618
        %v1696 = vrcp.pop %v1621
        %v1697 = vrcp.pop %v1624
        %v1698 = vrcp.pop %v1627
        %v1699 = vrcp.pop %v1630
        %v1700 = vrcp.pop %v1633
        %v1701 = vrcp.pop %v1636
        %v1702 = vrcp.pop %v1639
        %v1703 = vrcp.pop %v1642
        %v1704 = vrcp.pop %v1645
        %v1705 = vrcp.pop %v1648
        %v1706 = vrcp.pop %v1651
        %v1707 = vrcp.pop %v1654
        %v1708 = vrcp.pop %v1657
        %v1709 = vrcp.pop %v1660
        %v1710 = vrcp.pop %v1663
        %v1711 = vrcp.pop %v1666
        %v1712 = vrcp.pop %v1669
        %v1713 = vrcp.pop %v1672
        %v1714 = vrcp.pop %v1675
        %v1715 = vrcp.pop %v1678
        %v1716 = vrcp.pop %v1681
        %v1717 = vrcp.pop %v1684
        %vm1718 = vcmask 31744
        %v1720 = vsel %vm1718, %v1686, 0
        %v1723 = vsel %vm1718, %v1687, 0
        %v1726 = vsel %vm1718, %v1688, 0
        %v1729 = vsel %vm1718, %v1689, 0
        %v1732 = vsel %vm1718, %v1690, 0
        %v1735 = vsel %vm1718, %v1691, 0
        %v1738 = vsel %vm1718, %v1692, 0
        %v1741 = vsel %vm1718, %v1693, 0
        %v1744 = vsel %vm1718, %v1694, 0
        %v1747 = vsel %vm1718, %v1695, 0
        %v1750 = vsel %vm1718, %v1696, 0
        %v1753 = vsel %vm1718, %v1697, 0
        %v1756 = vsel %vm1718, %v1698, 0
        %v1759 = vsel %vm1718, %v1699, 0
        %v1762 = vsel %vm1718, %v1700, 0
        %v1765 = vsel %vm1718, %v1701, 0
        %v1768 = vsel %vm1718, %v1702, 0
        %v1771 = vsel %vm1718, %v1703, 0
        %v1774 = vsel %vm1718, %v1704, 0
        %v1777 = vsel %vm1718, %v1705, 0
        %v1780 = vsel %vm1718, %v1706, 0
        %v1783 = vsel %vm1718, %v1707, 0
        %v1786 = vsel %vm1718, %v1708, 0
        %v1789 = vsel %vm1718, %v1709, 0
        %v1792 = vsel %vm1718, %v1710, 0
        %v1795 = vsel %vm1718, %v1711, 0
        %v1798 = vsel %vm1718, %v1712, 0
        %v1801 = vsel %vm1718, %v1713, 0
        %v1804 = vsel %vm1718, %v1714, 0
        %v1807 = vsel %vm1718, %v1715, 0
        %v1810 = vsel %vm1718, %v1716, 0
        %v1813 = vsel %vm1718, %v1717, 0
        %vm1815 = vcmask 1043456
        %v1817 = vsel %vm1815, %v1122, 0
        %1819 = vmatpush.msra.mxu0 0.0
        %1820 = vmatpush.msra.mxu0 0.0
        %1821 = vmatpush.msra.mxu0 0.0
        %1822 = vmatpush.msra.mxu0 0.0
        %1823 = vmatpush.msra.mxu0 0.0
        %1824 = vmatpush.msra.mxu0 0.0
        %1825 = vmatpush.msra.mxu0 0.0
        %1826 = vmatpush.msra.mxu0 0.0
        %1827 = vmatpush.msra.mxu0 0.0
        %1828 = vmatpush.msra.mxu0 0.0
        %1829 = vmatpush.msra.mxu0 0.0
        %1830 = vmatpush.msra.mxu0 0.0
        %1831 = vmatpush.msra.mxu0 0.0
        %1832 = vmatpush.msra.mxu0 0.0
        %1833 = vmatpush.msra.mxu0 0.0
        %1834 = vmatpush.msra.mxu0 %v1817
        %1835 = vmatmul.f32.gmra.mxu0 %v1720
        %v1836 = vpop.f32.mrf.mxu0
        %v1837 = vadd.f32 0.0, %v1836
        %1838 = vmatmul.f32.gmra.mxu0 %v1723
        %v1839 = vpop.f32.mrf.mxu0
        %v1840 = vadd.f32 0.0, %v1839
        %1841 = vmatmul.f32.gmra.mxu0 %v1726
        %v1842 = vpop.f32.mrf.mxu0
        %v1843 = vadd.f32 0.0, %v1842
        %1844 = vmatmul.f32.gmra.mxu0 %v1729
        %v1845 = vpop.f32.mrf.mxu0
        %v1846 = vadd.f32 0.0, %v1845
        %1847 = vmatmul.f32.gmra.mxu0 %v1732
        %v1848 = vpop.f32.mrf.mxu0
        %v1849 = vadd.f32 0.0, %v1848
        %1850 = vmatmul.f32.gmra.mxu0 %v1735
        %v1851 = vpop.f32.mrf.mxu0
        %v1852 = vadd.f32 0.0, %v1851
        %1853 = vmatmul.f32.gmra.mxu0 %v1738
        %v1854 = vpop.f32.mrf.mxu0
        %v1855 = vadd.f32 0.0, %v1854
        %1856 = vmatmul.f32.gmra.mxu0 %v1741
        %v1857 = vpop.f32.mrf.mxu0
        %v1858 = vadd.f32 0.0, %v1857
        %1859 = vmatmul.f32.gmra.mxu0 %v1744
        %v1860 = vpop.f32.mrf.mxu0
        %v1861 = vadd.f32 0.0, %v1860
        %1862 = vmatmul.f32.gmra.mxu0 %v1747
        %v1863 = vpop.f32.mrf.mxu0
        %v1864 = vadd.f32 0.0, %v1863
        %1865 = vmatmul.f32.gmra.mxu0 %v1750
        %v1866 = vpop.f32.mrf.mxu0
        %v1867 = vadd.f32 0.0, %v1866
        %1868 = vmatmul.f32.gmra.mxu0 %v1753
        %v1869 = vpop.f32.mrf.mxu0
        %v1870 = vadd.f32 0.0, %v1869
        %1871 = vmatmul.f32.gmra.mxu0 %v1756
        %v1872 = vpop.f32.mrf.mxu0
        %v1873 = vadd.f32 0.0, %v1872
        %1874 = vmatmul.f32.gmra.mxu0 %v1759
        %v1875 = vpop.f32.mrf.mxu0
        %v1876 = vadd.f32 0.0, %v1875
        %1877 = vmatmul.f32.gmra.mxu0 %v1762
        %v1878 = vpop.f32.mrf.mxu0
        %v1879 = vadd.f32 0.0, %v1878
        %1880 = vmatmul.f32.gmra.mxu0 %v1765
        %v1881 = vpop.f32.mrf.mxu0
        %v1882 = vadd.f32 0.0, %v1881
        %1883 = vmatmul.f32.gmra.mxu0 %v1768
        %v1884 = vpop.f32.mrf.mxu0
        %v1885 = vadd.f32 0.0, %v1884
        %1886 = vmatmul.f32.gmra.mxu0 %v1771
        %v1887 = vpop.f32.mrf.mxu0
        %v1888 = vadd.f32 0.0, %v1887
        %1889 = vmatmul.f32.gmra.mxu0 %v1774
        %v1890 = vpop.f32.mrf.mxu0
        %v1891 = vadd.f32 0.0, %v1890
        %1892 = vmatmul.f32.gmra.mxu0 %v1777
        %v1893 = vpop.f32.mrf.mxu0
        %v1894 = vadd.f32 0.0, %v1893
        %1895 = vmatmul.f32.gmra.mxu0 %v1780
        %v1896 = vpop.f32.mrf.mxu0
        %v1897 = vadd.f32 0.0, %v1896
        %1898 = vmatmul.f32.gmra.mxu0 %v1783
        %v1899 = vpop.f32.mrf.mxu0
        %v1900 = vadd.f32 0.0, %v1899
        %1901 = vmatmul.f32.gmra.mxu0 %v1786
        %v1902 = vpop.f32.mrf.mxu0
        %v1903 = vadd.f32 0.0, %v1902
        %1904 = vmatmul.f32.gmra.mxu0 %v1789
        %v1905 = vpop.f32.mrf.mxu0
        %v1906 = vadd.f32 0.0, %v1905
        %1907 = vmatmul.f32.gmra.mxu0 %v1792
        %v1908 = vpop.f32.mrf.mxu0
        %v1909 = vadd.f32 0.0, %v1908
        %1910 = vmatmul.f32.gmra.mxu0 %v1795
        %v1911 = vpop.f32.mrf.mxu0
        %v1912 = vadd.f32 0.0, %v1911
        %1913 = vmatmul.f32.gmra.mxu0 %v1798
        %v1914 = vpop.f32.mrf.mxu0
        %v1915 = vadd.f32 0.0, %v1914
        %1916 = vmatmul.f32.gmra.mxu0 %v1801
        %v1917 = vpop.f32.mrf.mxu0
        %v1918 = vadd.f32 0.0, %v1917
        %1919 = vmatmul.f32.gmra.mxu0 %v1804
        %v1920 = vpop.f32.mrf.mxu0
        %v1921 = vadd.f32 0.0, %v1920
        %1922 = vmatmul.f32.gmra.mxu0 %v1807
        %v1923 = vpop.f32.mrf.mxu0
        %v1924 = vadd.f32 0.0, %v1923
        %1925 = vmatmul.f32.gmra.mxu0 %v1810
        %v1926 = vpop.f32.mrf.mxu0
        %v1927 = vadd.f32 0.0, %v1926
        %1928 = vmatmul.f32.gmra.mxu0 %v1813
        %v1929 = vpop.f32.mrf.mxu0
        %v1930 = vadd.f32 0.0, %v1929
        %1931 = vdwg.mxu0
        %v1932 = vpack.c.bf16 %v1416, %v1414
        %v1933 = vpack.c.bf16 %v1420, %v1418
        %v1934 = vpack.c.bf16 %v1424, %v1422
        %v1935 = vpack.c.bf16 %v1428, %v1426
        %v1936 = vpack.c.bf16 %v1432, %v1430
        %v1937 = vpack.c.bf16 %v1436, %v1434
        %v1938 = vpack.c.bf16 %v1440, %v1438
        %v1939 = vpack.c.bf16 %v1444, %v1442
        %v1940 = vpack.c.bf16 %v1448, %v1446
        %v1941 = vpack.c.bf16 %v1452, %v1450
        %v1942 = vpack.c.bf16 %v1456, %v1454
        %v1943 = vpack.c.bf16 %v1460, %v1458
        %v1944 = vpack.c.bf16 %v1464, %v1462
        %v1945 = vpack.c.bf16 %v1468, %v1466
        %v1946 = vpack.c.bf16 %v1472, %v1470
        %v1947 = vpack.c.bf16 %v1476, %v1474
        %v1949 = vsel %vm1061, %v1932, 0
        %v1952 = vsel %vm1061, %v1933, 0
        %v1955 = vsel %vm1061, %v1934, 0
        %v1958 = vsel %vm1061, %v1935, 0
        %v1961 = vsel %vm1061, %v1936, 0
        %v1964 = vsel %vm1061, %v1937, 0
        %v1967 = vsel %vm1061, %v1938, 0
        %v1970 = vsel %vm1061, %v1939, 0
        %v1973 = vsel %vm1061, %v1940, 0
        %v1976 = vsel %vm1061, %v1941, 0
        %v1979 = vsel %vm1061, %v1942, 0
        %v1982 = vsel %vm1061, %v1943, 0
        %v1985 = vsel %vm1061, %v1944, 0
        %v1988 = vsel %vm1061, %v1945, 0
        %v1991 = vsel %vm1061, %v1946, 0
        %v1994 = vsel %vm1061, %v1947, 0
        %1996 = vmatpush.bf16.msra.mxu0 0
        %1997 = vmatpush.bf16.msra.mxu0 0
        %1998 = vmatpush.bf16.msra.mxu0 0
        %1999 = vmatpush.bf16.msra.mxu0 0
        %2000 = vmatpush.bf16.msra.mxu0 %v1192
        %2001 = vmatpush.bf16.msra.mxu0 %v1191
        %2002 = vmatpush.bf16.msra.mxu0 %v1190
        %2003 = vmatpush.bf16.msra.mxu0 %v1189
        %2004 = vmatmul.bf16.gmra.mxu0 %v1949
        %v2005 = vpop.f32.mrf.mxu0
        %v2006 = vadd.f32 0.0, %v2005
        %v2007 = vpop.f32.mrf.mxu0
        %v2008 = vadd.f32 0.0, %v2007
        %2009 = vmatmul.bf16.gmra.mxu0 %v1952
        %v2010 = vpop.f32.mrf.mxu0
        %v2011 = vadd.f32 0.0, %v2010
        %v2012 = vpop.f32.mrf.mxu0
        %v2013 = vadd.f32 0.0, %v2012
        %2014 = vmatmul.bf16.gmra.mxu0 %v1955
        %v2015 = vpop.f32.mrf.mxu0
        %v2016 = vadd.f32 0.0, %v2015
        %v2017 = vpop.f32.mrf.mxu0
        %v2018 = vadd.f32 0.0, %v2017
        %2019 = vmatmul.bf16.gmra.mxu0 %v1958
        %v2020 = vpop.f32.mrf.mxu0
        %v2021 = vadd.f32 0.0, %v2020
        %v2022 = vpop.f32.mrf.mxu0
        %v2023 = vadd.f32 0.0, %v2022
        %2024 = vmatmul.bf16.gmra.mxu0 %v1961
        %v2025 = vpop.f32.mrf.mxu0
        %v2026 = vadd.f32 0.0, %v2025
        %v2027 = vpop.f32.mrf.mxu0
        %v2028 = vadd.f32 0.0, %v2027
        %2029 = vmatmul.bf16.gmra.mxu0 %v1964
        %v2030 = vpop.f32.mrf.mxu0
        %v2031 = vadd.f32 0.0, %v2030
        %v2032 = vpop.f32.mrf.mxu0
        %v2033 = vadd.f32 0.0, %v2032
        %2034 = vmatmul.bf16.gmra.mxu0 %v1967
        %v2035 = vpop.f32.mrf.mxu0
        %v2036 = vadd.f32 0.0, %v2035
        %v2037 = vpop.f32.mrf.mxu0
        %v2038 = vadd.f32 0.0, %v2037
        %2039 = vmatmul.bf16.gmra.mxu0 %v1970
        %v2040 = vpop.f32.mrf.mxu0
        %v2041 = vadd.f32 0.0, %v2040
        %v2042 = vpop.f32.mrf.mxu0
        %v2043 = vadd.f32 0.0, %v2042
        %2044 = vmatmul.bf16.gmra.mxu0 %v1973
        %v2045 = vpop.f32.mrf.mxu0
        %v2046 = vadd.f32 0.0, %v2045
        %v2047 = vpop.f32.mrf.mxu0
        %v2048 = vadd.f32 0.0, %v2047
        %2049 = vmatmul.bf16.gmra.mxu0 %v1976
        %v2050 = vpop.f32.mrf.mxu0
        %v2051 = vadd.f32 0.0, %v2050
        %v2052 = vpop.f32.mrf.mxu0
        %v2053 = vadd.f32 0.0, %v2052
        %2054 = vmatmul.bf16.gmra.mxu0 %v1979
        %v2055 = vpop.f32.mrf.mxu0
        %v2056 = vadd.f32 0.0, %v2055
        %v2057 = vpop.f32.mrf.mxu0
        %v2058 = vadd.f32 0.0, %v2057
        %2059 = vmatmul.bf16.gmra.mxu0 %v1982
        %v2060 = vpop.f32.mrf.mxu0
        %v2061 = vadd.f32 0.0, %v2060
        %v2062 = vpop.f32.mrf.mxu0
        %v2063 = vadd.f32 0.0, %v2062
        %2064 = vmatmul.bf16.gmra.mxu0 %v1985
        %v2065 = vpop.f32.mrf.mxu0
        %v2066 = vadd.f32 0.0, %v2065
        %v2067 = vpop.f32.mrf.mxu0
        %v2068 = vadd.f32 0.0, %v2067
        %2069 = vmatmul.bf16.gmra.mxu0 %v1988
        %v2070 = vpop.f32.mrf.mxu0
        %v2071 = vadd.f32 0.0, %v2070
        %v2072 = vpop.f32.mrf.mxu0
        %v2073 = vadd.f32 0.0, %v2072
        %2074 = vmatmul.bf16.gmra.mxu0 %v1991
        %v2075 = vpop.f32.mrf.mxu0
        %v2076 = vadd.f32 0.0, %v2075
        %v2077 = vpop.f32.mrf.mxu0
        %v2078 = vadd.f32 0.0, %v2077
        %2079 = vmatmul.bf16.gmra.mxu0 %v1994
        %v2080 = vpop.f32.mrf.mxu0
        %v2081 = vadd.f32 0.0, %v2080
        %v2082 = vpop.f32.mrf.mxu0
        %v2083 = vadd.f32 0.0, %v2082
        %2084 = vdwg.mxu0
        %v2085 = vmul.f32 %v2006, %v1837
        %v2086 = vmul.f32 %v2008, %v1840
        %v2087 = vmul.f32 %v2011, %v1843
        %v2088 = vmul.f32 %v2013, %v1846
        %v2089 = vmul.f32 %v2016, %v1849
        %v2090 = vmul.f32 %v2018, %v1852
        %v2091 = vmul.f32 %v2021, %v1855
        %v2092 = vmul.f32 %v2023, %v1858
        %v2093 = vmul.f32 %v2026, %v1861
        %v2094 = vmul.f32 %v2028, %v1864
        %v2095 = vmul.f32 %v2031, %v1867
        %v2096 = vmul.f32 %v2033, %v1870
        %v2097 = vmul.f32 %v2036, %v1873
        %v2098 = vmul.f32 %v2038, %v1876
        %v2099 = vmul.f32 %v2041, %v1879
        %v2100 = vmul.f32 %v2043, %v1882
        %v2101 = vmul.f32 %v2046, %v1885
        %v2102 = vmul.f32 %v2048, %v1888
        %v2103 = vmul.f32 %v2051, %v1891
        %v2104 = vmul.f32 %v2053, %v1894
        %v2105 = vmul.f32 %v2056, %v1897
        %v2106 = vmul.f32 %v2058, %v1900
        %v2107 = vmul.f32 %v2061, %v1903
        %v2108 = vmul.f32 %v2063, %v1906
        %v2109 = vmul.f32 %v2066, %v1909
        %v2110 = vmul.f32 %v2068, %v1912
        %v2111 = vmul.f32 %v2071, %v1915
        %v2112 = vmul.f32 %v2073, %v1918
        %v2113 = vmul.f32 %v2076, %v1921
        %v2114 = vmul.f32 %v2078, %v1924
        %v2115 = vmul.f32 %v2081, %v1927
        %v2116 = vmul.f32 %v2083, %v1930
        %v2117 = vpack.c.bf16 %v916, %v914
        %v2118 = vpack.c.bf16 %v921, %v919
        %v2119 = vpack.c.bf16 %v926, %v924
        %v2120 = vpack.c.bf16 %v931, %v929
        %v2121 = vpack.c.bf16 %v936, %v934
        %v2122 = vpack.c.bf16 %v941, %v939
        %v2123 = vpack.c.bf16 %v946, %v944
        %v2124 = vpack.c.bf16 %v951, %v949
        %v2125 = vpack.c.bf16 %v956, %v954
        %v2126 = vpack.c.bf16 %v961, %v959
        %v2127 = vpack.c.bf16 %v966, %v964
        %v2128 = vpack.c.bf16 %v971, %v969
        %v2129 = vpack.c.bf16 %v976, %v974
        %v2130 = vpack.c.bf16 %v981, %v979
        %v2131 = vpack.c.bf16 %v986, %v984
        %v2132 = vpack.c.bf16 %v991, %v989
        %v2133 = vpack.c.bf16 %v1083, %v1083
        %v2134 = vpack.c.bf16 %v1085, %v1085
        %v2135 = vpack.c.bf16 %v1102, %v1102
        %v2136 = vpack.c.bf16 %v1104, %v1104
        %v2139 = vunpack.c.l.b16 %v2133
        %v2140 = vunpack.c.l.b16 %v2134
        %v2141 = vpack.c.b16 %v2140, %v2139
        %v2143 = vunpack.c.l.bf16 %v2141
        %v2144 = vunpack.c.h.bf16 %v2141
        %v2145 = vmul.f32 %v2143, %v1153
        %v2146 = vmul.f32 %v2144, %v1154
        %v2147 = vmul.f32 %v2143, %v1155
        %v2148 = vmul.f32 %v2144, %v1156
        %v2149 = vmul.f32 %v2143, %v1157
        %v2150 = vmul.f32 %v2144, %v1158
        %v2151 = vmul.f32 %v2143, %v1159
        %v2152 = vmul.f32 %v2144, %v1160
        %v2153 = vpack.c.bf16 %v2146, %v2145
        %v2154 = vpack.c.bf16 %v2148, %v2147
        %v2155 = vpack.c.bf16 %v2150, %v2149
        %v2156 = vpack.c.bf16 %v2152, %v2151
        %v2159 = vunpack.c.l.b16 %v2135
        %v2160 = vunpack.c.l.b16 %v2136
        %v2161 = vpack.c.b16 %v2160, %v2159
        %v2163 = vunpack.c.l.bf16 %v2161
        %v2164 = vunpack.c.h.bf16 %v2161
        %v2165 = vmul.f32 %v2163, %v1153
        %v2166 = vmul.f32 %v2164, %v1154
        %v2167 = vmul.f32 %v2163, %v1155
        %v2168 = vmul.f32 %v2164, %v1156
        %v2169 = vmul.f32 %v2163, %v1157
        %v2170 = vmul.f32 %v2164, %v1158
        %v2171 = vmul.f32 %v2163, %v1159
        %v2172 = vmul.f32 %v2164, %v1160
        %v2173 = vpack.c.bf16 %v2166, %v2165
        %v2174 = vpack.c.bf16 %v2168, %v2167
        %v2175 = vpack.c.bf16 %v2170, %v2169
        %v2176 = vpack.c.bf16 %v2172, %v2171
        %v2178 = vperm.slane %v1124, 0
        %2180 = vmatpush.bf16.xpose.msra.mxu0 0
        %2181 = vmatpush.bf16.xpose.msra.mxu0 0
        %2182 = vmatpush.bf16.xpose.msra.mxu0 0
        %2183 = vmatpush.bf16.xpose.msra.mxu0 0
        %2184 = vmatpush.bf16.xpose.msra.mxu0 %v2156
        %2185 = vmatpush.bf16.xpose.msra.mxu0 %v2155
        %2186 = vmatpush.bf16.xpose.msra.mxu0 %v2154
        %2187 = vmatpush.bf16.xpose.msra.mxu0 %v2153
        %2188 = vmatmul.bf16.gmra.mxu0 %v2117
        %v2189 = vpop.f32.mrf.mxu0
        %v2190 = vadd.f32 %v2178, %v2189
        %v2191 = vpop.f32.mrf.mxu0
        %v2192 = vadd.f32 %v2178, %v2191
        %2193 = vmatmul.bf16.gmra.mxu0 %v2118
        %v2194 = vpop.f32.mrf.mxu0
        %v2195 = vadd.f32 %v2178, %v2194
        %v2196 = vpop.f32.mrf.mxu0
        %v2197 = vadd.f32 %v2178, %v2196
        %2198 = vmatmul.bf16.gmra.mxu0 %v2119
        %v2199 = vpop.f32.mrf.mxu0
        %v2200 = vadd.f32 %v2178, %v2199
        %v2201 = vpop.f32.mrf.mxu0
        %v2202 = vadd.f32 %v2178, %v2201
        %2203 = vmatmul.bf16.gmra.mxu0 %v2120
        %v2204 = vpop.f32.mrf.mxu0
        %v2205 = vadd.f32 %v2178, %v2204
        %v2206 = vpop.f32.mrf.mxu0
        %v2207 = vadd.f32 %v2178, %v2206
        %2208 = vmatmul.bf16.gmra.mxu0 %v2121
        %v2209 = vpop.f32.mrf.mxu0
        %v2210 = vadd.f32 %v2178, %v2209
        %v2211 = vpop.f32.mrf.mxu0
        %v2212 = vadd.f32 %v2178, %v2211
        %2213 = vmatmul.bf16.gmra.mxu0 %v2122
        %v2214 = vpop.f32.mrf.mxu0
        %v2215 = vadd.f32 %v2178, %v2214
        %v2216 = vpop.f32.mrf.mxu0
        %v2217 = vadd.f32 %v2178, %v2216
        %2218 = vmatmul.bf16.gmra.mxu0 %v2123
        %v2219 = vpop.f32.mrf.mxu0
        %v2220 = vadd.f32 %v2178, %v2219
        %v2221 = vpop.f32.mrf.mxu0
        %v2222 = vadd.f32 %v2178, %v2221
        %2223 = vmatmul.bf16.gmra.mxu0 %v2124
        %v2224 = vpop.f32.mrf.mxu0
        %v2225 = vadd.f32 %v2178, %v2224
        %v2226 = vpop.f32.mrf.mxu0
        %v2227 = vadd.f32 %v2178, %v2226
        %2228 = vmatmul.bf16.gmra.mxu0 %v2125
        %v2229 = vpop.f32.mrf.mxu0
        %v2230 = vadd.f32 %v2178, %v2229
        %v2231 = vpop.f32.mrf.mxu0
        %v2232 = vadd.f32 %v2178, %v2231
        %2233 = vmatmul.bf16.gmra.mxu0 %v2126
        %v2234 = vpop.f32.mrf.mxu0
        %v2235 = vadd.f32 %v2178, %v2234
        %v2236 = vpop.f32.mrf.mxu0
        %v2237 = vadd.f32 %v2178, %v2236
        %2238 = vmatmul.bf16.gmra.mxu0 %v2127
        %v2239 = vpop.f32.mrf.mxu0
        %v2240 = vadd.f32 %v2178, %v2239
        %v2241 = vpop.f32.mrf.mxu0
        %v2242 = vadd.f32 %v2178, %v2241
        %2243 = vmatmul.bf16.gmra.mxu0 %v2128
        %v2244 = vpop.f32.mrf.mxu0
        %v2245 = vadd.f32 %v2178, %v2244
        %v2246 = vpop.f32.mrf.mxu0
        %v2247 = vadd.f32 %v2178, %v2246
        %2248 = vmatmul.bf16.gmra.mxu0 %v2129
        %v2249 = vpop.f32.mrf.mxu0
        %v2250 = vadd.f32 %v2178, %v2249
        %v2251 = vpop.f32.mrf.mxu0
        %v2252 = vadd.f32 %v2178, %v2251
        %2253 = vmatmul.bf16.gmra.mxu0 %v2130
        %v2254 = vpop.f32.mrf.mxu0
        %v2255 = vadd.f32 %v2178, %v2254
        %v2256 = vpop.f32.mrf.mxu0
        %v2257 = vadd.f32 %v2178, %v2256
        %2258 = vmatmul.bf16.gmra.mxu0 %v2131
        %v2259 = vpop.f32.mrf.mxu0
        %v2260 = vadd.f32 %v2178, %v2259
        %v2261 = vpop.f32.mrf.mxu0
        %v2262 = vadd.f32 %v2178, %v2261
        %2263 = vmatmul.bf16.gmra.mxu0 %v2132
        %v2264 = vpop.f32.mrf.mxu0
        %v2265 = vadd.f32 %v2178, %v2264
        %v2266 = vpop.f32.mrf.mxu0
        %v2267 = vadd.f32 %v2178, %v2266
        %2268 = vdwg.mxu0
        %v2269 = vsel %vm1061, %v2190, -inf
        %2270 = vmax.xlane.f32.xlu0 %v2269
        %v2271 = vpop.xlane.xlu0 %2270
        %v2272 = vsel %vm1061, %v2192, -inf
        %2273 = vmax.xlane.f32.xlu0 %v2272
        %v2274 = vpop.xlane.xlu0 %2273
        %v2275 = vsel %vm1061, %v2195, -inf
        %2276 = vmax.xlane.f32.xlu0 %v2275
        %v2277 = vpop.xlane.xlu0 %2276
        %v2278 = vsel %vm1061, %v2197, -inf
        %2279 = vmax.xlane.f32.xlu0 %v2278
        %v2280 = vpop.xlane.xlu0 %2279
        %v2281 = vsel %vm1061, %v2200, -inf
        %2282 = vmax.xlane.f32.xlu0 %v2281
        %v2283 = vpop.xlane.xlu0 %2282
        %v2284 = vsel %vm1061, %v2202, -inf
        %2285 = vmax.xlane.f32.xlu0 %v2284
        %v2286 = vpop.xlane.xlu0 %2285
        %v2287 = vsel %vm1061, %v2205, -inf
        %2288 = vmax.xlane.f32.xlu0 %v2287
        %v2289 = vpop.xlane.xlu0 %2288
        %v2290 = vsel %vm1061, %v2207, -inf
        %2291 = vmax.xlane.f32.xlu0 %v2290
        %v2292 = vpop.xlane.xlu0 %2291
        %v2293 = vsel %vm1061, %v2210, -inf
        %2294 = vmax.xlane.f32.xlu0 %v2293
        %v2295 = vpop.xlane.xlu0 %2294
        %v2296 = vsel %vm1061, %v2212, -inf
        %2297 = vmax.xlane.f32.xlu0 %v2296
        %v2298 = vpop.xlane.xlu0 %2297
        %v2299 = vsel %vm1061, %v2215, -inf
        %2300 = vmax.xlane.f32.xlu0 %v2299
        %v2301 = vpop.xlane.xlu0 %2300
        %v2302 = vsel %vm1061, %v2217, -inf
        %2303 = vmax.xlane.f32.xlu0 %v2302
        %v2304 = vpop.xlane.xlu0 %2303
        %v2305 = vsel %vm1061, %v2220, -inf
        %2306 = vmax.xlane.f32.xlu0 %v2305
        %v2307 = vpop.xlane.xlu0 %2306
        %v2308 = vsel %vm1061, %v2222, -inf
        %2309 = vmax.xlane.f32.xlu0 %v2308
        %v2310 = vpop.xlane.xlu0 %2309
        %v2311 = vsel %vm1061, %v2225, -inf
        %2312 = vmax.xlane.f32.xlu0 %v2311
        %v2313 = vpop.xlane.xlu0 %2312
        %v2314 = vsel %vm1061, %v2227, -inf
        %2315 = vmax.xlane.f32.xlu0 %v2314
        %v2316 = vpop.xlane.xlu0 %2315
        %v2317 = vsel %vm1061, %v2230, -inf
        %2318 = vmax.xlane.f32.xlu0 %v2317
        %v2319 = vpop.xlane.xlu0 %2318
        %v2320 = vsel %vm1061, %v2232, -inf
        %2321 = vmax.xlane.f32.xlu0 %v2320
        %v2322 = vpop.xlane.xlu0 %2321
        %v2323 = vsel %vm1061, %v2235, -inf
        %2324 = vmax.xlane.f32.xlu0 %v2323
        %v2325 = vpop.xlane.xlu0 %2324
        %v2326 = vsel %vm1061, %v2237, -inf
        %2327 = vmax.xlane.f32.xlu0 %v2326
        %v2328 = vpop.xlane.xlu0 %2327
        %v2329 = vsel %vm1061, %v2240, -inf
        %2330 = vmax.xlane.f32.xlu0 %v2329
        %v2331 = vpop.xlane.xlu0 %2330
        %v2332 = vsel %vm1061, %v2242, -inf
        %2333 = vmax.xlane.f32.xlu0 %v2332
        %v2334 = vpop.xlane.xlu0 %2333
        %v2335 = vsel %vm1061, %v2245, -inf
        %2336 = vmax.xlane.f32.xlu0 %v2335
        %v2337 = vpop.xlane.xlu0 %2336
        %v2338 = vsel %vm1061, %v2247, -inf
        %2339 = vmax.xlane.f32.xlu0 %v2338
        %v2340 = vpop.xlane.xlu0 %2339
        %v2341 = vsel %vm1061, %v2250, -inf
        %2342 = vmax.xlane.f32.xlu0 %v2341
        %v2343 = vpop.xlane.xlu0 %2342
        %v2344 = vsel %vm1061, %v2252, -inf
        %2345 = vmax.xlane.f32.xlu0 %v2344
        %v2346 = vpop.xlane.xlu0 %2345
        %v2347 = vsel %vm1061, %v2255, -inf
        %2348 = vmax.xlane.f32.xlu0 %v2347
        %v2349 = vpop.xlane.xlu0 %2348
        %v2350 = vsel %vm1061, %v2257, -inf
        %2351 = vmax.xlane.f32.xlu0 %v2350
        %v2352 = vpop.xlane.xlu0 %2351
        %v2353 = vsel %vm1061, %v2260, -inf
        %2354 = vmax.xlane.f32.xlu0 %v2353
        %v2355 = vpop.xlane.xlu0 %2354
        %v2356 = vsel %vm1061, %v2262, -inf
        %2357 = vmax.xlane.f32.xlu0 %v2356
        %v2358 = vpop.xlane.xlu0 %2357
        %v2359 = vsel %vm1061, %v2265, -inf
        %2360 = vmax.xlane.f32.xlu0 %v2359
        %v2361 = vpop.xlane.xlu0 %2360
        %v2362 = vsel %vm1061, %v2267, -inf
        %2363 = vmax.xlane.f32.xlu0 %v2362
        %v2364 = vpop.xlane.xlu0 %2363
        %v2365 = vsub.f32 %v2190, %v2271
        %v2366 = vsub.f32 %v2192, %v2274
        %v2367 = vsub.f32 %v2195, %v2277
        %v2368 = vsub.f32 %v2197, %v2280
        %v2369 = vsub.f32 %v2200, %v2283
        %v2370 = vsub.f32 %v2202, %v2286
        %v2371 = vsub.f32 %v2205, %v2289
        %v2372 = vsub.f32 %v2207, %v2292
        %v2373 = vsub.f32 %v2210, %v2295
        %v2374 = vsub.f32 %v2212, %v2298
        %v2375 = vsub.f32 %v2215, %v2301
        %v2376 = vsub.f32 %v2217, %v2304
        %v2377 = vsub.f32 %v2220, %v2307
        %v2378 = vsub.f32 %v2222, %v2310
        %v2379 = vsub.f32 %v2225, %v2313
        %v2380 = vsub.f32 %v2227, %v2316
        %v2381 = vsub.f32 %v2230, %v2319
        %v2382 = vsub.f32 %v2232, %v2322
        %v2383 = vsub.f32 %v2235, %v2325
        %v2384 = vsub.f32 %v2237, %v2328
        %v2385 = vsub.f32 %v2240, %v2331
        %v2386 = vsub.f32 %v2242, %v2334
        %v2387 = vsub.f32 %v2245, %v2337
        %v2388 = vsub.f32 %v2247, %v2340
        %v2389 = vsub.f32 %v2250, %v2343
        %v2390 = vsub.f32 %v2252, %v2346
        %v2391 = vsub.f32 %v2255, %v2349
        %v2392 = vsub.f32 %v2257, %v2352
        %v2393 = vsub.f32 %v2260, %v2355
        %v2394 = vsub.f32 %v2262, %v2358
        %v2395 = vsub.f32 %v2265, %v2361
        %v2396 = vsub.f32 %v2267, %v2364
        %v2397 = vmul.f32 %v2365, 1.442695
        %v2398 = vpow.pop %v2397
        %v2399 = vmul.f32 %v2366, 1.442695
        %v2400 = vpow.pop %v2399
        %v2401 = vmul.f32 %v2367, 1.442695
        %v2402 = vpow.pop %v2401
        %v2403 = vmul.f32 %v2368, 1.442695
        %v2404 = vpow.pop %v2403
        %v2405 = vmul.f32 %v2369, 1.442695
        %v2406 = vpow.pop %v2405
        %v2407 = vmul.f32 %v2370, 1.442695
        %v2408 = vpow.pop %v2407
        %v2409 = vmul.f32 %v2371, 1.442695
        %v2410 = vpow.pop %v2409
        %v2411 = vmul.f32 %v2372, 1.442695
        %v2412 = vpow.pop %v2411
        %v2413 = vmul.f32 %v2373, 1.442695
        %v2414 = vpow.pop %v2413
        %v2415 = vmul.f32 %v2374, 1.442695
        %v2416 = vpow.pop %v2415
        %v2417 = vmul.f32 %v2375, 1.442695
        %v2418 = vpow.pop %v2417
        %v2419 = vmul.f32 %v2376, 1.442695
        %v2420 = vpow.pop %v2419
        %v2421 = vmul.f32 %v2377, 1.442695
        %v2422 = vpow.pop %v2421
        %v2423 = vmul.f32 %v2378, 1.442695
        %v2424 = vpow.pop %v2423
        %v2425 = vmul.f32 %v2379, 1.442695
        %v2426 = vpow.pop %v2425
        %v2427 = vmul.f32 %v2380, 1.442695
        %v2428 = vpow.pop %v2427
        %v2429 = vmul.f32 %v2381, 1.442695
        %v2430 = vpow.pop %v2429
        %v2431 = vmul.f32 %v2382, 1.442695
        %v2432 = vpow.pop %v2431
        %v2433 = vmul.f32 %v2383, 1.442695
        %v2434 = vpow.pop %v2433
        %v2435 = vmul.f32 %v2384, 1.442695
        %v2436 = vpow.pop %v2435
        %v2437 = vmul.f32 %v2385, 1.442695
        %v2438 = vpow.pop %v2437
        %v2439 = vmul.f32 %v2386, 1.442695
        %v2440 = vpow.pop %v2439
        %v2441 = vmul.f32 %v2387, 1.442695
        %v2442 = vpow.pop %v2441
        %v2443 = vmul.f32 %v2388, 1.442695
        %v2444 = vpow.pop %v2443
        %v2445 = vmul.f32 %v2389, 1.442695
        %v2446 = vpow.pop %v2445
        %v2447 = vmul.f32 %v2390, 1.442695
        %v2448 = vpow.pop %v2447
        %v2449 = vmul.f32 %v2391, 1.442695
        %v2450 = vpow.pop %v2449
        %v2451 = vmul.f32 %v2392, 1.442695
        %v2452 = vpow.pop %v2451
        %v2453 = vmul.f32 %v2393, 1.442695
        %v2454 = vpow.pop %v2453
        %v2455 = vmul.f32 %v2394, 1.442695
        %v2456 = vpow.pop %v2455
        %v2457 = vmul.f32 %v2395, 1.442695
        %v2458 = vpow.pop %v2457
        %v2459 = vmul.f32 %v2396, 1.442695
        %v2460 = vpow.pop %v2459
        %v2462 = vsel %vm1061, %v2398, 0
        %v2465 = vsel %vm1061, %v2400, 0
        %v2468 = vsel %vm1061, %v2402, 0
        %v2471 = vsel %vm1061, %v2404, 0
        %v2474 = vsel %vm1061, %v2406, 0
        %v2477 = vsel %vm1061, %v2408, 0
        %v2480 = vsel %vm1061, %v2410, 0
        %v2483 = vsel %vm1061, %v2412, 0
        %v2486 = vsel %vm1061, %v2414, 0
        %v2489 = vsel %vm1061, %v2416, 0
        %v2492 = vsel %vm1061, %v2418, 0
        %v2495 = vsel %vm1061, %v2420, 0
        %v2498 = vsel %vm1061, %v2422, 0
        %v2501 = vsel %vm1061, %v2424, 0
        %v2504 = vsel %vm1061, %v2426, 0
        %v2507 = vsel %vm1061, %v2428, 0
        %v2510 = vsel %vm1061, %v2430, 0
        %v2513 = vsel %vm1061, %v2432, 0
        %v2516 = vsel %vm1061, %v2434, 0
        %v2519 = vsel %vm1061, %v2436, 0
        %v2522 = vsel %vm1061, %v2438, 0
        %v2525 = vsel %vm1061, %v2440, 0
        %v2528 = vsel %vm1061, %v2442, 0
        %v2531 = vsel %vm1061, %v2444, 0
        %v2534 = vsel %vm1061, %v2446, 0
        %v2537 = vsel %vm1061, %v2448, 0
        %v2540 = vsel %vm1061, %v2450, 0
        %v2543 = vsel %vm1061, %v2452, 0
        %v2546 = vsel %vm1061, %v2454, 0
        %v2549 = vsel %vm1061, %v2456, 0
        %v2552 = vsel %vm1061, %v2458, 0
        %v2555 = vsel %vm1061, %v2460, 0
        %2557 = vmatpush.msra.mxu0 0.0
        %2558 = vmatpush.msra.mxu0 0.0
        %2559 = vmatpush.msra.mxu0 0.0
        %2560 = vmatpush.msra.mxu0 0.0
        %2561 = vmatpush.msra.mxu0 0.0
        %2562 = vmatpush.msra.mxu0 0.0
        %2563 = vmatpush.msra.mxu0 0.0
        %2564 = vmatpush.msra.mxu0 0.0
        %2565 = vmatpush.msra.mxu0 %v1121
        %2566 = vmatpush.msra.mxu0 %v1120
        %2567 = vmatpush.msra.mxu0 %v1119
        %2568 = vmatpush.msra.mxu0 %v1118
        %2569 = vmatpush.msra.mxu0 %v1117
        %2570 = vmatpush.msra.mxu0 %v1116
        %2571 = vmatpush.msra.mxu0 %v1115
        %2572 = vmatpush.msra.mxu0 %v1114
        %2573 = vmatmul.f32.gmra.mxu0 %v2462
        %v2574 = vpop.f32.mrf.mxu0
        %v2575 = vadd.f32 0.0, %v2574
        %2576 = vmatmul.f32.gmra.mxu0 %v2465
        %v2577 = vpop.f32.mrf.mxu0
        %v2578 = vadd.f32 0.0, %v2577
        %2579 = vmatmul.f32.gmra.mxu0 %v2468
        %v2580 = vpop.f32.mrf.mxu0
        %v2581 = vadd.f32 0.0, %v2580
        %2582 = vmatmul.f32.gmra.mxu0 %v2471
        %v2583 = vpop.f32.mrf.mxu0
        %v2584 = vadd.f32 0.0, %v2583
        %2585 = vmatmul.f32.gmra.mxu0 %v2474
        %v2586 = vpop.f32.mrf.mxu0
        %v2587 = vadd.f32 0.0, %v2586
        %2588 = vmatmul.f32.gmra.mxu0 %v2477
        %v2589 = vpop.f32.mrf.mxu0
        %v2590 = vadd.f32 0.0, %v2589
        %2591 = vmatmul.f32.gmra.mxu0 %v2480
        %v2592 = vpop.f32.mrf.mxu0
        %v2593 = vadd.f32 0.0, %v2592
        %2594 = vmatmul.f32.gmra.mxu0 %v2483
        %v2595 = vpop.f32.mrf.mxu0
        %v2596 = vadd.f32 0.0, %v2595
        %2597 = vmatmul.f32.gmra.mxu0 %v2486
        %v2598 = vpop.f32.mrf.mxu0
        %v2599 = vadd.f32 0.0, %v2598
        %2600 = vmatmul.f32.gmra.mxu0 %v2489
        %v2601 = vpop.f32.mrf.mxu0
        %v2602 = vadd.f32 0.0, %v2601
        %2603 = vmatmul.f32.gmra.mxu0 %v2492
        %v2604 = vpop.f32.mrf.mxu0
        %v2605 = vadd.f32 0.0, %v2604
        %2606 = vmatmul.f32.gmra.mxu0 %v2495
        %v2607 = vpop.f32.mrf.mxu0
        %v2608 = vadd.f32 0.0, %v2607
        %2609 = vmatmul.f32.gmra.mxu0 %v2498
        %v2610 = vpop.f32.mrf.mxu0
        %v2611 = vadd.f32 0.0, %v2610
        %2612 = vmatmul.f32.gmra.mxu0 %v2501
        %v2613 = vpop.f32.mrf.mxu0
        %v2614 = vadd.f32 0.0, %v2613
        %2615 = vmatmul.f32.gmra.mxu0 %v2504
        %v2616 = vpop.f32.mrf.mxu0
        %v2617 = vadd.f32 0.0, %v2616
        %2618 = vmatmul.f32.gmra.mxu0 %v2507
        %v2619 = vpop.f32.mrf.mxu0
        %v2620 = vadd.f32 0.0, %v2619
        %2621 = vmatmul.f32.gmra.mxu0 %v2510
        %v2622 = vpop.f32.mrf.mxu0
        %v2623 = vadd.f32 0.0, %v2622
        %2624 = vmatmul.f32.gmra.mxu0 %v2513
        %v2625 = vpop.f32.mrf.mxu0
        %v2626 = vadd.f32 0.0, %v2625
        %2627 = vmatmul.f32.gmra.mxu0 %v2516
        %v2628 = vpop.f32.mrf.mxu0
        %v2629 = vadd.f32 0.0, %v2628
        %2630 = vmatmul.f32.gmra.mxu0 %v2519
        %v2631 = vpop.f32.mrf.mxu0
        %v2632 = vadd.f32 0.0, %v2631
        %2633 = vmatmul.f32.gmra.mxu0 %v2522
        %v2634 = vpop.f32.mrf.mxu0
        %v2635 = vadd.f32 0.0, %v2634
        %2636 = vmatmul.f32.gmra.mxu0 %v2525
        %v2637 = vpop.f32.mrf.mxu0
        %v2638 = vadd.f32 0.0, %v2637
        %2639 = vmatmul.f32.gmra.mxu0 %v2528
        %v2640 = vpop.f32.mrf.mxu0
        %v2641 = vadd.f32 0.0, %v2640
        %2642 = vmatmul.f32.gmra.mxu0 %v2531
        %v2643 = vpop.f32.mrf.mxu0
        %v2644 = vadd.f32 0.0, %v2643
        %2645 = vmatmul.f32.gmra.mxu0 %v2534
        %v2646 = vpop.f32.mrf.mxu0
        %v2647 = vadd.f32 0.0, %v2646
        %2648 = vmatmul.f32.gmra.mxu0 %v2537
        %v2649 = vpop.f32.mrf.mxu0
        %v2650 = vadd.f32 0.0, %v2649
        %2651 = vmatmul.f32.gmra.mxu0 %v2540
        %v2652 = vpop.f32.mrf.mxu0
        %v2653 = vadd.f32 0.0, %v2652
        %2654 = vmatmul.f32.gmra.mxu0 %v2543
        %v2655 = vpop.f32.mrf.mxu0
        %v2656 = vadd.f32 0.0, %v2655
        %2657 = vmatmul.f32.gmra.mxu0 %v2546
        %v2658 = vpop.f32.mrf.mxu0
        %v2659 = vadd.f32 0.0, %v2658
        %2660 = vmatmul.f32.gmra.mxu0 %v2549
        %v2661 = vpop.f32.mrf.mxu0
        %v2662 = vadd.f32 0.0, %v2661
        %2663 = vmatmul.f32.gmra.mxu0 %v2552
        %v2664 = vpop.f32.mrf.mxu0
        %v2665 = vadd.f32 0.0, %v2664
        %2666 = vmatmul.f32.gmra.mxu0 %v2555
        %v2667 = vpop.f32.mrf.mxu0
        %v2668 = vadd.f32 0.0, %v2667
        %2669 = vdwg.mxu0
        %v2670 = vrcp.pop %v2575
        %v2671 = vrcp.pop %v2578
        %v2672 = vrcp.pop %v2581
        %v2673 = vrcp.pop %v2584
        %v2674 = vrcp.pop %v2587
        %v2675 = vrcp.pop %v2590
        %v2676 = vrcp.pop %v2593
        %v2677 = vrcp.pop %v2596
        %v2678 = vrcp.pop %v2599
        %v2679 = vrcp.pop %v2602
        %v2680 = vrcp.pop %v2605
        %v2681 = vrcp.pop %v2608
        %v2682 = vrcp.pop %v2611
        %v2683 = vrcp.pop %v2614
        %v2684 = vrcp.pop %v2617
        %v2685 = vrcp.pop %v2620
        %v2686 = vrcp.pop %v2623
        %v2687 = vrcp.pop %v2626
        %v2688 = vrcp.pop %v2629
        %v2689 = vrcp.pop %v2632
        %v2690 = vrcp.pop %v2635
        %v2691 = vrcp.pop %v2638
        %v2692 = vrcp.pop %v2641
        %v2693 = vrcp.pop %v2644
        %v2694 = vrcp.pop %v2647
        %v2695 = vrcp.pop %v2650
        %v2696 = vrcp.pop %v2653
        %v2697 = vrcp.pop %v2656
        %v2698 = vrcp.pop %v2659
        %v2699 = vrcp.pop %v2662
        %v2700 = vrcp.pop %v2665
        %v2701 = vrcp.pop %v2668
        %v2703 = vsel %vm1718, %v2670, 0
        %v2706 = vsel %vm1718, %v2671, 0
        %v2709 = vsel %vm1718, %v2672, 0
        %v2712 = vsel %vm1718, %v2673, 0
        %v2715 = vsel %vm1718, %v2674, 0
        %v2718 = vsel %vm1718, %v2675, 0
        %v2721 = vsel %vm1718, %v2676, 0
        %v2724 = vsel %vm1718, %v2677, 0
        %v2727 = vsel %vm1718, %v2678, 0
        %v2730 = vsel %vm1718, %v2679, 0
        %v2733 = vsel %vm1718, %v2680, 0
        %v2736 = vsel %vm1718, %v2681, 0
        %v2739 = vsel %vm1718, %v2682, 0
        %v2742 = vsel %vm1718, %v2683, 0
        %v2745 = vsel %vm1718, %v2684, 0
        %v2748 = vsel %vm1718, %v2685, 0
        %v2751 = vsel %vm1718, %v2686, 0
        %v2754 = vsel %vm1718, %v2687, 0
        %v2757 = vsel %vm1718, %v2688, 0
        %v2760 = vsel %vm1718, %v2689, 0
        %v2763 = vsel %vm1718, %v2690, 0
        %v2766 = vsel %vm1718, %v2691, 0
        %v2769 = vsel %vm1718, %v2692, 0
        %v2772 = vsel %vm1718, %v2693, 0
        %v2775 = vsel %vm1718, %v2694, 0
        %v2778 = vsel %vm1718, %v2695, 0
        %v2781 = vsel %vm1718, %v2696, 0
        %v2784 = vsel %vm1718, %v2697, 0
        %v2787 = vsel %vm1718, %v2698, 0
        %v2790 = vsel %vm1718, %v2699, 0
        %v2793 = vsel %vm1718, %v2700, 0
        %v2796 = vsel %vm1718, %v2701, 0
        %2798 = vmatpush.msra.mxu0 0.0
        %2799 = vmatpush.msra.mxu0 0.0
        %2800 = vmatpush.msra.mxu0 0.0
        %2801 = vmatpush.msra.mxu0 0.0
        %2802 = vmatpush.msra.mxu0 0.0
        %2803 = vmatpush.msra.mxu0 0.0
        %2804 = vmatpush.msra.mxu0 0.0
        %2805 = vmatpush.msra.mxu0 0.0
        %2806 = vmatpush.msra.mxu0 0.0
        %2807 = vmatpush.msra.mxu0 0.0
        %2808 = vmatpush.msra.mxu0 0.0
        %2809 = vmatpush.msra.mxu0 0.0
        %2810 = vmatpush.msra.mxu0 0.0
        %2811 = vmatpush.msra.mxu0 0.0
        %2812 = vmatpush.msra.mxu0 0.0
        %2813 = vmatpush.msra.mxu0 %v1817
        %2814 = vmatmul.f32.gmra.mxu0 %v2703
        %v2815 = vpop.f32.mrf.mxu0
        %v2816 = vadd.f32 0.0, %v2815
        %2817 = vmatmul.f32.gmra.mxu0 %v2706
        %v2818 = vpop.f32.mrf.mxu0
        %v2819 = vadd.f32 0.0, %v2818
        %2820 = vmatmul.f32.gmra.mxu0 %v2709
        %v2821 = vpop.f32.mrf.mxu0
        %v2822 = vadd.f32 0.0, %v2821
        %2823 = vmatmul.f32.gmra.mxu0 %v2712
        %v2824 = vpop.f32.mrf.mxu0
        %v2825 = vadd.f32 0.0, %v2824
        %2826 = vmatmul.f32.gmra.mxu0 %v2715
        %v2827 = vpop.f32.mrf.mxu0
        %v2828 = vadd.f32 0.0, %v2827
        %2829 = vmatmul.f32.gmra.mxu0 %v2718
        %v2830 = vpop.f32.mrf.mxu0
        %v2831 = vadd.f32 0.0, %v2830
        %2832 = vmatmul.f32.gmra.mxu0 %v2721
        %v2833 = vpop.f32.mrf.mxu0
        %v2834 = vadd.f32 0.0, %v2833
        %2835 = vmatmul.f32.gmra.mxu0 %v2724
        %v2836 = vpop.f32.mrf.mxu0
        %v2837 = vadd.f32 0.0, %v2836
        %2838 = vmatmul.f32.gmra.mxu0 %v2727
        %v2839 = vpop.f32.mrf.mxu0
        %v2840 = vadd.f32 0.0, %v2839
        %2841 = vmatmul.f32.gmra.mxu0 %v2730
        %v2842 = vpop.f32.mrf.mxu0
        %v2843 = vadd.f32 0.0, %v2842
        %2844 = vmatmul.f32.gmra.mxu0 %v2733
        %v2845 = vpop.f32.mrf.mxu0
        %v2846 = vadd.f32 0.0, %v2845
        %2847 = vmatmul.f32.gmra.mxu0 %v2736
        %v2848 = vpop.f32.mrf.mxu0
        %v2849 = vadd.f32 0.0, %v2848
        %2850 = vmatmul.f32.gmra.mxu0 %v2739
        %v2851 = vpop.f32.mrf.mxu0
        %v2852 = vadd.f32 0.0, %v2851
        %2853 = vmatmul.f32.gmra.mxu0 %v2742
        %v2854 = vpop.f32.mrf.mxu0
        %v2855 = vadd.f32 0.0, %v2854
        %2856 = vmatmul.f32.gmra.mxu0 %v2745
        %v2857 = vpop.f32.mrf.mxu0
        %v2858 = vadd.f32 0.0, %v2857
        %2859 = vmatmul.f32.gmra.mxu0 %v2748
        %v2860 = vpop.f32.mrf.mxu0
        %v2861 = vadd.f32 0.0, %v2860
        %2862 = vmatmul.f32.gmra.mxu0 %v2751
        %v2863 = vpop.f32.mrf.mxu0
        %v2864 = vadd.f32 0.0, %v2863
        %2865 = vmatmul.f32.gmra.mxu0 %v2754
        %v2866 = vpop.f32.mrf.mxu0
        %v2867 = vadd.f32 0.0, %v2866
        %2868 = vmatmul.f32.gmra.mxu0 %v2757
        %v2869 = vpop.f32.mrf.mxu0
        %v2870 = vadd.f32 0.0, %v2869
        %2871 = vmatmul.f32.gmra.mxu0 %v2760
        %v2872 = vpop.f32.mrf.mxu0
        %v2873 = vadd.f32 0.0, %v2872
        %2874 = vmatmul.f32.gmra.mxu0 %v2763
        %v2875 = vpop.f32.mrf.mxu0
        %v2876 = vadd.f32 0.0, %v2875
        %2877 = vmatmul.f32.gmra.mxu0 %v2766
        %v2878 = vpop.f32.mrf.mxu0
        %v2879 = vadd.f32 0.0, %v2878
        %2880 = vmatmul.f32.gmra.mxu0 %v2769
        %v2881 = vpop.f32.mrf.mxu0
        %v2882 = vadd.f32 0.0, %v2881
        %2883 = vmatmul.f32.gmra.mxu0 %v2772
        %v2884 = vpop.f32.mrf.mxu0
        %v2885 = vadd.f32 0.0, %v2884
        %2886 = vmatmul.f32.gmra.mxu0 %v2775
        %v2887 = vpop.f32.mrf.mxu0
        %v2888 = vadd.f32 0.0, %v2887
        %2889 = vmatmul.f32.gmra.mxu0 %v2778
        %v2890 = vpop.f32.mrf.mxu0
        %v2891 = vadd.f32 0.0, %v2890
        %2892 = vmatmul.f32.gmra.mxu0 %v2781
        %v2893 = vpop.f32.mrf.mxu0
        %v2894 = vadd.f32 0.0, %v2893
        %2895 = vmatmul.f32.gmra.mxu0 %v2784
        %v2896 = vpop.f32.mrf.mxu0
        %v2897 = vadd.f32 0.0, %v2896
        %2898 = vmatmul.f32.gmra.mxu0 %v2787
        %v2899 = vpop.f32.mrf.mxu0
        %v2900 = vadd.f32 0.0, %v2899
        %2901 = vmatmul.f32.gmra.mxu0 %v2790
        %v2902 = vpop.f32.mrf.mxu0
        %v2903 = vadd.f32 0.0, %v2902
        %2904 = vmatmul.f32.gmra.mxu0 %v2793
        %v2905 = vpop.f32.mrf.mxu0
        %v2906 = vadd.f32 0.0, %v2905
        %2907 = vmatmul.f32.gmra.mxu0 %v2796
        %v2908 = vpop.f32.mrf.mxu0
        %v2909 = vadd.f32 0.0, %v2908
        %2910 = vdwg.mxu0
        %v2911 = vpack.c.bf16 %v2400, %v2398
        %v2912 = vpack.c.bf16 %v2404, %v2402
        %v2913 = vpack.c.bf16 %v2408, %v2406
        %v2914 = vpack.c.bf16 %v2412, %v2410
        %v2915 = vpack.c.bf16 %v2416, %v2414
        %v2916 = vpack.c.bf16 %v2420, %v2418
        %v2917 = vpack.c.bf16 %v2424, %v2422
        %v2918 = vpack.c.bf16 %v2428, %v2426
        %v2919 = vpack.c.bf16 %v2432, %v2430
        %v2920 = vpack.c.bf16 %v2436, %v2434
        %v2921 = vpack.c.bf16 %v2440, %v2438
        %v2922 = vpack.c.bf16 %v2444, %v2442
        %v2923 = vpack.c.bf16 %v2448, %v2446
        %v2924 = vpack.c.bf16 %v2452, %v2450
        %v2925 = vpack.c.bf16 %v2456, %v2454
        %v2926 = vpack.c.bf16 %v2460, %v2458
        %v2928 = vsel %vm1061, %v2911, 0
        %v2931 = vsel %vm1061, %v2912, 0
        %v2934 = vsel %vm1061, %v2913, 0
        %v2937 = vsel %vm1061, %v2914, 0
        %v2940 = vsel %vm1061, %v2915, 0
        %v2943 = vsel %vm1061, %v2916, 0
        %v2946 = vsel %vm1061, %v2917, 0
        %v2949 = vsel %vm1061, %v2918, 0
        %v2952 = vsel %vm1061, %v2919, 0
        %v2955 = vsel %vm1061, %v2920, 0
        %v2958 = vsel %vm1061, %v2921, 0
        %v2961 = vsel %vm1061, %v2922, 0
        %v2964 = vsel %vm1061, %v2923, 0
        %v2967 = vsel %vm1061, %v2924, 0
        %v2970 = vsel %vm1061, %v2925, 0
        %v2973 = vsel %vm1061, %v2926, 0
        %2975 = vmatpush.bf16.msra.mxu0 0
        %2976 = vmatpush.bf16.msra.mxu0 0
        %2977 = vmatpush.bf16.msra.mxu0 0
        %2978 = vmatpush.bf16.msra.mxu0 0
        %2979 = vmatpush.bf16.msra.mxu0 %v2176
        %2980 = vmatpush.bf16.msra.mxu0 %v2175
        %2981 = vmatpush.bf16.msra.mxu0 %v2174
        %2982 = vmatpush.bf16.msra.mxu0 %v2173
        %2983 = vmatmul.bf16.gmra.mxu0 %v2928
        %v2984 = vpop.f32.mrf.mxu0
        %v2985 = vadd.f32 0.0, %v2984
        %v2986 = vpop.f32.mrf.mxu0
        %v2987 = vadd.f32 0.0, %v2986
        %2988 = vmatmul.bf16.gmra.mxu0 %v2931
        %v2989 = vpop.f32.mrf.mxu0
        %v2990 = vadd.f32 0.0, %v2989
        %v2991 = vpop.f32.mrf.mxu0
        %v2992 = vadd.f32 0.0, %v2991
        %2993 = vmatmul.bf16.gmra.mxu0 %v2934
        %v2994 = vpop.f32.mrf.mxu0
        %v2995 = vadd.f32 0.0, %v2994
        %v2996 = vpop.f32.mrf.mxu0
        %v2997 = vadd.f32 0.0, %v2996
        %2998 = vmatmul.bf16.gmra.mxu0 %v2937
        %v2999 = vpop.f32.mrf.mxu0
        %v3000 = vadd.f32 0.0, %v2999
        %v3001 = vpop.f32.mrf.mxu0
        %v3002 = vadd.f32 0.0, %v3001
        %3003 = vmatmul.bf16.gmra.mxu0 %v2940
        %v3004 = vpop.f32.mrf.mxu0
        %v3005 = vadd.f32 0.0, %v3004
        %v3006 = vpop.f32.mrf.mxu0
        %v3007 = vadd.f32 0.0, %v3006
        %3008 = vmatmul.bf16.gmra.mxu0 %v2943
        %v3009 = vpop.f32.mrf.mxu0
        %v3010 = vadd.f32 0.0, %v3009
        %v3011 = vpop.f32.mrf.mxu0
        %v3012 = vadd.f32 0.0, %v3011
        %3013 = vmatmul.bf16.gmra.mxu0 %v2946
        %v3014 = vpop.f32.mrf.mxu0
        %v3015 = vadd.f32 0.0, %v3014
        %v3016 = vpop.f32.mrf.mxu0
        %v3017 = vadd.f32 0.0, %v3016
        %3018 = vmatmul.bf16.gmra.mxu0 %v2949
        %v3019 = vpop.f32.mrf.mxu0
        %v3020 = vadd.f32 0.0, %v3019
        %v3021 = vpop.f32.mrf.mxu0
        %v3022 = vadd.f32 0.0, %v3021
        %3023 = vmatmul.bf16.gmra.mxu0 %v2952
        %v3024 = vpop.f32.mrf.mxu0
        %v3025 = vadd.f32 0.0, %v3024
        %v3026 = vpop.f32.mrf.mxu0
        %v3027 = vadd.f32 0.0, %v3026
        %3028 = vmatmul.bf16.gmra.mxu0 %v2955
        %v3029 = vpop.f32.mrf.mxu0
        %v3030 = vadd.f32 0.0, %v3029
        %v3031 = vpop.f32.mrf.mxu0
        %v3032 = vadd.f32 0.0, %v3031
        %3033 = vmatmul.bf16.gmra.mxu0 %v2958
        %v3034 = vpop.f32.mrf.mxu0
        %v3035 = vadd.f32 0.0, %v3034
        %v3036 = vpop.f32.mrf.mxu0
        %v3037 = vadd.f32 0.0, %v3036
        %3038 = vmatmul.bf16.gmra.mxu0 %v2961
        %v3039 = vpop.f32.mrf.mxu0
        %v3040 = vadd.f32 0.0, %v3039
        %v3041 = vpop.f32.mrf.mxu0
        %v3042 = vadd.f32 0.0, %v3041
        %3043 = vmatmul.bf16.gmra.mxu0 %v2964
        %v3044 = vpop.f32.mrf.mxu0
        %v3045 = vadd.f32 0.0, %v3044
        %v3046 = vpop.f32.mrf.mxu0
        %v3047 = vadd.f32 0.0, %v3046
        %3048 = vmatmul.bf16.gmra.mxu0 %v2967
        %v3049 = vpop.f32.mrf.mxu0
        %v3050 = vadd.f32 0.0, %v3049
        %v3051 = vpop.f32.mrf.mxu0
        %v3052 = vadd.f32 0.0, %v3051
        %3053 = vmatmul.bf16.gmra.mxu0 %v2970
        %v3054 = vpop.f32.mrf.mxu0
        %v3055 = vadd.f32 0.0, %v3054
        %v3056 = vpop.f32.mrf.mxu0
        %v3057 = vadd.f32 0.0, %v3056
        %3058 = vmatmul.bf16.gmra.mxu0 %v2973
        %v3059 = vpop.f32.mrf.mxu0
        %v3060 = vadd.f32 0.0, %v3059
        %v3061 = vpop.f32.mrf.mxu0
        %v3062 = vadd.f32 0.0, %v3061
        %3063 = vdwg.mxu0
        %v3064 = vmul.f32 %v2985, %v2816
        %v3065 = vmul.f32 %v2987, %v2819
        %v3066 = vmul.f32 %v2990, %v2822
        %v3067 = vmul.f32 %v2992, %v2825
        %v3068 = vmul.f32 %v2995, %v2828
        %v3069 = vmul.f32 %v2997, %v2831
        %v3070 = vmul.f32 %v3000, %v2834
        %v3071 = vmul.f32 %v3002, %v2837
        %v3072 = vmul.f32 %v3005, %v2840
        %v3073 = vmul.f32 %v3007, %v2843
        %v3074 = vmul.f32 %v3010, %v2846
        %v3075 = vmul.f32 %v3012, %v2849
        %v3076 = vmul.f32 %v3015, %v2852
        %v3077 = vmul.f32 %v3017, %v2855
        %v3078 = vmul.f32 %v3020, %v2858
        %v3079 = vmul.f32 %v3022, %v2861
        %v3080 = vmul.f32 %v3025, %v2864
        %v3081 = vmul.f32 %v3027, %v2867
        %v3082 = vmul.f32 %v3030, %v2870
        %v3083 = vmul.f32 %v3032, %v2873
        %v3084 = vmul.f32 %v3035, %v2876
        %v3085 = vmul.f32 %v3037, %v2879
        %v3086 = vmul.f32 %v3040, %v2882
        %v3087 = vmul.f32 %v3042, %v2885
        %v3088 = vmul.f32 %v3045, %v2888
        %v3089 = vmul.f32 %v3047, %v2891
        %v3090 = vmul.f32 %v3050, %v2894
        %v3091 = vmul.f32 %v3052, %v2897
        %v3092 = vmul.f32 %v3055, %v2900
        %v3093 = vmul.f32 %v3057, %v2903
        %v3094 = vmul.f32 %v3060, %v2906
        %v3095 = vmul.f32 %v3062, %v2909
        %v3096 = vpack.c.bf16 %v2086, %v2085
        %v3097 = vpack.c.bf16 %v2088, %v2087
        %v3098 = vpack.c.bf16 %v2090, %v2089
        %v3099 = vpack.c.bf16 %v2092, %v2091
        %v3100 = vpack.c.bf16 %v2094, %v2093
        %v3101 = vpack.c.bf16 %v2096, %v2095
        %v3102 = vpack.c.bf16 %v2098, %v2097
        %v3103 = vpack.c.bf16 %v2100, %v2099
        %v3104 = vpack.c.bf16 %v2102, %v2101
        %v3105 = vpack.c.bf16 %v2104, %v2103
        %v3106 = vpack.c.bf16 %v2106, %v2105
        %v3107 = vpack.c.bf16 %v2108, %v2107
        %v3108 = vpack.c.bf16 %v2110, %v2109
        %v3109 = vpack.c.bf16 %v2112, %v2111
        %v3110 = vpack.c.bf16 %v2114, %v2113
        %v3111 = vpack.c.bf16 %v2116, %v2115
        %v3112 = vpack.c.bf16 %v3065, %v3064
        %v3113 = vpack.c.bf16 %v3067, %v3066
        %v3114 = vpack.c.bf16 %v3069, %v3068
        %v3115 = vpack.c.bf16 %v3071, %v3070
        %v3116 = vpack.c.bf16 %v3073, %v3072
        %v3117 = vpack.c.bf16 %v3075, %v3074
        %v3118 = vpack.c.bf16 %v3077, %v3076
        %v3119 = vpack.c.bf16 %v3079, %v3078
        %v3120 = vpack.c.bf16 %v3081, %v3080
        %v3121 = vpack.c.bf16 %v3083, %v3082
        %v3122 = vpack.c.bf16 %v3085, %v3084
        %v3123 = vpack.c.bf16 %v3087, %v3086
        %v3124 = vpack.c.bf16 %v3089, %v3088
        %v3125 = vpack.c.bf16 %v3091, %v3090
        %v3126 = vpack.c.bf16 %v3093, %v3092
        %v3127 = vpack.c.bf16 %v3095, %v3094
        %v3128 = vld [vmem:[#allocation11] sm:$0xf]
        %v3129 = vld [vmem:[#allocation11 + $0x4] sm:$0xf]
        %v3130 = vld [vmem:[#allocation11 + $0x8] sm:$0xf]
        %v3131 = vld [vmem:[#allocation11 + $0xc] sm:$0xf]
        %v3132 = vld [vmem:[#allocation11 + $0x10] sm:$0xf]
        %v3133 = vld [vmem:[#allocation11 + $0x14] sm:$0xf]
        %v3134 = vld [vmem:[#allocation11 + $0x18] sm:$0xf]
        %v3135 = vld [vmem:[#allocation11 + $0x1c] sm:$0xf]
        %v3136 = vld [vmem:[#allocation11 + $0x20] sm:$0xf]
        %v3137 = vld [vmem:[#allocation11 + $0x24] sm:$0xf]
        %v3138 = vld [vmem:[#allocation11 + $0x28] sm:$0xf]
        %v3139 = vld [vmem:[#allocation11 + $0x2c] sm:$0xf]
        %v3140 = vld [vmem:[#allocation11 + $0x30] sm:$0xf]
        %v3141 = vld [vmem:[#allocation11 + $0x34] sm:$0xf]
        %v3142 = vld [vmem:[#allocation11 + $0x38] sm:$0xf]
        %v3143 = vld [vmem:[#allocation11 + $0x3c] sm:$0xf]
        %v3144 = vld [vmem:[#allocation13] sm:$0x1]
        %v3146 = vperm.slane %v3144, 0
        %v3164 = vunpack.c.l.b16 %v3128
        %v3165 = vunpack.c.l.b16 %v3129
        %v3166 = vunpack.c.l.b16 %v3130
        %v3167 = vunpack.c.l.b16 %v3131
        %v3168 = vunpack.c.l.b16 %v3132
        %v3169 = vunpack.c.l.b16 %v3133
        %v3170 = vunpack.c.l.b16 %v3134
        %v3171 = vunpack.c.l.b16 %v3135
        %v3172 = vunpack.c.l.b16 %v3136
        %v3173 = vunpack.c.l.b16 %v3137
        %v3174 = vunpack.c.l.b16 %v3138
        %v3175 = vunpack.c.l.b16 %v3139
        %v3176 = vunpack.c.l.b16 %v3140
        %v3177 = vunpack.c.l.b16 %v3141
        %v3178 = vunpack.c.l.b16 %v3142
        %v3179 = vunpack.c.l.b16 %v3143
        %v3180 = vpack.c.b16 %v3165, %v3164
        %v3181 = vpack.c.b16 %v3167, %v3166
        %v3182 = vpack.c.b16 %v3169, %v3168
        %v3183 = vpack.c.b16 %v3171, %v3170
        %v3184 = vpack.c.b16 %v3173, %v3172
        %v3185 = vpack.c.b16 %v3175, %v3174
        %v3186 = vpack.c.b16 %v3177, %v3176
        %v3187 = vpack.c.b16 %v3179, %v3178
        %3196 = vmatpush.bf16.msra.mxu0 %v3187
        %3197 = vmatpush.bf16.msra.mxu0 %v3186
        %3198 = vmatpush.bf16.msra.mxu0 %v3185
        %3199 = vmatpush.bf16.msra.mxu0 %v3184
        %3200 = vmatpush.bf16.msra.mxu0 %v3183
        %3201 = vmatpush.bf16.msra.mxu0 %v3182
        %3202 = vmatpush.bf16.msra.mxu0 %v3181
        %3203 = vmatpush.bf16.msra.mxu0 %v3180
        %3204 = vmatmul.bf16.gmra.mxu0 %v3096
        %v3205 = vpop.f32.mrf.mxu0
        %v3206 = vadd.f32 %v3146, %v3205
        %v3207 = vpop.f32.mrf.mxu0
        %v3208 = vadd.f32 %v3146, %v3207
        %3209 = vmatmul.bf16.gmra.mxu0 %v3097
        %v3210 = vpop.f32.mrf.mxu0
        %v3211 = vadd.f32 %v3146, %v3210
        %v3212 = vpop.f32.mrf.mxu0
        %v3213 = vadd.f32 %v3146, %v3212
        %3214 = vmatmul.bf16.gmra.mxu0 %v3098
        %v3215 = vpop.f32.mrf.mxu0
        %v3216 = vadd.f32 %v3146, %v3215
        %v3217 = vpop.f32.mrf.mxu0
        %v3218 = vadd.f32 %v3146, %v3217
        %3219 = vmatmul.bf16.gmra.mxu0 %v3099
        %v3220 = vpop.f32.mrf.mxu0
        %v3221 = vadd.f32 %v3146, %v3220
        %v3222 = vpop.f32.mrf.mxu0
        %v3223 = vadd.f32 %v3146, %v3222
        %3224 = vmatmul.bf16.gmra.mxu0 %v3100
        %v3225 = vpop.f32.mrf.mxu0
        %v3226 = vadd.f32 %v3146, %v3225
        %v3227 = vpop.f32.mrf.mxu0
        %v3228 = vadd.f32 %v3146, %v3227
        %3229 = vmatmul.bf16.gmra.mxu0 %v3101
        %v3230 = vpop.f32.mrf.mxu0
        %v3231 = vadd.f32 %v3146, %v3230
        %v3232 = vpop.f32.mrf.mxu0
        %v3233 = vadd.f32 %v3146, %v3232
        %3234 = vmatmul.bf16.gmra.mxu0 %v3102
        %v3235 = vpop.f32.mrf.mxu0
        %v3236 = vadd.f32 %v3146, %v3235
        %v3237 = vpop.f32.mrf.mxu0
        %v3238 = vadd.f32 %v3146, %v3237
        %3239 = vmatmul.bf16.gmra.mxu0 %v3103
        %v3240 = vpop.f32.mrf.mxu0
        %v3241 = vadd.f32 %v3146, %v3240
        %v3242 = vpop.f32.mrf.mxu0
        %v3243 = vadd.f32 %v3146, %v3242
        %3244 = vmatmul.bf16.gmra.mxu0 %v3104
        %v3245 = vpop.f32.mrf.mxu0
        %v3246 = vadd.f32 %v3146, %v3245
        %v3247 = vpop.f32.mrf.mxu0
        %v3248 = vadd.f32 %v3146, %v3247
        %3249 = vmatmul.bf16.gmra.mxu0 %v3105
        %v3250 = vpop.f32.mrf.mxu0
        %v3251 = vadd.f32 %v3146, %v3250
        %v3252 = vpop.f32.mrf.mxu0
        %v3253 = vadd.f32 %v3146, %v3252
        %3254 = vmatmul.bf16.gmra.mxu0 %v3106
        %v3255 = vpop.f32.mrf.mxu0
        %v3256 = vadd.f32 %v3146, %v3255
        %v3257 = vpop.f32.mrf.mxu0
        %v3258 = vadd.f32 %v3146, %v3257
        %3259 = vmatmul.bf16.gmra.mxu0 %v3107
        %v3260 = vpop.f32.mrf.mxu0
        %v3261 = vadd.f32 %v3146, %v3260
        %v3262 = vpop.f32.mrf.mxu0
        %v3263 = vadd.f32 %v3146, %v3262
        %3264 = vmatmul.bf16.gmra.mxu0 %v3108
        %v3265 = vpop.f32.mrf.mxu0
        %v3266 = vadd.f32 %v3146, %v3265
        %v3267 = vpop.f32.mrf.mxu0
        %v3268 = vadd.f32 %v3146, %v3267
        %3269 = vmatmul.bf16.gmra.mxu0 %v3109
        %v3270 = vpop.f32.mrf.mxu0
        %v3271 = vadd.f32 %v3146, %v3270
        %v3272 = vpop.f32.mrf.mxu0
        %v3273 = vadd.f32 %v3146, %v3272
        %3274 = vmatmul.bf16.gmra.mxu0 %v3110
        %v3275 = vpop.f32.mrf.mxu0
        %v3276 = vadd.f32 %v3146, %v3275
        %v3277 = vpop.f32.mrf.mxu0
        %v3278 = vadd.f32 %v3146, %v3277
        %3279 = vmatmul.bf16.gmra.mxu0 %v3111
        %v3280 = vpop.f32.mrf.mxu0
        %v3281 = vadd.f32 %v3146, %v3280
        %v3282 = vpop.f32.mrf.mxu0
        %v3283 = vadd.f32 %v3146, %v3282
        %3284 = vmatmul.bf16.gmra.mxu0 %v3112
        %v3285 = vpop.f32.mrf.mxu0
        %v3286 = vadd.f32 %v3146, %v3285
        %v3287 = vpop.f32.mrf.mxu0
        %v3288 = vadd.f32 %v3146, %v3287
        %3289 = vmatmul.bf16.gmra.mxu0 %v3113
        %v3290 = vpop.f32.mrf.mxu0
        %v3291 = vadd.f32 %v3146, %v3290
        %v3292 = vpop.f32.mrf.mxu0
        %v3293 = vadd.f32 %v3146, %v3292
        %3294 = vmatmul.bf16.gmra.mxu0 %v3114
        %v3295 = vpop.f32.mrf.mxu0
        %v3296 = vadd.f32 %v3146, %v3295
        %v3297 = vpop.f32.mrf.mxu0
        %v3298 = vadd.f32 %v3146, %v3297
        %3299 = vmatmul.bf16.gmra.mxu0 %v3115
        %v3300 = vpop.f32.mrf.mxu0
        %v3301 = vadd.f32 %v3146, %v3300
        %v3302 = vpop.f32.mrf.mxu0
        %v3303 = vadd.f32 %v3146, %v3302
        %3304 = vmatmul.bf16.gmra.mxu0 %v3116
        %v3305 = vpop.f32.mrf.mxu0
        %v3306 = vadd.f32 %v3146, %v3305
        %v3307 = vpop.f32.mrf.mxu0
        %v3308 = vadd.f32 %v3146, %v3307
        %3309 = vmatmul.bf16.gmra.mxu0 %v3117
        %v3310 = vpop.f32.mrf.mxu0
        %v3311 = vadd.f32 %v3146, %v3310
        %v3312 = vpop.f32.mrf.mxu0
        %v3313 = vadd.f32 %v3146, %v3312
        %3314 = vmatmul.bf16.gmra.mxu0 %v3118
        %v3315 = vpop.f32.mrf.mxu0
        %v3316 = vadd.f32 %v3146, %v3315
        %v3317 = vpop.f32.mrf.mxu0
        %v3318 = vadd.f32 %v3146, %v3317
        %3319 = vmatmul.bf16.gmra.mxu0 %v3119
        %v3320 = vpop.f32.mrf.mxu0
        %v3321 = vadd.f32 %v3146, %v3320
        %v3322 = vpop.f32.mrf.mxu0
        %v3323 = vadd.f32 %v3146, %v3322
        %3324 = vmatmul.bf16.gmra.mxu0 %v3120
        %v3325 = vpop.f32.mrf.mxu0
        %v3326 = vadd.f32 %v3146, %v3325
        %v3327 = vpop.f32.mrf.mxu0
        %v3328 = vadd.f32 %v3146, %v3327
        %3329 = vmatmul.bf16.gmra.mxu0 %v3121
        %v3330 = vpop.f32.mrf.mxu0
        %v3331 = vadd.f32 %v3146, %v3330
        %v3332 = vpop.f32.mrf.mxu0
        %v3333 = vadd.f32 %v3146, %v3332
        %3334 = vmatmul.bf16.gmra.mxu0 %v3122
        %v3335 = vpop.f32.mrf.mxu0
        %v3336 = vadd.f32 %v3146, %v3335
        %v3337 = vpop.f32.mrf.mxu0
        %v3338 = vadd.f32 %v3146, %v3337
        %3339 = vmatmul.bf16.gmra.mxu0 %v3123
        %v3340 = vpop.f32.mrf.mxu0
        %v3341 = vadd.f32 %v3146, %v3340
        %v3342 = vpop.f32.mrf.mxu0
        %v3343 = vadd.f32 %v3146, %v3342
        %3344 = vmatmul.bf16.gmra.mxu0 %v3124
        %v3345 = vpop.f32.mrf.mxu0
        %v3346 = vadd.f32 %v3146, %v3345
        %v3347 = vpop.f32.mrf.mxu0
        %v3348 = vadd.f32 %v3146, %v3347
        %3349 = vmatmul.bf16.gmra.mxu0 %v3125
        %v3350 = vpop.f32.mrf.mxu0
        %v3351 = vadd.f32 %v3146, %v3350
        %v3352 = vpop.f32.mrf.mxu0
        %v3353 = vadd.f32 %v3146, %v3352
        %3354 = vmatmul.bf16.gmra.mxu0 %v3126
        %v3355 = vpop.f32.mrf.mxu0
        %v3356 = vadd.f32 %v3146, %v3355
        %v3357 = vpop.f32.mrf.mxu0
        %v3358 = vadd.f32 %v3146, %v3357
        %3359 = vmatmul.bf16.gmra.mxu0 %v3127
        %v3360 = vpop.f32.mrf.mxu0
        %v3361 = vadd.f32 %v3146, %v3360
        %v3362 = vpop.f32.mrf.mxu0
        %v3363 = vadd.f32 %v3146, %v3362
        %3364 = vdwg.mxu0
        %v3365 = vadd.f32 %v3206, %v660
        %v3366 = vadd.f32 %v3208, %v661
        %v3367 = vadd.f32 %v3211, %v662
        %v3368 = vadd.f32 %v3213, %v663
        %v3369 = vadd.f32 %v3216, %v664
        %v3370 = vadd.f32 %v3218, %v665
        %v3371 = vadd.f32 %v3221, %v666
        %v3372 = vadd.f32 %v3223, %v667
        %v3373 = vadd.f32 %v3226, %v668
        %v3374 = vadd.f32 %v3228, %v669
        %v3375 = vadd.f32 %v3231, %v670
        %v3376 = vadd.f32 %v3233, %v671
        %v3377 = vadd.f32 %v3236, %v672
        %v3378 = vadd.f32 %v3238, %v673
        %v3379 = vadd.f32 %v3241, %v674
        %v3380 = vadd.f32 %v3243, %v675
        %v3381 = vadd.f32 %v3246, %v676
        %v3382 = vadd.f32 %v3248, %v677
        %v3383 = vadd.f32 %v3251, %v678
        %v3384 = vadd.f32 %v3253, %v679
        %v3385 = vadd.f32 %v3256, %v680
        %v3386 = vadd.f32 %v3258, %v681
        %v3387 = vadd.f32 %v3261, %v682
        %v3388 = vadd.f32 %v3263, %v683
        %v3389 = vadd.f32 %v3266, %v684
        %v3390 = vadd.f32 %v3268, %v685
        %v3391 = vadd.f32 %v3271, %v686
        %v3392 = vadd.f32 %v3273, %v687
        %v3393 = vadd.f32 %v3276, %v688
        %v3394 = vadd.f32 %v3278, %v689
        %v3395 = vadd.f32 %v3281, %v690
        %v3396 = vadd.f32 %v3283, %v691
        %v3397 = vadd.f32 %v3286, %v692
        %v3398 = vadd.f32 %v3288, %v693
        %v3399 = vadd.f32 %v3291, %v694
        %v3400 = vadd.f32 %v3293, %v695
        %v3401 = vadd.f32 %v3296, %v696
        %v3402 = vadd.f32 %v3298, %v697
        %v3403 = vadd.f32 %v3301, %v698
        %v3404 = vadd.f32 %v3303, %v699
        %v3405 = vadd.f32 %v3306, %v700
        %v3406 = vadd.f32 %v3308, %v701
        %v3407 = vadd.f32 %v3311, %v702
        %v3408 = vadd.f32 %v3313, %v703
        %v3409 = vadd.f32 %v3316, %v704
        %v3410 = vadd.f32 %v3318, %v705
        %v3411 = vadd.f32 %v3321, %v706
        %v3412 = vadd.f32 %v3323, %v707
        %v3413 = vadd.f32 %v3326, %v708
        %v3414 = vadd.f32 %v3328, %v709
        %v3415 = vadd.f32 %v3331, %v710
        %v3416 = vadd.f32 %v3333, %v711
        %v3417 = vadd.f32 %v3336, %v712
        %v3418 = vadd.f32 %v3338, %v713
        %v3419 = vadd.f32 %v3341, %v714
        %v3420 = vadd.f32 %v3343, %v715
        %v3421 = vadd.f32 %v3346, %v716
        %v3422 = vadd.f32 %v3348, %v717
        %v3423 = vadd.f32 %v3351, %v718
        %v3424 = vadd.f32 %v3353, %v719
        %v3425 = vadd.f32 %v3356, %v720
        %v3426 = vadd.f32 %v3358, %v721
        %v3427 = vadd.f32 %v3361, %v722
        %v3428 = vadd.f32 %v3363, %v723
        %3429 = vadd.xlane.f32.xlu0 %v3365
        %v3430 = vpop.xlane.xlu0 %3429
        %3431 = vadd.xlane.f32.xlu0 %v3366
        %v3432 = vpop.xlane.xlu0 %3431
        %3433 = vadd.xlane.f32.xlu0 %v3367
        %v3434 = vpop.xlane.xlu0 %3433
        %3435 = vadd.xlane.f32.xlu0 %v3368
        %v3436 = vpop.xlane.xlu0 %3435
        %3437 = vadd.xlane.f32.xlu0 %v3369
        %v3438 = vpop.xlane.xlu0 %3437
        %3439 = vadd.xlane.f32.xlu0 %v3370
        %v3440 = vpop.xlane.xlu0 %3439
        %3441 = vadd.xlane.f32.xlu0 %v3371
        %v3442 = vpop.xlane.xlu0 %3441
        %3443 = vadd.xlane.f32.xlu0 %v3372
        %v3444 = vpop.xlane.xlu0 %3443
        %3445 = vadd.xlane.f32.xlu0 %v3373
        %v3446 = vpop.xlane.xlu0 %3445
        %3447 = vadd.xlane.f32.xlu0 %v3374
        %v3448 = vpop.xlane.xlu0 %3447
        %3449 = vadd.xlane.f32.xlu0 %v3375
        %v3450 = vpop.xlane.xlu0 %3449
        %3451 = vadd.xlane.f32.xlu0 %v3376
        %v3452 = vpop.xlane.xlu0 %3451
        %3453 = vadd.xlane.f32.xlu0 %v3377
        %v3454 = vpop.xlane.xlu0 %3453
        %3455 = vadd.xlane.f32.xlu0 %v3378
        %v3456 = vpop.xlane.xlu0 %3455
        %3457 = vadd.xlane.f32.xlu0 %v3379
        %v3458 = vpop.xlane.xlu0 %3457
        %3459 = vadd.xlane.f32.xlu0 %v3380
        %v3460 = vpop.xlane.xlu0 %3459
        %3461 = vadd.xlane.f32.xlu0 %v3381
        %v3462 = vpop.xlane.xlu0 %3461
        %3463 = vadd.xlane.f32.xlu0 %v3382
        %v3464 = vpop.xlane.xlu0 %3463
        %3465 = vadd.xlane.f32.xlu0 %v3383
        %v3466 = vpop.xlane.xlu0 %3465
        %3467 = vadd.xlane.f32.xlu0 %v3384
        %v3468 = vpop.xlane.xlu0 %3467
        %3469 = vadd.xlane.f32.xlu0 %v3385
        %v3470 = vpop.xlane.xlu0 %3469
        %3471 = vadd.xlane.f32.xlu0 %v3386
        %v3472 = vpop.xlane.xlu0 %3471
        %3473 = vadd.xlane.f32.xlu0 %v3387
        %v3474 = vpop.xlane.xlu0 %3473
        %3475 = vadd.xlane.f32.xlu0 %v3388
        %v3476 = vpop.xlane.xlu0 %3475
        %3477 = vadd.xlane.f32.xlu0 %v3389
        %v3478 = vpop.xlane.xlu0 %3477
        %3479 = vadd.xlane.f32.xlu0 %v3390
        %v3480 = vpop.xlane.xlu0 %3479
        %3481 = vadd.xlane.f32.xlu0 %v3391
        %v3482 = vpop.xlane.xlu0 %3481
        %3483 = vadd.xlane.f32.xlu0 %v3392
        %v3484 = vpop.xlane.xlu0 %3483
        %3485 = vadd.xlane.f32.xlu0 %v3393
        %v3486 = vpop.xlane.xlu0 %3485
        %3487 = vadd.xlane.f32.xlu0 %v3394
        %v3488 = vpop.xlane.xlu0 %3487
        %3489 = vadd.xlane.f32.xlu0 %v3395
        %v3490 = vpop.xlane.xlu0 %3489
        %3491 = vadd.xlane.f32.xlu0 %v3396
        %v3492 = vpop.xlane.xlu0 %3491
        %3493 = vadd.xlane.f32.xlu0 %v3397
        %v3494 = vpop.xlane.xlu0 %3493
        %3495 = vadd.xlane.f32.xlu0 %v3398
        %v3496 = vpop.xlane.xlu0 %3495
        %3497 = vadd.xlane.f32.xlu0 %v3399
        %v3498 = vpop.xlane.xlu0 %3497
        %3499 = vadd.xlane.f32.xlu0 %v3400
        %v3500 = vpop.xlane.xlu0 %3499
        %3501 = vadd.xlane.f32.xlu0 %v3401
        %v3502 = vpop.xlane.xlu0 %3501
        %3503 = vadd.xlane.f32.xlu0 %v3402
        %v3504 = vpop.xlane.xlu0 %3503
        %3505 = vadd.xlane.f32.xlu0 %v3403
        %v3506 = vpop.xlane.xlu0 %3505
        %3507 = vadd.xlane.f32.xlu0 %v3404
        %v3508 = vpop.xlane.xlu0 %3507
        %3509 = vadd.xlane.f32.xlu0 %v3405
        %v3510 = vpop.xlane.xlu0 %3509
        %3511 = vadd.xlane.f32.xlu0 %v3406
        %v3512 = vpop.xlane.xlu0 %3511
        %3513 = vadd.xlane.f32.xlu0 %v3407
        %v3514 = vpop.xlane.xlu0 %3513
        %3515 = vadd.xlane.f32.xlu0 %v3408
        %v3516 = vpop.xlane.xlu0 %3515
        %3517 = vadd.xlane.f32.xlu0 %v3409
        %v3518 = vpop.xlane.xlu0 %3517
        %3519 = vadd.xlane.f32.xlu0 %v3410
        %v3520 = vpop.xlane.xlu0 %3519
        %3521 = vadd.xlane.f32.xlu0 %v3411
        %v3522 = vpop.xlane.xlu0 %3521
        %3523 = vadd.xlane.f32.xlu0 %v3412
        %v3524 = vpop.xlane.xlu0 %3523
        %3525 = vadd.xlane.f32.xlu0 %v3413
        %v3526 = vpop.xlane.xlu0 %3525
        %3527 = vadd.xlane.f32.xlu0 %v3414
        %v3528 = vpop.xlane.xlu0 %3527
        %3529 = vadd.xlane.f32.xlu0 %v3415
        %v3530 = vpop.xlane.xlu0 %3529
        %3531 = vadd.xlane.f32.xlu0 %v3416
        %v3532 = vpop.xlane.xlu0 %3531
        %3533 = vadd.xlane.f32.xlu0 %v3417
        %v3534 = vpop.xlane.xlu0 %3533
        %3535 = vadd.xlane.f32.xlu0 %v3418
        %v3536 = vpop.xlane.xlu0 %3535
        %3537 = vadd.xlane.f32.xlu0 %v3419
        %v3538 = vpop.xlane.xlu0 %3537
        %3539 = vadd.xlane.f32.xlu0 %v3420
        %v3540 = vpop.xlane.xlu0 %3539
        %3541 = vadd.xlane.f32.xlu0 %v3421
        %v3542 = vpop.xlane.xlu0 %3541
        %3543 = vadd.xlane.f32.xlu0 %v3422
        %v3544 = vpop.xlane.xlu0 %3543
        %3545 = vadd.xlane.f32.xlu0 %v3423
        %v3546 = vpop.xlane.xlu0 %3545
        %3547 = vadd.xlane.f32.xlu0 %v3424
        %v3548 = vpop.xlane.xlu0 %3547
        %3549 = vadd.xlane.f32.xlu0 %v3425
        %v3550 = vpop.xlane.xlu0 %3549
        %3551 = vadd.xlane.f32.xlu0 %v3426
        %v3552 = vpop.xlane.xlu0 %3551
        %3553 = vadd.xlane.f32.xlu0 %v3427
        %v3554 = vpop.xlane.xlu0 %3553
        %3555 = vadd.xlane.f32.xlu0 %v3428
        %v3556 = vpop.xlane.xlu0 %3555
        %v3557 = vrcp.pop 128.0
        %v3558 = vmul.f32 128.0, %v3557
        %v3559 = vsub.f32 1.0, %v3558
        %v3560 = vmul.f32 %v3557, %v3559
        %v3561 = vadd.f32 %v3557, %v3560
        %vm3562 = vweird.f32 %v3557
        %v3563 = vsel %vm3562, %v3557, %v3561
        %v3564 = vmul.f32 %v3430, %v3563
        %v3565 = vmul.f32 %v3432, %v3563
        %v3566 = vmul.f32 %v3434, %v3563
        %v3567 = vmul.f32 %v3436, %v3563
        %v3568 = vmul.f32 %v3438, %v3563
        %v3569 = vmul.f32 %v3440, %v3563
        %v3570 = vmul.f32 %v3442, %v3563
        %v3571 = vmul.f32 %v3444, %v3563
        %v3572 = vmul.f32 %v3446, %v3563
        %v3573 = vmul.f32 %v3448, %v3563
        %v3574 = vmul.f32 %v3450, %v3563
        %v3575 = vmul.f32 %v3452, %v3563
        %v3576 = vmul.f32 %v3454, %v3563
        %v3577 = vmul.f32 %v3456, %v3563
        %v3578 = vmul.f32 %v3458, %v3563
        %v3579 = vmul.f32 %v3460, %v3563
        %v3580 = vmul.f32 %v3462, %v3563
        %v3581 = vmul.f32 %v3464, %v3563
        %v3582 = vmul.f32 %v3466, %v3563
        %v3583 = vmul.f32 %v3468, %v3563
        %v3584 = vmul.f32 %v3470, %v3563
        %v3585 = vmul.f32 %v3472, %v3563
        %v3586 = vmul.f32 %v3474, %v3563
        %v3587 = vmul.f32 %v3476, %v3563
        %v3588 = vmul.f32 %v3478, %v3563
        %v3589 = vmul.f32 %v3480, %v3563
        %v3590 = vmul.f32 %v3482, %v3563
        %v3591 = vmul.f32 %v3484, %v3563
        %v3592 = vmul.f32 %v3486, %v3563
        %v3593 = vmul.f32 %v3488, %v3563
        %v3594 = vmul.f32 %v3490, %v3563
        %v3595 = vmul.f32 %v3492, %v3563
        %v3596 = vmul.f32 %v3494, %v3563
        %v3597 = vmul.f32 %v3496, %v3563
        %v3598 = vmul.f32 %v3498, %v3563
        %v3599 = vmul.f32 %v3500, %v3563
        %v3600 = vmul.f32 %v3502, %v3563
        %v3601 = vmul.f32 %v3504, %v3563
        %v3602 = vmul.f32 %v3506, %v3563
        %v3603 = vmul.f32 %v3508, %v3563
        %v3604 = vmul.f32 %v3510, %v3563
        %v3605 = vmul.f32 %v3512, %v3563
        %v3606 = vmul.f32 %v3514, %v3563
        %v3607 = vmul.f32 %v3516, %v3563
        %v3608 = vmul.f32 %v3518, %v3563
        %v3609 = vmul.f32 %v3520, %v3563
        %v3610 = vmul.f32 %v3522, %v3563
        %v3611 = vmul.f32 %v3524, %v3563
        %v3612 = vmul.f32 %v3526, %v3563
        %v3613 = vmul.f32 %v3528, %v3563
        %v3614 = vmul.f32 %v3530, %v3563
        %v3615 = vmul.f32 %v3532, %v3563
        %v3616 = vmul.f32 %v3534, %v3563
        %v3617 = vmul.f32 %v3536, %v3563
        %v3618 = vmul.f32 %v3538, %v3563
        %v3619 = vmul.f32 %v3540, %v3563
        %v3620 = vmul.f32 %v3542, %v3563
        %v3621 = vmul.f32 %v3544, %v3563
        %v3622 = vmul.f32 %v3546, %v3563
        %v3623 = vmul.f32 %v3548, %v3563
        %v3624 = vmul.f32 %v3550, %v3563
        %v3625 = vmul.f32 %v3552, %v3563
        %v3626 = vmul.f32 %v3554, %v3563
        %v3627 = vmul.f32 %v3556, %v3563
        %v3628 = vsub.f32 %v3365, %v3564
        %v3629 = vsub.f32 %v3366, %v3565
        %v3630 = vsub.f32 %v3367, %v3566
        %v3631 = vsub.f32 %v3368, %v3567
        %v3632 = vsub.f32 %v3369, %v3568
        %v3633 = vsub.f32 %v3370, %v3569
        %v3634 = vsub.f32 %v3371, %v3570
        %v3635 = vsub.f32 %v3372, %v3571
        %v3636 = vsub.f32 %v3373, %v3572
        %v3637 = vsub.f32 %v3374, %v3573
        %v3638 = vsub.f32 %v3375, %v3574
        %v3639 = vsub.f32 %v3376, %v3575
        %v3640 = vsub.f32 %v3377, %v3576
        %v3641 = vsub.f32 %v3378, %v3577
        %v3642 = vsub.f32 %v3379, %v3578
        %v3643 = vsub.f32 %v3380, %v3579
        %v3644 = vsub.f32 %v3381, %v3580
        %v3645 = vsub.f32 %v3382, %v3581
        %v3646 = vsub.f32 %v3383, %v3582
        %v3647 = vsub.f32 %v3384, %v3583
        %v3648 = vsub.f32 %v3385, %v3584
        %v3649 = vsub.f32 %v3386, %v3585
        %v3650 = vsub.f32 %v3387, %v3586
        %v3651 = vsub.f32 %v3388, %v3587
        %v3652 = vsub.f32 %v3389, %v3588
        %v3653 = vsub.f32 %v3390, %v3589
        %v3654 = vsub.f32 %v3391, %v3590
        %v3655 = vsub.f32 %v3392, %v3591
        %v3656 = vsub.f32 %v3393, %v3592
        %v3657 = vsub.f32 %v3394, %v3593
        %v3658 = vsub.f32 %v3395, %v3594
        %v3659 = vsub.f32 %v3396, %v3595
        %v3660 = vsub.f32 %v3397, %v3596
        %v3661 = vsub.f32 %v3398, %v3597
        %v3662 = vsub.f32 %v3399, %v3598
        %v3663 = vsub.f32 %v3400, %v3599
        %v3664 = vsub.f32 %v3401, %v3600
        %v3665 = vsub.f32 %v3402, %v3601
        %v3666 = vsub.f32 %v3403, %v3602
        %v3667 = vsub.f32 %v3404, %v3603
        %v3668 = vsub.f32 %v3405, %v3604
        %v3669 = vsub.f32 %v3406, %v3605
        %v3670 = vsub.f32 %v3407, %v3606
        %v3671 = vsub.f32 %v3408, %v3607
        %v3672 = vsub.f32 %v3409, %v3608
        %v3673 = vsub.f32 %v3410, %v3609
        %v3674 = vsub.f32 %v3411, %v3610
        %v3675 = vsub.f32 %v3412, %v3611
        %v3676 = vsub.f32 %v3413, %v3612
        %v3677 = vsub.f32 %v3414, %v3613
        %v3678 = vsub.f32 %v3415, %v3614
        %v3679 = vsub.f32 %v3416, %v3615
        %v3680 = vsub.f32 %v3417, %v3616
        %v3681 = vsub.f32 %v3418, %v3617
        %v3682 = vsub.f32 %v3419, %v3618
        %v3683 = vsub.f32 %v3420, %v3619
        %v3684 = vsub.f32 %v3421, %v3620
        %v3685 = vsub.f32 %v3422, %v3621
        %v3686 = vsub.f32 %v3423, %v3622
        %v3687 = vsub.f32 %v3424, %v3623
        %v3688 = vsub.f32 %v3425, %v3624
        %v3689 = vsub.f32 %v3426, %v3625
        %v3690 = vsub.f32 %v3427, %v3626
        %v3691 = vsub.f32 %v3428, %v3627
        %v3692 = vmul.f32 %v3628, %v3628
        %v3693 = vmul.f32 %v3629, %v3629
        %v3694 = vmul.f32 %v3630, %v3630
        %v3695 = vmul.f32 %v3631, %v3631
        %v3696 = vmul.f32 %v3632, %v3632
        %v3697 = vmul.f32 %v3633, %v3633
        %v3698 = vmul.f32 %v3634, %v3634
        %v3699 = vmul.f32 %v3635, %v3635
        %v3700 = vmul.f32 %v3636, %v3636
        %v3701 = vmul.f32 %v3637, %v3637
        %v3702 = vmul.f32 %v3638, %v3638
        %v3703 = vmul.f32 %v3639, %v3639
        %v3704 = vmul.f32 %v3640, %v3640
        %v3705 = vmul.f32 %v3641, %v3641
        %v3706 = vmul.f32 %v3642, %v3642
        %v3707 = vmul.f32 %v3643, %v3643
        %v3708 = vmul.f32 %v3644, %v3644
        %v3709 = vmul.f32 %v3645, %v3645
        %v3710 = vmul.f32 %v3646, %v3646
        %v3711 = vmul.f32 %v3647, %v3647
        %v3712 = vmul.f32 %v3648, %v3648
        %v3713 = vmul.f32 %v3649, %v3649
        %v3714 = vmul.f32 %v3650, %v3650
        %v3715 = vmul.f32 %v3651, %v3651
        %v3716 = vmul.f32 %v3652, %v3652
        %v3717 = vmul.f32 %v3653, %v3653
        %v3718 = vmul.f32 %v3654, %v3654
        %v3719 = vmul.f32 %v3655, %v3655
        %v3720 = vmul.f32 %v3656, %v3656
        %v3721 = vmul.f32 %v3657, %v3657
        %v3722 = vmul.f32 %v3658, %v3658
        %v3723 = vmul.f32 %v3659, %v3659
        %v3724 = vmul.f32 %v3660, %v3660
        %v3725 = vmul.f32 %v3661, %v3661
        %v3726 = vmul.f32 %v3662, %v3662
        %v3727 = vmul.f32 %v3663, %v3663
        %v3728 = vmul.f32 %v3664, %v3664
        %v3729 = vmul.f32 %v3665, %v3665
        %v3730 = vmul.f32 %v3666, %v3666
        %v3731 = vmul.f32 %v3667, %v3667
        %v3732 = vmul.f32 %v3668, %v3668
        %v3733 = vmul.f32 %v3669, %v3669
        %v3734 = vmul.f32 %v3670, %v3670
        %v3735 = vmul.f32 %v3671, %v3671
        %v3736 = vmul.f32 %v3672, %v3672
        %v3737 = vmul.f32 %v3673, %v3673
        %v3738 = vmul.f32 %v3674, %v3674
        %v3739 = vmul.f32 %v3675, %v3675
        %v3740 = vmul.f32 %v3676, %v3676
        %v3741 = vmul.f32 %v3677, %v3677
        %v3742 = vmul.f32 %v3678, %v3678
        %v3743 = vmul.f32 %v3679, %v3679
        %v3744 = vmul.f32 %v3680, %v3680
        %v3745 = vmul.f32 %v3681, %v3681
        %v3746 = vmul.f32 %v3682, %v3682
        %v3747 = vmul.f32 %v3683, %v3683
        %v3748 = vmul.f32 %v3684, %v3684
        %v3749 = vmul.f32 %v3685, %v3685
        %v3750 = vmul.f32 %v3686, %v3686
        %v3751 = vmul.f32 %v3687, %v3687
        %v3752 = vmul.f32 %v3688, %v3688
        %v3753 = vmul.f32 %v3689, %v3689
        %v3754 = vmul.f32 %v3690, %v3690
        %v3755 = vmul.f32 %v3691, %v3691
        %3756 = vadd.xlane.f32.xlu0 %v3692
        %v3757 = vpop.xlane.xlu0 %3756
        %3758 = vadd.xlane.f32.xlu0 %v3693
        %v3759 = vpop.xlane.xlu0 %3758
        %3760 = vadd.xlane.f32.xlu0 %v3694
        %v3761 = vpop.xlane.xlu0 %3760
        %3762 = vadd.xlane.f32.xlu0 %v3695
        %v3763 = vpop.xlane.xlu0 %3762
        %3764 = vadd.xlane.f32.xlu0 %v3696
        %v3765 = vpop.xlane.xlu0 %3764
        %3766 = vadd.xlane.f32.xlu0 %v3697
        %v3767 = vpop.xlane.xlu0 %3766
        %3768 = vadd.xlane.f32.xlu0 %v3698
        %v3769 = vpop.xlane.xlu0 %3768
        %3770 = vadd.xlane.f32.xlu0 %v3699
        %v3771 = vpop.xlane.xlu0 %3770
        %3772 = vadd.xlane.f32.xlu0 %v3700
        %v3773 = vpop.xlane.xlu0 %3772
        %3774 = vadd.xlane.f32.xlu0 %v3701
        %v3775 = vpop.xlane.xlu0 %3774
        %3776 = vadd.xlane.f32.xlu0 %v3702
        %v3777 = vpop.xlane.xlu0 %3776
        %3778 = vadd.xlane.f32.xlu0 %v3703
        %v3779 = vpop.xlane.xlu0 %3778
        %3780 = vadd.xlane.f32.xlu0 %v3704
        %v3781 = vpop.xlane.xlu0 %3780
        %3782 = vadd.xlane.f32.xlu0 %v3705
        %v3783 = vpop.xlane.xlu0 %3782
        %3784 = vadd.xlane.f32.xlu0 %v3706
        %v3785 = vpop.xlane.xlu0 %3784
        %3786 = vadd.xlane.f32.xlu0 %v3707
        %v3787 = vpop.xlane.xlu0 %3786
        %3788 = vadd.xlane.f32.xlu0 %v3708
        %v3789 = vpop.xlane.xlu0 %3788
        %3790 = vadd.xlane.f32.xlu0 %v3709
        %v3791 = vpop.xlane.xlu0 %3790
        %3792 = vadd.xlane.f32.xlu0 %v3710
        %v3793 = vpop.xlane.xlu0 %3792
        %3794 = vadd.xlane.f32.xlu0 %v3711
        %v3795 = vpop.xlane.xlu0 %3794
        %3796 = vadd.xlane.f32.xlu0 %v3712
        %v3797 = vpop.xlane.xlu0 %3796
        %3798 = vadd.xlane.f32.xlu0 %v3713
        %v3799 = vpop.xlane.xlu0 %3798
        %3800 = vadd.xlane.f32.xlu0 %v3714
        %v3801 = vpop.xlane.xlu0 %3800
        %3802 = vadd.xlane.f32.xlu0 %v3715
        %v3803 = vpop.xlane.xlu0 %3802
        %3804 = vadd.xlane.f32.xlu0 %v3716
        %v3805 = vpop.xlane.xlu0 %3804
        %3806 = vadd.xlane.f32.xlu0 %v3717
        %v3807 = vpop.xlane.xlu0 %3806
        %3808 = vadd.xlane.f32.xlu0 %v3718
        %v3809 = vpop.xlane.xlu0 %3808
        %3810 = vadd.xlane.f32.xlu0 %v3719
        %v3811 = vpop.xlane.xlu0 %3810
        %3812 = vadd.xlane.f32.xlu0 %v3720
        %v3813 = vpop.xlane.xlu0 %3812
        %3814 = vadd.xlane.f32.xlu0 %v3721
        %v3815 = vpop.xlane.xlu0 %3814
        %3816 = vadd.xlane.f32.xlu0 %v3722
        %v3817 = vpop.xlane.xlu0 %3816
        %3818 = vadd.xlane.f32.xlu0 %v3723
        %v3819 = vpop.xlane.xlu0 %3818
        %3820 = vadd.xlane.f32.xlu0 %v3724
        %v3821 = vpop.xlane.xlu0 %3820
        %3822 = vadd.xlane.f32.xlu0 %v3725
        %v3823 = vpop.xlane.xlu0 %3822
        %3824 = vadd.xlane.f32.xlu0 %v3726
        %v3825 = vpop.xlane.xlu0 %3824
        %3826 = vadd.xlane.f32.xlu0 %v3727
        %v3827 = vpop.xlane.xlu0 %3826
        %3828 = vadd.xlane.f32.xlu0 %v3728
        %v3829 = vpop.xlane.xlu0 %3828
        %3830 = vadd.xlane.f32.xlu0 %v3729
        %v3831 = vpop.xlane.xlu0 %3830
        %3832 = vadd.xlane.f32.xlu0 %v3730
        %v3833 = vpop.xlane.xlu0 %3832
        %3834 = vadd.xlane.f32.xlu0 %v3731
        %v3835 = vpop.xlane.xlu0 %3834
        %3836 = vadd.xlane.f32.xlu0 %v3732
        %v3837 = vpop.xlane.xlu0 %3836
        %3838 = vadd.xlane.f32.xlu0 %v3733
        %v3839 = vpop.xlane.xlu0 %3838
        %3840 = vadd.xlane.f32.xlu0 %v3734
        %v3841 = vpop.xlane.xlu0 %3840
        %3842 = vadd.xlane.f32.xlu0 %v3735
        %v3843 = vpop.xlane.xlu0 %3842
        %3844 = vadd.xlane.f32.xlu0 %v3736
        %v3845 = vpop.xlane.xlu0 %3844
        %3846 = vadd.xlane.f32.xlu0 %v3737
        %v3847 = vpop.xlane.xlu0 %3846
        %3848 = vadd.xlane.f32.xlu0 %v3738
        %v3849 = vpop.xlane.xlu0 %3848
        %3850 = vadd.xlane.f32.xlu0 %v3739
        %v3851 = vpop.xlane.xlu0 %3850
        %3852 = vadd.xlane.f32.xlu0 %v3740
        %v3853 = vpop.xlane.xlu0 %3852
        %3854 = vadd.xlane.f32.xlu0 %v3741
        %v3855 = vpop.xlane.xlu0 %3854
        %3856 = vadd.xlane.f32.xlu0 %v3742
        %v3857 = vpop.xlane.xlu0 %3856
        %3858 = vadd.xlane.f32.xlu0 %v3743
        %v3859 = vpop.xlane.xlu0 %3858
        %3860 = vadd.xlane.f32.xlu0 %v3744
        %v3861 = vpop.xlane.xlu0 %3860
        %3862 = vadd.xlane.f32.xlu0 %v3745
        %v3863 = vpop.xlane.xlu0 %3862
        %3864 = vadd.xlane.f32.xlu0 %v3746
        %v3865 = vpop.xlane.xlu0 %3864
        %3866 = vadd.xlane.f32.xlu0 %v3747
        %v3867 = vpop.xlane.xlu0 %3866
        %3868 = vadd.xlane.f32.xlu0 %v3748
        %v3869 = vpop.xlane.xlu0 %3868
        %3870 = vadd.xlane.f32.xlu0 %v3749
        %v3871 = vpop.xlane.xlu0 %3870
        %3872 = vadd.xlane.f32.xlu0 %v3750
        %v3873 = vpop.xlane.xlu0 %3872
        %3874 = vadd.xlane.f32.xlu0 %v3751
        %v3875 = vpop.xlane.xlu0 %3874
        %3876 = vadd.xlane.f32.xlu0 %v3752
        %v3877 = vpop.xlane.xlu0 %3876
        %3878 = vadd.xlane.f32.xlu0 %v3753
        %v3879 = vpop.xlane.xlu0 %3878
        %3880 = vadd.xlane.f32.xlu0 %v3754
        %v3881 = vpop.xlane.xlu0 %3880
        %3882 = vadd.xlane.f32.xlu0 %v3755
        %v3883 = vpop.xlane.xlu0 %3882
        %v3884 = vmul.f32 %v3757, %v3563
        %v3885 = vmul.f32 %v3759, %v3563
        %v3886 = vmul.f32 %v3761, %v3563
        %v3887 = vmul.f32 %v3763, %v3563
        %v3888 = vmul.f32 %v3765, %v3563
        %v3889 = vmul.f32 %v3767, %v3563
        %v3890 = vmul.f32 %v3769, %v3563
        %v3891 = vmul.f32 %v3771, %v3563
        %v3892 = vmul.f32 %v3773, %v3563
        %v3893 = vmul.f32 %v3775, %v3563
        %v3894 = vmul.f32 %v3777, %v3563
        %v3895 = vmul.f32 %v3779, %v3563
        %v3896 = vmul.f32 %v3781, %v3563
        %v3897 = vmul.f32 %v3783, %v3563
        %v3898 = vmul.f32 %v3785, %v3563
        %v3899 = vmul.f32 %v3787, %v3563
        %v3900 = vmul.f32 %v3789, %v3563
        %v3901 = vmul.f32 %v3791, %v3563
        %v3902 = vmul.f32 %v3793, %v3563
        %v3903 = vmul.f32 %v3795, %v3563
        %v3904 = vmul.f32 %v3797, %v3563
        %v3905 = vmul.f32 %v3799, %v3563
        %v3906 = vmul.f32 %v3801, %v3563
        %v3907 = vmul.f32 %v3803, %v3563
        %v3908 = vmul.f32 %v3805, %v3563
        %v3909 = vmul.f32 %v3807, %v3563
        %v3910 = vmul.f32 %v3809, %v3563
        %v3911 = vmul.f32 %v3811, %v3563
        %v3912 = vmul.f32 %v3813, %v3563
        %v3913 = vmul.f32 %v3815, %v3563
        %v3914 = vmul.f32 %v3817, %v3563
        %v3915 = vmul.f32 %v3819, %v3563
        %v3916 = vmul.f32 %v3821, %v3563
        %v3917 = vmul.f32 %v3823, %v3563
        %v3918 = vmul.f32 %v3825, %v3563
        %v3919 = vmul.f32 %v3827, %v3563
        %v3920 = vmul.f32 %v3829, %v3563
        %v3921 = vmul.f32 %v3831, %v3563
        %v3922 = vmul.f32 %v3833, %v3563
        %v3923 = vmul.f32 %v3835, %v3563
        %v3924 = vmul.f32 %v3837, %v3563
        %v3925 = vmul.f32 %v3839, %v3563
        %v3926 = vmul.f32 %v3841, %v3563
        %v3927 = vmul.f32 %v3843, %v3563
        %v3928 = vmul.f32 %v3845, %v3563
        %v3929 = vmul.f32 %v3847, %v3563
        %v3930 = vmul.f32 %v3849, %v3563
        %v3931 = vmul.f32 %v3851, %v3563
        %v3932 = vmul.f32 %v3853, %v3563
        %v3933 = vmul.f32 %v3855, %v3563
        %v3934 = vmul.f32 %v3857, %v3563
        %v3935 = vmul.f32 %v3859, %v3563
        %v3936 = vmul.f32 %v3861, %v3563
        %v3937 = vmul.f32 %v3863, %v3563
        %v3938 = vmul.f32 %v3865, %v3563
        %v3939 = vmul.f32 %v3867, %v3563
        %v3940 = vmul.f32 %v3869, %v3563
        %v3941 = vmul.f32 %v3871, %v3563
        %v3942 = vmul.f32 %v3873, %v3563
        %v3943 = vmul.f32 %v3875, %v3563
        %v3944 = vmul.f32 %v3877, %v3563
        %v3945 = vmul.f32 %v3879, %v3563
        %v3946 = vmul.f32 %v3881, %v3563
        %v3947 = vmul.f32 %v3883, %v3563
        %v3948 = vadd.f32 %v3884, 1e-12
        %v3949 = vadd.f32 %v3885, 1e-12
        %v3950 = vadd.f32 %v3886, 1e-12
        %v3951 = vadd.f32 %v3887, 1e-12
        %v3952 = vadd.f32 %v3888, 1e-12
        %v3953 = vadd.f32 %v3889, 1e-12
        %v3954 = vadd.f32 %v3890, 1e-12
        %v3955 = vadd.f32 %v3891, 1e-12
        %v3956 = vadd.f32 %v3892, 1e-12
        %v3957 = vadd.f32 %v3893, 1e-12
        %v3958 = vadd.f32 %v3894, 1e-12
        %v3959 = vadd.f32 %v3895, 1e-12
        %v3960 = vadd.f32 %v3896, 1e-12
        %v3961 = vadd.f32 %v3897, 1e-12
        %v3962 = vadd.f32 %v3898, 1e-12
        %v3963 = vadd.f32 %v3899, 1e-12
        %v3964 = vadd.f32 %v3900, 1e-12
        %v3965 = vadd.f32 %v3901, 1e-12
        %v3966 = vadd.f32 %v3902, 1e-12
        %v3967 = vadd.f32 %v3903, 1e-12
        %v3968 = vadd.f32 %v3904, 1e-12
        %v3969 = vadd.f32 %v3905, 1e-12
        %v3970 = vadd.f32 %v3906, 1e-12
        %v3971 = vadd.f32 %v3907, 1e-12
        %v3972 = vadd.f32 %v3908, 1e-12
        %v3973 = vadd.f32 %v3909, 1e-12
        %v3974 = vadd.f32 %v3910, 1e-12
        %v3975 = vadd.f32 %v3911, 1e-12
        %v3976 = vadd.f32 %v3912, 1e-12
        %v3977 = vadd.f32 %v3913, 1e-12
        %v3978 = vadd.f32 %v3914, 1e-12
        %v3979 = vadd.f32 %v3915, 1e-12
        %v3980 = vadd.f32 %v3916, 1e-12
        %v3981 = vadd.f32 %v3917, 1e-12
        %v3982 = vadd.f32 %v3918, 1e-12
        %v3983 = vadd.f32 %v3919, 1e-12
        %v3984 = vadd.f32 %v3920, 1e-12
        %v3985 = vadd.f32 %v3921, 1e-12
        %v3986 = vadd.f32 %v3922, 1e-12
        %v3987 = vadd.f32 %v3923, 1e-12
        %v3988 = vadd.f32 %v3924, 1e-12
        %v3989 = vadd.f32 %v3925, 1e-12
        %v3990 = vadd.f32 %v3926, 1e-12
        %v3991 = vadd.f32 %v3927, 1e-12
        %v3992 = vadd.f32 %v3928, 1e-12
        %v3993 = vadd.f32 %v3929, 1e-12
        %v3994 = vadd.f32 %v3930, 1e-12
        %v3995 = vadd.f32 %v3931, 1e-12
        %v3996 = vadd.f32 %v3932, 1e-12
        %v3997 = vadd.f32 %v3933, 1e-12
        %v3998 = vadd.f32 %v3934, 1e-12
        %v3999 = vadd.f32 %v3935, 1e-12
        %v4000 = vadd.f32 %v3936, 1e-12
        %v4001 = vadd.f32 %v3937, 1e-12
        %v4002 = vadd.f32 %v3938, 1e-12
        %v4003 = vadd.f32 %v3939, 1e-12
        %v4004 = vadd.f32 %v3940, 1e-12
        %v4005 = vadd.f32 %v3941, 1e-12
        %v4006 = vadd.f32 %v3942, 1e-12
        %v4007 = vadd.f32 %v3943, 1e-12
        %v4008 = vadd.f32 %v3944, 1e-12
        %v4009 = vadd.f32 %v3945, 1e-12
        %v4010 = vadd.f32 %v3946, 1e-12
        %v4011 = vadd.f32 %v3947, 1e-12
        %v4012 = vrsqrt.pop %v3948
        %v4013 = vmul.f32 %v4012, %v3948
        %v4014 = vmul.f32 %v4013, %v4012
        %v4015 = vmul.f32 0.5, %v4014
        %v4016 = vsub.f32 1.5, %v4015
        %v4017 = vmul.f32 %v4012, %v4016
        %vm4018 = vweird.f32 %v3948
        %vm4019 = vweird.f32 %v4012
        %vm4020 = vmor %vm4018, %vm4019
        %v4021 = vsel %vm4020, %v4012, %v4017
        %v4022 = vrsqrt.pop %v3949
        %v4023 = vmul.f32 %v4022, %v3949
        %v4024 = vmul.f32 %v4023, %v4022
        %v4025 = vmul.f32 0.5, %v4024
        %v4026 = vsub.f32 1.5, %v4025
        %v4027 = vmul.f32 %v4022, %v4026
        %vm4028 = vweird.f32 %v3949
        %vm4029 = vweird.f32 %v4022
        %vm4030 = vmor %vm4028, %vm4029
        %v4031 = vsel %vm4030, %v4022, %v4027
        %v4032 = vrsqrt.pop %v3950
        %v4033 = vmul.f32 %v4032, %v3950
        %v4034 = vmul.f32 %v4033, %v4032
        %v4035 = vmul.f32 0.5, %v4034
        %v4036 = vsub.f32 1.5, %v4035
        %v4037 = vmul.f32 %v4032, %v4036
        %vm4038 = vweird.f32 %v3950
        %vm4039 = vweird.f32 %v4032
        %vm4040 = vmor %vm4038, %vm4039
        %v4041 = vsel %vm4040, %v4032, %v4037
        %v4042 = vrsqrt.pop %v3951
        %v4043 = vmul.f32 %v4042, %v3951
        %v4044 = vmul.f32 %v4043, %v4042
        %v4045 = vmul.f32 0.5, %v4044
        %v4046 = vsub.f32 1.5, %v4045
        %v4047 = vmul.f32 %v4042, %v4046
        %vm4048 = vweird.f32 %v3951
        %vm4049 = vweird.f32 %v4042
        %vm4050 = vmor %vm4048, %vm4049
        %v4051 = vsel %vm4050, %v4042, %v4047
        %v4052 = vrsqrt.pop %v3952
        %v4053 = vmul.f32 %v4052, %v3952
        %v4054 = vmul.f32 %v4053, %v4052
        %v4055 = vmul.f32 0.5, %v4054
        %v4056 = vsub.f32 1.5, %v4055
        %v4057 = vmul.f32 %v4052, %v4056
        %vm4058 = vweird.f32 %v3952
        %vm4059 = vweird.f32 %v4052
        %vm4060 = vmor %vm4058, %vm4059
        %v4061 = vsel %vm4060, %v4052, %v4057
        %v4062 = vrsqrt.pop %v3953
        %v4063 = vmul.f32 %v4062, %v3953
        %v4064 = vmul.f32 %v4063, %v4062
        %v4065 = vmul.f32 0.5, %v4064
        %v4066 = vsub.f32 1.5, %v4065
        %v4067 = vmul.f32 %v4062, %v4066
        %vm4068 = vweird.f32 %v3953
        %vm4069 = vweird.f32 %v4062
        %vm4070 = vmor %vm4068, %vm4069
        %v4071 = vsel %vm4070, %v4062, %v4067
        %v4072 = vrsqrt.pop %v3954
        %v4073 = vmul.f32 %v4072, %v3954
        %v4074 = vmul.f32 %v4073, %v4072
        %v4075 = vmul.f32 0.5, %v4074
        %v4076 = vsub.f32 1.5, %v4075
        %v4077 = vmul.f32 %v4072, %v4076
        %vm4078 = vweird.f32 %v3954
        %vm4079 = vweird.f32 %v4072
        %vm4080 = vmor %vm4078, %vm4079
        %v4081 = vsel %vm4080, %v4072, %v4077
        %v4082 = vrsqrt.pop %v3955
        %v4083 = vmul.f32 %v4082, %v3955
        %v4084 = vmul.f32 %v4083, %v4082
        %v4085 = vmul.f32 0.5, %v4084
        %v4086 = vsub.f32 1.5, %v4085
        %v4087 = vmul.f32 %v4082, %v4086
        %vm4088 = vweird.f32 %v3955
        %vm4089 = vweird.f32 %v4082
        %vm4090 = vmor %vm4088, %vm4089
        %v4091 = vsel %vm4090, %v4082, %v4087
        %v4092 = vrsqrt.pop %v3956
        %v4093 = vmul.f32 %v4092, %v3956
        %v4094 = vmul.f32 %v4093, %v4092
        %v4095 = vmul.f32 0.5, %v4094
        %v4096 = vsub.f32 1.5, %v4095
        %v4097 = vmul.f32 %v4092, %v4096
        %vm4098 = vweird.f32 %v3956
        %vm4099 = vweird.f32 %v4092
        %vm4100 = vmor %vm4098, %vm4099
        %v4101 = vsel %vm4100, %v4092, %v4097
        %v4102 = vrsqrt.pop %v3957
        %v4103 = vmul.f32 %v4102, %v3957
        %v4104 = vmul.f32 %v4103, %v4102
        %v4105 = vmul.f32 0.5, %v4104
        %v4106 = vsub.f32 1.5, %v4105
        %v4107 = vmul.f32 %v4102, %v4106
        %vm4108 = vweird.f32 %v3957
        %vm4109 = vweird.f32 %v4102
        %vm4110 = vmor %vm4108, %vm4109
        %v4111 = vsel %vm4110, %v4102, %v4107
        %v4112 = vrsqrt.pop %v3958
        %v4113 = vmul.f32 %v4112, %v3958
        %v4114 = vmul.f32 %v4113, %v4112
        %v4115 = vmul.f32 0.5, %v4114
        %v4116 = vsub.f32 1.5, %v4115
        %v4117 = vmul.f32 %v4112, %v4116
        %vm4118 = vweird.f32 %v3958
        %vm4119 = vweird.f32 %v4112
        %vm4120 = vmor %vm4118, %vm4119
        %v4121 = vsel %vm4120, %v4112, %v4117
        %v4122 = vrsqrt.pop %v3959
        %v4123 = vmul.f32 %v4122, %v3959
        %v4124 = vmul.f32 %v4123, %v4122
        %v4125 = vmul.f32 0.5, %v4124
        %v4126 = vsub.f32 1.5, %v4125
        %v4127 = vmul.f32 %v4122, %v4126
        %vm4128 = vweird.f32 %v3959
        %vm4129 = vweird.f32 %v4122
        %vm4130 = vmor %vm4128, %vm4129
        %v4131 = vsel %vm4130, %v4122, %v4127
        %v4132 = vrsqrt.pop %v3960
        %v4133 = vmul.f32 %v4132, %v3960
        %v4134 = vmul.f32 %v4133, %v4132
        %v4135 = vmul.f32 0.5, %v4134
        %v4136 = vsub.f32 1.5, %v4135
        %v4137 = vmul.f32 %v4132, %v4136
        %vm4138 = vweird.f32 %v3960
        %vm4139 = vweird.f32 %v4132
        %vm4140 = vmor %vm4138, %vm4139
        %v4141 = vsel %vm4140, %v4132, %v4137
        %v4142 = vrsqrt.pop %v3961
        %v4143 = vmul.f32 %v4142, %v3961
        %v4144 = vmul.f32 %v4143, %v4142
        %v4145 = vmul.f32 0.5, %v4144
        %v4146 = vsub.f32 1.5, %v4145
        %v4147 = vmul.f32 %v4142, %v4146
        %vm4148 = vweird.f32 %v3961
        %vm4149 = vweird.f32 %v4142
        %vm4150 = vmor %vm4148, %vm4149
        %v4151 = vsel %vm4150, %v4142, %v4147
        %v4152 = vrsqrt.pop %v3962
        %v4153 = vmul.f32 %v4152, %v3962
        %v4154 = vmul.f32 %v4153, %v4152
        %v4155 = vmul.f32 0.5, %v4154
        %v4156 = vsub.f32 1.5, %v4155
        %v4157 = vmul.f32 %v4152, %v4156
        %vm4158 = vweird.f32 %v3962
        %vm4159 = vweird.f32 %v4152
        %vm4160 = vmor %vm4158, %vm4159
        %v4161 = vsel %vm4160, %v4152, %v4157
        %v4162 = vrsqrt.pop %v3963
        %v4163 = vmul.f32 %v4162, %v3963
        %v4164 = vmul.f32 %v4163, %v4162
        %v4165 = vmul.f32 0.5, %v4164
        %v4166 = vsub.f32 1.5, %v4165
        %v4167 = vmul.f32 %v4162, %v4166
        %vm4168 = vweird.f32 %v3963
        %vm4169 = vweird.f32 %v4162
        %vm4170 = vmor %vm4168, %vm4169
        %v4171 = vsel %vm4170, %v4162, %v4167
        %v4172 = vrsqrt.pop %v3964
        %v4173 = vmul.f32 %v4172, %v3964
        %v4174 = vmul.f32 %v4173, %v4172
        %v4175 = vmul.f32 0.5, %v4174
        %v4176 = vsub.f32 1.5, %v4175
        %v4177 = vmul.f32 %v4172, %v4176
        %vm4178 = vweird.f32 %v3964
        %vm4179 = vweird.f32 %v4172
        %vm4180 = vmor %vm4178, %vm4179
        %v4181 = vsel %vm4180, %v4172, %v4177
        %v4182 = vrsqrt.pop %v3965
        %v4183 = vmul.f32 %v4182, %v3965
        %v4184 = vmul.f32 %v4183, %v4182
        %v4185 = vmul.f32 0.5, %v4184
        %v4186 = vsub.f32 1.5, %v4185
        %v4187 = vmul.f32 %v4182, %v4186
        %vm4188 = vweird.f32 %v3965
        %vm4189 = vweird.f32 %v4182
        %vm4190 = vmor %vm4188, %vm4189
        %v4191 = vsel %vm4190, %v4182, %v4187
        %v4192 = vrsqrt.pop %v3966
        %v4193 = vmul.f32 %v4192, %v3966
        %v4194 = vmul.f32 %v4193, %v4192
        %v4195 = vmul.f32 0.5, %v4194
        %v4196 = vsub.f32 1.5, %v4195
        %v4197 = vmul.f32 %v4192, %v4196
        %vm4198 = vweird.f32 %v3966
        %vm4199 = vweird.f32 %v4192
        %vm4200 = vmor %vm4198, %vm4199
        %v4201 = vsel %vm4200, %v4192, %v4197
        %v4202 = vrsqrt.pop %v3967
        %v4203 = vmul.f32 %v4202, %v3967
        %v4204 = vmul.f32 %v4203, %v4202
        %v4205 = vmul.f32 0.5, %v4204
        %v4206 = vsub.f32 1.5, %v4205
        %v4207 = vmul.f32 %v4202, %v4206
        %vm4208 = vweird.f32 %v3967
        %vm4209 = vweird.f32 %v4202
        %vm4210 = vmor %vm4208, %vm4209
        %v4211 = vsel %vm4210, %v4202, %v4207
        %v4212 = vrsqrt.pop %v3968
        %v4213 = vmul.f32 %v4212, %v3968
        %v4214 = vmul.f32 %v4213, %v4212
        %v4215 = vmul.f32 0.5, %v4214
        %v4216 = vsub.f32 1.5, %v4215
        %v4217 = vmul.f32 %v4212, %v4216
        %vm4218 = vweird.f32 %v3968
        %vm4219 = vweird.f32 %v4212
        %vm4220 = vmor %vm4218, %vm4219
        %v4221 = vsel %vm4220, %v4212, %v4217
        %v4222 = vrsqrt.pop %v3969
        %v4223 = vmul.f32 %v4222, %v3969
        %v4224 = vmul.f32 %v4223, %v4222
        %v4225 = vmul.f32 0.5, %v4224
        %v4226 = vsub.f32 1.5, %v4225
        %v4227 = vmul.f32 %v4222, %v4226
        %vm4228 = vweird.f32 %v3969
        %vm4229 = vweird.f32 %v4222
        %vm4230 = vmor %vm4228, %vm4229
        %v4231 = vsel %vm4230, %v4222, %v4227
        %v4232 = vrsqrt.pop %v3970
        %v4233 = vmul.f32 %v4232, %v3970
        %v4234 = vmul.f32 %v4233, %v4232
        %v4235 = vmul.f32 0.5, %v4234
        %v4236 = vsub.f32 1.5, %v4235
        %v4237 = vmul.f32 %v4232, %v4236
        %vm4238 = vweird.f32 %v3970
        %vm4239 = vweird.f32 %v4232
        %vm4240 = vmor %vm4238, %vm4239
        %v4241 = vsel %vm4240, %v4232, %v4237
        %v4242 = vrsqrt.pop %v3971
        %v4243 = vmul.f32 %v4242, %v3971
        %v4244 = vmul.f32 %v4243, %v4242
        %v4245 = vmul.f32 0.5, %v4244
        %v4246 = vsub.f32 1.5, %v4245
        %v4247 = vmul.f32 %v4242, %v4246
        %vm4248 = vweird.f32 %v3971
        %vm4249 = vweird.f32 %v4242
        %vm4250 = vmor %vm4248, %vm4249
        %v4251 = vsel %vm4250, %v4242, %v4247
        %v4252 = vrsqrt.pop %v3972
        %v4253 = vmul.f32 %v4252, %v3972
        %v4254 = vmul.f32 %v4253, %v4252
        %v4255 = vmul.f32 0.5, %v4254
        %v4256 = vsub.f32 1.5, %v4255
        %v4257 = vmul.f32 %v4252, %v4256
        %vm4258 = vweird.f32 %v3972
        %vm4259 = vweird.f32 %v4252
        %vm4260 = vmor %vm4258, %vm4259
        %v4261 = vsel %vm4260, %v4252, %v4257
        %v4262 = vrsqrt.pop %v3973
        %v4263 = vmul.f32 %v4262, %v3973
        %v4264 = vmul.f32 %v4263, %v4262
        %v4265 = vmul.f32 0.5, %v4264
        %v4266 = vsub.f32 1.5, %v4265
        %v4267 = vmul.f32 %v4262, %v4266
        %vm4268 = vweird.f32 %v3973
        %vm4269 = vweird.f32 %v4262
        %vm4270 = vmor %vm4268, %vm4269
        %v4271 = vsel %vm4270, %v4262, %v4267
        %v4272 = vrsqrt.pop %v3974
        %v4273 = vmul.f32 %v4272, %v3974
        %v4274 = vmul.f32 %v4273, %v4272
        %v4275 = vmul.f32 0.5, %v4274
        %v4276 = vsub.f32 1.5, %v4275
        %v4277 = vmul.f32 %v4272, %v4276
        %vm4278 = vweird.f32 %v3974
        %vm4279 = vweird.f32 %v4272
        %vm4280 = vmor %vm4278, %vm4279
        %v4281 = vsel %vm4280, %v4272, %v4277
        %v4282 = vrsqrt.pop %v3975
        %v4283 = vmul.f32 %v4282, %v3975
        %v4284 = vmul.f32 %v4283, %v4282
        %v4285 = vmul.f32 0.5, %v4284
        %v4286 = vsub.f32 1.5, %v4285
        %v4287 = vmul.f32 %v4282, %v4286
        %vm4288 = vweird.f32 %v3975
        %vm4289 = vweird.f32 %v4282
        %vm4290 = vmor %vm4288, %vm4289
        %v4291 = vsel %vm4290, %v4282, %v4287
        %v4292 = vrsqrt.pop %v3976
        %v4293 = vmul.f32 %v4292, %v3976
        %v4294 = vmul.f32 %v4293, %v4292
        %v4295 = vmul.f32 0.5, %v4294
        %v4296 = vsub.f32 1.5, %v4295
        %v4297 = vmul.f32 %v4292, %v4296
        %vm4298 = vweird.f32 %v3976
        %vm4299 = vweird.f32 %v4292
        %vm4300 = vmor %vm4298, %vm4299
        %v4301 = vsel %vm4300, %v4292, %v4297
        %v4302 = vrsqrt.pop %v3977
        %v4303 = vmul.f32 %v4302, %v3977
        %v4304 = vmul.f32 %v4303, %v4302
        %v4305 = vmul.f32 0.5, %v4304
        %v4306 = vsub.f32 1.5, %v4305
        %v4307 = vmul.f32 %v4302, %v4306
        %vm4308 = vweird.f32 %v3977
        %vm4309 = vweird.f32 %v4302
        %vm4310 = vmor %vm4308, %vm4309
        %v4311 = vsel %vm4310, %v4302, %v4307
        %v4312 = vrsqrt.pop %v3978
        %v4313 = vmul.f32 %v4312, %v3978
        %v4314 = vmul.f32 %v4313, %v4312
        %v4315 = vmul.f32 0.5, %v4314
        %v4316 = vsub.f32 1.5, %v4315
        %v4317 = vmul.f32 %v4312, %v4316
        %vm4318 = vweird.f32 %v3978
        %vm4319 = vweird.f32 %v4312
        %vm4320 = vmor %vm4318, %vm4319
        %v4321 = vsel %vm4320, %v4312, %v4317
        %v4322 = vrsqrt.pop %v3979
        %v4323 = vmul.f32 %v4322, %v3979
        %v4324 = vmul.f32 %v4323, %v4322
        %v4325 = vmul.f32 0.5, %v4324
        %v4326 = vsub.f32 1.5, %v4325
        %v4327 = vmul.f32 %v4322, %v4326
        %vm4328 = vweird.f32 %v3979
        %vm4329 = vweird.f32 %v4322
        %vm4330 = vmor %vm4328, %vm4329
        %v4331 = vsel %vm4330, %v4322, %v4327
        %v4332 = vrsqrt.pop %v3980
        %v4333 = vmul.f32 %v4332, %v3980
        %v4334 = vmul.f32 %v4333, %v4332
        %v4335 = vmul.f32 0.5, %v4334
        %v4336 = vsub.f32 1.5, %v4335
        %v4337 = vmul.f32 %v4332, %v4336
        %vm4338 = vweird.f32 %v3980
        %vm4339 = vweird.f32 %v4332
        %vm4340 = vmor %vm4338, %vm4339
        %v4341 = vsel %vm4340, %v4332, %v4337
        %v4342 = vrsqrt.pop %v3981
        %v4343 = vmul.f32 %v4342, %v3981
        %v4344 = vmul.f32 %v4343, %v4342
        %v4345 = vmul.f32 0.5, %v4344
        %v4346 = vsub.f32 1.5, %v4345
        %v4347 = vmul.f32 %v4342, %v4346
        %vm4348 = vweird.f32 %v3981
        %vm4349 = vweird.f32 %v4342
        %vm4350 = vmor %vm4348, %vm4349
        %v4351 = vsel %vm4350, %v4342, %v4347
        %v4352 = vrsqrt.pop %v3982
        %v4353 = vmul.f32 %v4352, %v3982
        %v4354 = vmul.f32 %v4353, %v4352
        %v4355 = vmul.f32 0.5, %v4354
        %v4356 = vsub.f32 1.5, %v4355
        %v4357 = vmul.f32 %v4352, %v4356
        %vm4358 = vweird.f32 %v3982
        %vm4359 = vweird.f32 %v4352
        %vm4360 = vmor %vm4358, %vm4359
        %v4361 = vsel %vm4360, %v4352, %v4357
        %v4362 = vrsqrt.pop %v3983
        %v4363 = vmul.f32 %v4362, %v3983
        %v4364 = vmul.f32 %v4363, %v4362
        %v4365 = vmul.f32 0.5, %v4364
        %v4366 = vsub.f32 1.5, %v4365
        %v4367 = vmul.f32 %v4362, %v4366
        %vm4368 = vweird.f32 %v3983
        %vm4369 = vweird.f32 %v4362
        %vm4370 = vmor %vm4368, %vm4369
        %v4371 = vsel %vm4370, %v4362, %v4367
        %v4372 = vrsqrt.pop %v3984
        %v4373 = vmul.f32 %v4372, %v3984
        %v4374 = vmul.f32 %v4373, %v4372
        %v4375 = vmul.f32 0.5, %v4374
        %v4376 = vsub.f32 1.5, %v4375
        %v4377 = vmul.f32 %v4372, %v4376
        %vm4378 = vweird.f32 %v3984
        %vm4379 = vweird.f32 %v4372
        %vm4380 = vmor %vm4378, %vm4379
        %v4381 = vsel %vm4380, %v4372, %v4377
        %v4382 = vrsqrt.pop %v3985
        %v4383 = vmul.f32 %v4382, %v3985
        %v4384 = vmul.f32 %v4383, %v4382
        %v4385 = vmul.f32 0.5, %v4384
        %v4386 = vsub.f32 1.5, %v4385
        %v4387 = vmul.f32 %v4382, %v4386
        %vm4388 = vweird.f32 %v3985
        %vm4389 = vweird.f32 %v4382
        %vm4390 = vmor %vm4388, %vm4389
        %v4391 = vsel %vm4390, %v4382, %v4387
        %v4392 = vrsqrt.pop %v3986
        %v4393 = vmul.f32 %v4392, %v3986
        %v4394 = vmul.f32 %v4393, %v4392
        %v4395 = vmul.f32 0.5, %v4394
        %v4396 = vsub.f32 1.5, %v4395
        %v4397 = vmul.f32 %v4392, %v4396
        %vm4398 = vweird.f32 %v3986
        %vm4399 = vweird.f32 %v4392
        %vm4400 = vmor %vm4398, %vm4399
        %v4401 = vsel %vm4400, %v4392, %v4397
        %v4402 = vrsqrt.pop %v3987
        %v4403 = vmul.f32 %v4402, %v3987
        %v4404 = vmul.f32 %v4403, %v4402
        %v4405 = vmul.f32 0.5, %v4404
        %v4406 = vsub.f32 1.5, %v4405
        %v4407 = vmul.f32 %v4402, %v4406
        %vm4408 = vweird.f32 %v3987
        %vm4409 = vweird.f32 %v4402
        %vm4410 = vmor %vm4408, %vm4409
        %v4411 = vsel %vm4410, %v4402, %v4407
        %v4412 = vrsqrt.pop %v3988
        %v4413 = vmul.f32 %v4412, %v3988
        %v4414 = vmul.f32 %v4413, %v4412
        %v4415 = vmul.f32 0.5, %v4414
        %v4416 = vsub.f32 1.5, %v4415
        %v4417 = vmul.f32 %v4412, %v4416
        %vm4418 = vweird.f32 %v3988
        %vm4419 = vweird.f32 %v4412
        %vm4420 = vmor %vm4418, %vm4419
        %v4421 = vsel %vm4420, %v4412, %v4417
        %v4422 = vrsqrt.pop %v3989
        %v4423 = vmul.f32 %v4422, %v3989
        %v4424 = vmul.f32 %v4423, %v4422
        %v4425 = vmul.f32 0.5, %v4424
        %v4426 = vsub.f32 1.5, %v4425
        %v4427 = vmul.f32 %v4422, %v4426
        %vm4428 = vweird.f32 %v3989
        %vm4429 = vweird.f32 %v4422
        %vm4430 = vmor %vm4428, %vm4429
        %v4431 = vsel %vm4430, %v4422, %v4427
        %v4432 = vrsqrt.pop %v3990
        %v4433 = vmul.f32 %v4432, %v3990
        %v4434 = vmul.f32 %v4433, %v4432
        %v4435 = vmul.f32 0.5, %v4434
        %v4436 = vsub.f32 1.5, %v4435
        %v4437 = vmul.f32 %v4432, %v4436
        %vm4438 = vweird.f32 %v3990
        %vm4439 = vweird.f32 %v4432
        %vm4440 = vmor %vm4438, %vm4439
        %v4441 = vsel %vm4440, %v4432, %v4437
        %v4442 = vrsqrt.pop %v3991
        %v4443 = vmul.f32 %v4442, %v3991
        %v4444 = vmul.f32 %v4443, %v4442
        %v4445 = vmul.f32 0.5, %v4444
        %v4446 = vsub.f32 1.5, %v4445
        %v4447 = vmul.f32 %v4442, %v4446
        %vm4448 = vweird.f32 %v3991
        %vm4449 = vweird.f32 %v4442
        %vm4450 = vmor %vm4448, %vm4449
        %v4451 = vsel %vm4450, %v4442, %v4447
        %v4452 = vrsqrt.pop %v3992
        %v4453 = vmul.f32 %v4452, %v3992
        %v4454 = vmul.f32 %v4453, %v4452
        %v4455 = vmul.f32 0.5, %v4454
        %v4456 = vsub.f32 1.5, %v4455
        %v4457 = vmul.f32 %v4452, %v4456
        %vm4458 = vweird.f32 %v3992
        %vm4459 = vweird.f32 %v4452
        %vm4460 = vmor %vm4458, %vm4459
        %v4461 = vsel %vm4460, %v4452, %v4457
        %v4462 = vrsqrt.pop %v3993
        %v4463 = vmul.f32 %v4462, %v3993
        %v4464 = vmul.f32 %v4463, %v4462
        %v4465 = vmul.f32 0.5, %v4464
        %v4466 = vsub.f32 1.5, %v4465
        %v4467 = vmul.f32 %v4462, %v4466
        %vm4468 = vweird.f32 %v3993
        %vm4469 = vweird.f32 %v4462
        %vm4470 = vmor %vm4468, %vm4469
        %v4471 = vsel %vm4470, %v4462, %v4467
        %v4472 = vrsqrt.pop %v3994
        %v4473 = vmul.f32 %v4472, %v3994
        %v4474 = vmul.f32 %v4473, %v4472
        %v4475 = vmul.f32 0.5, %v4474
        %v4476 = vsub.f32 1.5, %v4475
        %v4477 = vmul.f32 %v4472, %v4476
        %vm4478 = vweird.f32 %v3994
        %vm4479 = vweird.f32 %v4472
        %vm4480 = vmor %vm4478, %vm4479
        %v4481 = vsel %vm4480, %v4472, %v4477
        %v4482 = vrsqrt.pop %v3995
        %v4483 = vmul.f32 %v4482, %v3995
        %v4484 = vmul.f32 %v4483, %v4482
        %v4485 = vmul.f32 0.5, %v4484
        %v4486 = vsub.f32 1.5, %v4485
        %v4487 = vmul.f32 %v4482, %v4486
        %vm4488 = vweird.f32 %v3995
        %vm4489 = vweird.f32 %v4482
        %vm4490 = vmor %vm4488, %vm4489
        %v4491 = vsel %vm4490, %v4482, %v4487
        %v4492 = vrsqrt.pop %v3996
        %v4493 = vmul.f32 %v4492, %v3996
        %v4494 = vmul.f32 %v4493, %v4492
        %v4495 = vmul.f32 0.5, %v4494
        %v4496 = vsub.f32 1.5, %v4495
        %v4497 = vmul.f32 %v4492, %v4496
        %vm4498 = vweird.f32 %v3996
        %vm4499 = vweird.f32 %v4492
        %vm4500 = vmor %vm4498, %vm4499
        %v4501 = vsel %vm4500, %v4492, %v4497
        %v4502 = vrsqrt.pop %v3997
        %v4503 = vmul.f32 %v4502, %v3997
        %v4504 = vmul.f32 %v4503, %v4502
        %v4505 = vmul.f32 0.5, %v4504
        %v4506 = vsub.f32 1.5, %v4505
        %v4507 = vmul.f32 %v4502, %v4506
        %vm4508 = vweird.f32 %v3997
        %vm4509 = vweird.f32 %v4502
        %vm4510 = vmor %vm4508, %vm4509
        %v4511 = vsel %vm4510, %v4502, %v4507
        %v4512 = vrsqrt.pop %v3998
        %v4513 = vmul.f32 %v4512, %v3998
        %v4514 = vmul.f32 %v4513, %v4512
        %v4515 = vmul.f32 0.5, %v4514
        %v4516 = vsub.f32 1.5, %v4515
        %v4517 = vmul.f32 %v4512, %v4516
        %vm4518 = vweird.f32 %v3998
        %vm4519 = vweird.f32 %v4512
        %vm4520 = vmor %vm4518, %vm4519
        %v4521 = vsel %vm4520, %v4512, %v4517
        %v4522 = vrsqrt.pop %v3999
        %v4523 = vmul.f32 %v4522, %v3999
        %v4524 = vmul.f32 %v4523, %v4522
        %v4525 = vmul.f32 0.5, %v4524
        %v4526 = vsub.f32 1.5, %v4525
        %v4527 = vmul.f32 %v4522, %v4526
        %vm4528 = vweird.f32 %v3999
        %vm4529 = vweird.f32 %v4522
        %vm4530 = vmor %vm4528, %vm4529
        %v4531 = vsel %vm4530, %v4522, %v4527
        %v4532 = vrsqrt.pop %v4000
        %v4533 = vmul.f32 %v4532, %v4000
        %v4534 = vmul.f32 %v4533, %v4532
        %v4535 = vmul.f32 0.5, %v4534
        %v4536 = vsub.f32 1.5, %v4535
        %v4537 = vmul.f32 %v4532, %v4536
        %vm4538 = vweird.f32 %v4000
        %vm4539 = vweird.f32 %v4532
        %vm4540 = vmor %vm4538, %vm4539
        %v4541 = vsel %vm4540, %v4532, %v4537
        %v4542 = vrsqrt.pop %v4001
        %v4543 = vmul.f32 %v4542, %v4001
        %v4544 = vmul.f32 %v4543, %v4542
        %v4545 = vmul.f32 0.5, %v4544
        %v4546 = vsub.f32 1.5, %v4545
        %v4547 = vmul.f32 %v4542, %v4546
        %vm4548 = vweird.f32 %v4001
        %vm4549 = vweird.f32 %v4542
        %vm4550 = vmor %vm4548, %vm4549
        %v4551 = vsel %vm4550, %v4542, %v4547
        %v4552 = vrsqrt.pop %v4002
        %v4553 = vmul.f32 %v4552, %v4002
        %v4554 = vmul.f32 %v4553, %v4552
        %v4555 = vmul.f32 0.5, %v4554
        %v4556 = vsub.f32 1.5, %v4555
        %v4557 = vmul.f32 %v4552, %v4556
        %vm4558 = vweird.f32 %v4002
        %vm4559 = vweird.f32 %v4552
        %vm4560 = vmor %vm4558, %vm4559
        %v4561 = vsel %vm4560, %v4552, %v4557
        %v4562 = vrsqrt.pop %v4003
        %v4563 = vmul.f32 %v4562, %v4003
        %v4564 = vmul.f32 %v4563, %v4562
        %v4565 = vmul.f32 0.5, %v4564
        %v4566 = vsub.f32 1.5, %v4565
        %v4567 = vmul.f32 %v4562, %v4566
        %vm4568 = vweird.f32 %v4003
        %vm4569 = vweird.f32 %v4562
        %vm4570 = vmor %vm4568, %vm4569
        %v4571 = vsel %vm4570, %v4562, %v4567
        %v4572 = vrsqrt.pop %v4004
        %v4573 = vmul.f32 %v4572, %v4004
        %v4574 = vmul.f32 %v4573, %v4572
        %v4575 = vmul.f32 0.5, %v4574
        %v4576 = vsub.f32 1.5, %v4575
        %v4577 = vmul.f32 %v4572, %v4576
        %vm4578 = vweird.f32 %v4004
        %vm4579 = vweird.f32 %v4572
        %vm4580 = vmor %vm4578, %vm4579
        %v4581 = vsel %vm4580, %v4572, %v4577
        %v4582 = vrsqrt.pop %v4005
        %v4583 = vmul.f32 %v4582, %v4005
        %v4584 = vmul.f32 %v4583, %v4582
        %v4585 = vmul.f32 0.5, %v4584
        %v4586 = vsub.f32 1.5, %v4585
        %v4587 = vmul.f32 %v4582, %v4586
        %vm4588 = vweird.f32 %v4005
        %vm4589 = vweird.f32 %v4582
        %vm4590 = vmor %vm4588, %vm4589
        %v4591 = vsel %vm4590, %v4582, %v4587
        %v4592 = vrsqrt.pop %v4006
        %v4593 = vmul.f32 %v4592, %v4006
        %v4594 = vmul.f32 %v4593, %v4592
        %v4595 = vmul.f32 0.5, %v4594
        %v4596 = vsub.f32 1.5, %v4595
        %v4597 = vmul.f32 %v4592, %v4596
        %vm4598 = vweird.f32 %v4006
        %vm4599 = vweird.f32 %v4592
        %vm4600 = vmor %vm4598, %vm4599
        %v4601 = vsel %vm4600, %v4592, %v4597
        %v4602 = vrsqrt.pop %v4007
        %v4603 = vmul.f32 %v4602, %v4007
        %v4604 = vmul.f32 %v4603, %v4602
        %v4605 = vmul.f32 0.5, %v4604
        %v4606 = vsub.f32 1.5, %v4605
        %v4607 = vmul.f32 %v4602, %v4606
        %vm4608 = vweird.f32 %v4007
        %vm4609 = vweird.f32 %v4602
        %vm4610 = vmor %vm4608, %vm4609
        %v4611 = vsel %vm4610, %v4602, %v4607
        %v4612 = vrsqrt.pop %v4008
        %v4613 = vmul.f32 %v4612, %v4008
        %v4614 = vmul.f32 %v4613, %v4612
        %v4615 = vmul.f32 0.5, %v4614
        %v4616 = vsub.f32 1.5, %v4615
        %v4617 = vmul.f32 %v4612, %v4616
        %vm4618 = vweird.f32 %v4008
        %vm4619 = vweird.f32 %v4612
        %vm4620 = vmor %vm4618, %vm4619
        %v4621 = vsel %vm4620, %v4612, %v4617
        %v4622 = vrsqrt.pop %v4009
        %v4623 = vmul.f32 %v4622, %v4009
        %v4624 = vmul.f32 %v4623, %v4622
        %v4625 = vmul.f32 0.5, %v4624
        %v4626 = vsub.f32 1.5, %v4625
        %v4627 = vmul.f32 %v4622, %v4626
        %vm4628 = vweird.f32 %v4009
        %vm4629 = vweird.f32 %v4622
        %vm4630 = vmor %vm4628, %vm4629
        %v4631 = vsel %vm4630, %v4622, %v4627
        %v4632 = vrsqrt.pop %v4010
        %v4633 = vmul.f32 %v4632, %v4010
        %v4634 = vmul.f32 %v4633, %v4632
        %v4635 = vmul.f32 0.5, %v4634
        %v4636 = vsub.f32 1.5, %v4635
        %v4637 = vmul.f32 %v4632, %v4636
        %vm4638 = vweird.f32 %v4010
        %vm4639 = vweird.f32 %v4632
        %vm4640 = vmor %vm4638, %vm4639
        %v4641 = vsel %vm4640, %v4632, %v4637
        %v4642 = vrsqrt.pop %v4011
        %v4643 = vmul.f32 %v4642, %v4011
        %v4644 = vmul.f32 %v4643, %v4642
        %v4645 = vmul.f32 0.5, %v4644
        %v4646 = vsub.f32 1.5, %v4645
        %v4647 = vmul.f32 %v4642, %v4646
        %vm4648 = vweird.f32 %v4011
        %vm4649 = vweird.f32 %v4642
        %vm4650 = vmor %vm4648, %vm4649
        %v4651 = vsel %vm4650, %v4642, %v4647
        %v4652 = vmul.f32 %v3628, %v4021
        %v4653 = vmul.f32 %v3629, %v4031
        %v4654 = vmul.f32 %v3630, %v4041
        %v4655 = vmul.f32 %v3631, %v4051
        %v4656 = vmul.f32 %v3632, %v4061
        %v4657 = vmul.f32 %v3633, %v4071
        %v4658 = vmul.f32 %v3634, %v4081
        %v4659 = vmul.f32 %v3635, %v4091
        %v4660 = vmul.f32 %v3636, %v4101
        %v4661 = vmul.f32 %v3637, %v4111
        %v4662 = vmul.f32 %v3638, %v4121
        %v4663 = vmul.f32 %v3639, %v4131
        %v4664 = vmul.f32 %v3640, %v4141
        %v4665 = vmul.f32 %v3641, %v4151
        %v4666 = vmul.f32 %v3642, %v4161
        %v4667 = vmul.f32 %v3643, %v4171
        %v4668 = vmul.f32 %v3644, %v4181
        %v4669 = vmul.f32 %v3645, %v4191
        %v4670 = vmul.f32 %v3646, %v4201
        %v4671 = vmul.f32 %v3647, %v4211
        %v4672 = vmul.f32 %v3648, %v4221
        %v4673 = vmul.f32 %v3649, %v4231
        %v4674 = vmul.f32 %v3650, %v4241
        %v4675 = vmul.f32 %v3651, %v4251
        %v4676 = vmul.f32 %v3652, %v4261
        %v4677 = vmul.f32 %v3653, %v4271
        %v4678 = vmul.f32 %v3654, %v4281
        %v4679 = vmul.f32 %v3655, %v4291
        %v4680 = vmul.f32 %v3656, %v4301
        %v4681 = vmul.f32 %v3657, %v4311
        %v4682 = vmul.f32 %v3658, %v4321
        %v4683 = vmul.f32 %v3659, %v4331
        %v4684 = vmul.f32 %v3660, %v4341
        %v4685 = vmul.f32 %v3661, %v4351
        %v4686 = vmul.f32 %v3662, %v4361
        %v4687 = vmul.f32 %v3663, %v4371
        %v4688 = vmul.f32 %v3664, %v4381
        %v4689 = vmul.f32 %v3665, %v4391
        %v4690 = vmul.f32 %v3666, %v4401
        %v4691 = vmul.f32 %v3667, %v4411
        %v4692 = vmul.f32 %v3668, %v4421
        %v4693 = vmul.f32 %v3669, %v4431
        %v4694 = vmul.f32 %v3670, %v4441
        %v4695 = vmul.f32 %v3671, %v4451
        %v4696 = vmul.f32 %v3672, %v4461
        %v4697 = vmul.f32 %v3673, %v4471
        %v4698 = vmul.f32 %v3674, %v4481
        %v4699 = vmul.f32 %v3675, %v4491
        %v4700 = vmul.f32 %v3676, %v4501
        %v4701 = vmul.f32 %v3677, %v4511
        %v4702 = vmul.f32 %v3678, %v4521
        %v4703 = vmul.f32 %v3679, %v4531
        %v4704 = vmul.f32 %v3680, %v4541
        %v4705 = vmul.f32 %v3681, %v4551
        %v4706 = vmul.f32 %v3682, %v4561
        %v4707 = vmul.f32 %v3683, %v4571
        %v4708 = vmul.f32 %v3684, %v4581
        %v4709 = vmul.f32 %v3685, %v4591
        %v4710 = vmul.f32 %v3686, %v4601
        %v4711 = vmul.f32 %v3687, %v4611
        %v4712 = vmul.f32 %v3688, %v4621
        %v4713 = vmul.f32 %v3689, %v4631
        %v4714 = vmul.f32 %v3690, %v4641
        %v4715 = vmul.f32 %v3691, %v4651
        %v4716 = vld [vmem:[#allocation14] sm:$0x1]
        %v4718 = vperm.slane %v4716, 0
        %v4720 = vmul.f32 %v4652, %v4718
        %v4721 = vmul.f32 %v4653, %v4718
        %v4722 = vmul.f32 %v4654, %v4718
        %v4723 = vmul.f32 %v4655, %v4718
        %v4724 = vmul.f32 %v4656, %v4718
        %v4725 = vmul.f32 %v4657, %v4718
        %v4726 = vmul.f32 %v4658, %v4718
        %v4727 = vmul.f32 %v4659, %v4718
        %v4728 = vmul.f32 %v4660, %v4718
        %v4729 = vmul.f32 %v4661, %v4718
        %v4730 = vmul.f32 %v4662, %v4718
        %v4731 = vmul.f32 %v4663, %v4718
        %v4732 = vmul.f32 %v4664, %v4718
        %v4733 = vmul.f32 %v4665, %v4718
        %v4734 = vmul.f32 %v4666, %v4718
        %v4735 = vmul.f32 %v4667, %v4718
        %v4736 = vmul.f32 %v4668, %v4718
        %v4737 = vmul.f32 %v4669, %v4718
        %v4738 = vmul.f32 %v4670, %v4718
        %v4739 = vmul.f32 %v4671, %v4718
        %v4740 = vmul.f32 %v4672, %v4718
        %v4741 = vmul.f32 %v4673, %v4718
        %v4742 = vmul.f32 %v4674, %v4718
        %v4743 = vmul.f32 %v4675, %v4718
        %v4744 = vmul.f32 %v4676, %v4718
        %v4745 = vmul.f32 %v4677, %v4718
        %v4746 = vmul.f32 %v4678, %v4718
        %v4747 = vmul.f32 %v4679, %v4718
        %v4748 = vmul.f32 %v4680, %v4718
        %v4749 = vmul.f32 %v4681, %v4718
        %v4750 = vmul.f32 %v4682, %v4718
        %v4751 = vmul.f32 %v4683, %v4718
        %v4752 = vmul.f32 %v4684, %v4718
        %v4753 = vmul.f32 %v4685, %v4718
        %v4754 = vmul.f32 %v4686, %v4718
        %v4755 = vmul.f32 %v4687, %v4718
        %v4756 = vmul.f32 %v4688, %v4718
        %v4757 = vmul.f32 %v4689, %v4718
        %v4758 = vmul.f32 %v4690, %v4718
        %v4759 = vmul.f32 %v4691, %v4718
        %v4760 = vmul.f32 %v4692, %v4718
        %v4761 = vmul.f32 %v4693, %v4718
        %v4762 = vmul.f32 %v4694, %v4718
        %v4763 = vmul.f32 %v4695, %v4718
        %v4764 = vmul.f32 %v4696, %v4718
        %v4765 = vmul.f32 %v4697, %v4718
        %v4766 = vmul.f32 %v4698, %v4718
        %v4767 = vmul.f32 %v4699, %v4718
        %v4768 = vmul.f32 %v4700, %v4718
        %v4769 = vmul.f32 %v4701, %v4718
        %v4770 = vmul.f32 %v4702, %v4718
        %v4771 = vmul.f32 %v4703, %v4718
        %v4772 = vmul.f32 %v4704, %v4718
        %v4773 = vmul.f32 %v4705, %v4718
        %v4774 = vmul.f32 %v4706, %v4718
        %v4775 = vmul.f32 %v4707, %v4718
        %v4776 = vmul.f32 %v4708, %v4718
        %v4777 = vmul.f32 %v4709, %v4718
        %v4778 = vmul.f32 %v4710, %v4718
        %v4779 = vmul.f32 %v4711, %v4718
        %v4780 = vmul.f32 %v4712, %v4718
        %v4781 = vmul.f32 %v4713, %v4718
        %v4782 = vmul.f32 %v4714, %v4718
        %v4783 = vmul.f32 %v4715, %v4718
        %v4784 = vld [vmem:[%s10] sm:$0x1]
        %v4786 = vperm.slane %v4784, 0
        %v4788 = vadd.f32 %v4720, %v4786
        %v4789 = vadd.f32 %v4721, %v4786
        %v4790 = vadd.f32 %v4722, %v4786
        %v4791 = vadd.f32 %v4723, %v4786
        %v4792 = vadd.f32 %v4724, %v4786
        %v4793 = vadd.f32 %v4725, %v4786
        %v4794 = vadd.f32 %v4726, %v4786
        %v4795 = vadd.f32 %v4727, %v4786
        %v4796 = vadd.f32 %v4728, %v4786
        %v4797 = vadd.f32 %v4729, %v4786
        %v4798 = vadd.f32 %v4730, %v4786
        %v4799 = vadd.f32 %v4731, %v4786
        %v4800 = vadd.f32 %v4732, %v4786
        %v4801 = vadd.f32 %v4733, %v4786
        %v4802 = vadd.f32 %v4734, %v4786
        %v4803 = vadd.f32 %v4735, %v4786
        %v4804 = vadd.f32 %v4736, %v4786
        %v4805 = vadd.f32 %v4737, %v4786
        %v4806 = vadd.f32 %v4738, %v4786
        %v4807 = vadd.f32 %v4739, %v4786
        %v4808 = vadd.f32 %v4740, %v4786
        %v4809 = vadd.f32 %v4741, %v4786
        %v4810 = vadd.f32 %v4742, %v4786
        %v4811 = vadd.f32 %v4743, %v4786
        %v4812 = vadd.f32 %v4744, %v4786
        %v4813 = vadd.f32 %v4745, %v4786
        %v4814 = vadd.f32 %v4746, %v4786
        %v4815 = vadd.f32 %v4747, %v4786
        %v4816 = vadd.f32 %v4748, %v4786
        %v4817 = vadd.f32 %v4749, %v4786
        %v4818 = vadd.f32 %v4750, %v4786
        %v4819 = vadd.f32 %v4751, %v4786
        %v4820 = vadd.f32 %v4752, %v4786
        %v4821 = vadd.f32 %v4753, %v4786
        %v4822 = vadd.f32 %v4754, %v4786
        %v4823 = vadd.f32 %v4755, %v4786
        %v4824 = vadd.f32 %v4756, %v4786
        %v4825 = vadd.f32 %v4757, %v4786
        %v4826 = vadd.f32 %v4758, %v4786
        %v4827 = vadd.f32 %v4759, %v4786
        %v4828 = vadd.f32 %v4760, %v4786
        %v4829 = vadd.f32 %v4761, %v4786
        %v4830 = vadd.f32 %v4762, %v4786
        %v4831 = vadd.f32 %v4763, %v4786
        %v4832 = vadd.f32 %v4764, %v4786
        %v4833 = vadd.f32 %v4765, %v4786
        %v4834 = vadd.f32 %v4766, %v4786
        %v4835 = vadd.f32 %v4767, %v4786
        %v4836 = vadd.f32 %v4768, %v4786
        %v4837 = vadd.f32 %v4769, %v4786
        %v4838 = vadd.f32 %v4770, %v4786
        %v4839 = vadd.f32 %v4771, %v4786
        %v4840 = vadd.f32 %v4772, %v4786
        %v4841 = vadd.f32 %v4773, %v4786
        %v4842 = vadd.f32 %v4774, %v4786
        %v4843 = vadd.f32 %v4775, %v4786
        %v4844 = vadd.f32 %v4776, %v4786
        %v4845 = vadd.f32 %v4777, %v4786
        %v4846 = vadd.f32 %v4778, %v4786
        %v4847 = vadd.f32 %v4779, %v4786
        %v4848 = vadd.f32 %v4780, %v4786
        %v4849 = vadd.f32 %v4781, %v4786
        %v4850 = vadd.f32 %v4782, %v4786
        %v4851 = vadd.f32 %v4783, %v4786
        %4852 = vst [vmem:[%s650] sm:$0xff] %v4788
        %4853 = vst [vmem:[%s650 + $0x8] sm:$0xff] %v4789
        %4854 = vst [vmem:[%s650 + $0x10] sm:$0xff] %v4790
        %4855 = vst [vmem:[%s650 + $0x18] sm:$0xff] %v4791
        %4856 = vst [vmem:[%s650 + $0x20] sm:$0xff] %v4792
        %4857 = vst [vmem:[%s650 + $0x28] sm:$0xff] %v4793
        %4858 = vst [vmem:[%s650 + $0x30] sm:$0xff] %v4794
        %4859 = vst [vmem:[%s650 + $0x38] sm:$0xff] %v4795
        %4860 = vst [vmem:[%s650 + $0x40] sm:$0xff] %v4796
        %4861 = vst [vmem:[%s650 + $0x48] sm:$0xff] %v4797
        %4862 = vst [vmem:[%s650 + $0x50] sm:$0xff] %v4798
        %4863 = vst [vmem:[%s650 + $0x58] sm:$0xff] %v4799
        %4864 = vst [vmem:[%s650 + $0x60] sm:$0xff] %v4800
        %4865 = vst [vmem:[%s650 + $0x68] sm:$0xff] %v4801
        %4866 = vst [vmem:[%s650 + $0x70] sm:$0xff] %v4802
        %4867 = vst [vmem:[%s650 + $0x78] sm:$0xff] %v4803
        %4868 = vst [vmem:[%s650 + $0x80] sm:$0xff] %v4804
        %4869 = vst [vmem:[%s650 + $0x88] sm:$0xff] %v4805
        %4870 = vst [vmem:[%s650 + $0x90] sm:$0xff] %v4806
        %4871 = vst [vmem:[%s650 + $0x98] sm:$0xff] %v4807
        %4872 = vst [vmem:[%s650 + $0xa0] sm:$0xff] %v4808
        %4873 = vst [vmem:[%s650 + $0xa8] sm:$0xff] %v4809
        %4874 = vst [vmem:[%s650 + $0xb0] sm:$0xff] %v4810
        %4875 = vst [vmem:[%s650 + $0xb8] sm:$0xff] %v4811
        %4876 = vst [vmem:[%s650 + $0xc0] sm:$0xff] %v4812
        %4877 = vst [vmem:[%s650 + $0xc8] sm:$0xff] %v4813
        %4878 = vst [vmem:[%s650 + $0xd0] sm:$0xff] %v4814
        %4879 = vst [vmem:[%s650 + $0xd8] sm:$0xff] %v4815
        %4880 = vst [vmem:[%s650 + $0xe0] sm:$0xff] %v4816
        %4881 = vst [vmem:[%s650 + $0xe8] sm:$0xff] %v4817
        %4882 = vst [vmem:[%s650 + $0xf0] sm:$0xff] %v4818
        %4883 = vst [vmem:[%s650 + $0xf8] sm:$0xff] %v4819
        %4884 = vst [vmem:[%s650 + $0x100] sm:$0xff] %v4820
        %4885 = vst [vmem:[%s650 + $0x108] sm:$0xff] %v4821
        %4886 = vst [vmem:[%s650 + $0x110] sm:$0xff] %v4822
        %4887 = vst [vmem:[%s650 + $0x118] sm:$0xff] %v4823
        %4888 = vst [vmem:[%s650 + $0x120] sm:$0xff] %v4824
        %4889 = vst [vmem:[%s650 + $0x128] sm:$0xff] %v4825
        %4890 = vst [vmem:[%s650 + $0x130] sm:$0xff] %v4826
        %4891 = vst [vmem:[%s650 + $0x138] sm:$0xff] %v4827
        %4892 = vst [vmem:[%s650 + $0x140] sm:$0xff] %v4828
        %4893 = vst [vmem:[%s650 + $0x148] sm:$0xff] %v4829
        %4894 = vst [vmem:[%s650 + $0x150] sm:$0xff] %v4830
        %4895 = vst [vmem:[%s650 + $0x158] sm:$0xff] %v4831
        %4896 = vst [vmem:[%s650 + $0x160] sm:$0xff] %v4832
        %4897 = vst [vmem:[%s650 + $0x168] sm:$0xff] %v4833
        %4898 = vst [vmem:[%s650 + $0x170] sm:$0xff] %v4834
        %4899 = vst [vmem:[%s650 + $0x178] sm:$0xff] %v4835
        %4900 = vst [vmem:[%s650 + $0x180] sm:$0xff] %v4836
        %4901 = vst [vmem:[%s650 + $0x188] sm:$0xff] %v4837
        %4902 = vst [vmem:[%s650 + $0x190] sm:$0xff] %v4838
        %4903 = vst [vmem:[%s650 + $0x198] sm:$0xff] %v4839
        %4904 = vst [vmem:[%s650 + $0x1a0] sm:$0xff] %v4840
        %4905 = vst [vmem:[%s650 + $0x1a8] sm:$0xff] %v4841
        %4906 = vst [vmem:[%s650 + $0x1b0] sm:$0xff] %v4842
        %4907 = vst [vmem:[%s650 + $0x1b8] sm:$0xff] %v4843
        %4908 = vst [vmem:[%s650 + $0x1c0] sm:$0xff] %v4844
        %4909 = vst [vmem:[%s650 + $0x1c8] sm:$0xff] %v4845
        %4910 = vst [vmem:[%s650 + $0x1d0] sm:$0xff] %v4846
        %4911 = vst [vmem:[%s650 + $0x1d8] sm:$0xff] %v4847
        %4912 = vst [vmem:[%s650 + $0x1e0] sm:$0xff] %v4848
        %4913 = vst [vmem:[%s650 + $0x1e8] sm:$0xff] %v4849
        %4914 = vst [vmem:[%s650 + $0x1f0] sm:$0xff] %v4850
        %4915 = vst [vmem:[%s650 + $0x1f8] sm:$0xff] %v4851
        %s4916 = sand.u32 %s354, 1
        %s4917 = scalar_lea.sflag [#allocation4], %s4916
        %s4918 = sand.u32 %s354, 1
        %s4919 = smul.addr %s4918, 512
        %s4920 = scalar_lea.vmem [#allocation17], %s4919
        // Predicated region
        $region113: #{tpu_custom_call.1} parent=75 // pred_check
          %p4921 = pneg %p364
        $region114: #{tpu_custom_call.1} parent=75 // pred_check_branch
          %4923 = sbr.rel (%p4921) target = $region116
        $region115: #{tpu_custom_call.1} parent=75 // pred_region
          %s4924 = smul.u32 64, %s37
          %4926 = vsyncadd %s4917, 0
          %s4927 = smul.addr %s4924, 8
          %s4928 = scalar_lea.hbm %s14, %s4927
          %s4929 = sshll.u32 %s4920, 4
          %s4930 = int_to_ptr.vmem [resolvable:$true] %s4929
          %s4931 = sshll.u32 %s4928, 4
          %s4932 = int_to_ptr.hbm [resolvable:$true] %s4931
          %4937 = dma.vmem_to_hbm [thread:$0]  %s4930, 8192, %s4932, %s4917, 128, 128, 8
        $region116: #{tpu_custom_call.1} parent=75 // pred_fallthru
          _
      $region76: #{tpu_custom_call.1} parent=5 // pred_fallthru
        _
      %p4938 = scmp.le.s32.totalorder 2, %s32
      // Predicated region
      $region117: #{tpu_custom_call.1} parent=5 // pred_check
        %p4939 = pneg %p4938
      $region118: #{tpu_custom_call.1} parent=5 // pred_check_branch
        %4941 = sbr.rel (%p4939) target = $region120
      $region119: #{tpu_custom_call.1} parent=5 // pred_region
        %s4942 = ssub.s32 %s32, 2
        // Predicated region
        $region121: #{tpu_custom_call.1} parent=119 // pred_check
          %p4943 = pneg %p370
        $region122: #{tpu_custom_call.1} parent=119 // pred_check_branch
          %4945 = sbr.rel (%p4943) target = $region124
        $region123: #{tpu_custom_call.1} parent=119 // pred_region
          %s4946 = sand.u32 %s355, 1
          %s4947 = scalar_lea.sflag [#allocation4], %s4946
          %s4948 = sand.u32 %s355, 1
          %s4949 = smul.addr %s4948, 512
          %s4950 = scalar_lea.vmem [#allocation17], %s4949
          %4952 = dma.done %s4947, 8192
        $region124: #{tpu_custom_call.1} parent=119 // pred_fallthru
          _
      $region120: #{tpu_custom_call.1} parent=5 // pred_fallthru
        _
    $region6: #{tpu_custom_call.1} parent=1 // loop_footer
      %s36 = sadd.s32 1, %s32
    $region7: #{tpu_custom_call.1} parent=1 // loop_footer_branch
      %31 = sbr.rel target = $region3
    $region8: #{tpu_custom_call.1} parent=1 // loop_exit
      _
    %4953 = vsyncpa [#allocation3], 1
    %s4954 = scalar_lea.sflag [#allocation3], 1
    %4955 = vsyncpa %s4954, 1
    %4956 = vsyncpa [#allocation6], 1
    %s4957 = scalar_lea.sflag [#allocation6], 1
    %4958 = vsyncpa %s4957, 1
    %4959 = vsyncpa [#allocation9], 1
    %4960 = vsyncpa [#allocation12], 1
    %4961 = vsyncpa [#allocation15], 1
    %4962 = vsyncpa [#allocation4], 1
    %s4963 = scalar_lea.sflag [#allocation4], 1
    %4964 = vsyncpa %s4963, 1

</llo_original>
